<compile_context>
chip_gen: v5e
topology: v5e:2x2
jax: 0.10.0
libtpu: 0.0.40
codegen_flags: <defaults>
</compile_context>

<pallas_src>
import jax
import jax.numpy as jnp
from jax.experimental import pallas as pl
from jax.experimental.pallas import tpu as pltpu


def _dup_cat_kernel(x_ref, o_ref):
    # x_ref: (TB, F) in VMEM, o_ref: (TB, 2, F) in VMEM.
    # One load, two full-width (lane-aligned) stores per tile.
    v = x_ref[...]
    o_ref[:, 0, :] = v
    o_ref[:, 1, :] = v


def model_forward(x, *, block_rows=512, force_pallas=False,
                  min_pallas_bytes=256 * 1024):
    """Equivalent of the PyTorch Model.forward."""
    b = x.shape[0]
    y = x.reshape(b, -1)  # row-major flatten, same as torch .view
    f = y.shape[1]
    itemsize = jnp.dtype(y.dtype).itemsize

    # Small-input fast path: let XLA fuse the concat (Pallas launch overhead
    # would dominate).
    if not force_pallas and y.size * itemsize < min_pallas_bytes:
        return jnp.concatenate([y, y], axis=1)

    # Tile rows. Cap so double-buffered (input TB*F + output TB*2F) footprint
    # stays a few MiB — comfortably inside scoped VMEM on v5e/v6e/v7x.
    max_rows_by_vmem = max(8, (8 * 1024 * 1024) // max(1, 3 * f * itemsize))
    tb = min(b, block_rows, max_rows_by_vmem)
    if tb < b and tb >= 8:
        tb -= tb % 8  # keep sublane-aligned tiles when not covering full B

    out3 = pl.pallas_call(
        _dup_cat_kernel,
        out_shape=jax.ShapeDtypeStruct((b, 2, f), y.dtype),
        grid=(pl.cdiv(b, tb),),
        in_specs=[pl.BlockSpec((tb, f), lambda i: (i, 0))],
        out_specs=pl.BlockSpec((tb, 2, f), lambda i: (i, 0, 0)),
        compiler_params=pltpu.CompilerParams(
            dimension_semantics=("parallel",),
            vmem_limit_bytes=64 * 1024 * 1024,
        ),
    )(y)

    # (B, 2, F) -> (B, 2F) is a free row-major view == torch.cat([y, y], dim=1)
    return out3.reshape(b, 2 * f)


def _reference(x):
    y = x.reshape(x.shape[0], -1)
    return jnp.concatenate([y, y], axis=1)


if __name__ == "__main__":
    key = jax.random.PRNGKey(0)
    k_small, k_big = jax.random.split(key)

    # 1) Exact shape from the PyTorch example (takes the small-input fast path).
    x_small = jax.random.normal(k_small, (2, 2, 2), dtype=jnp.float32)
    out_small = model_forward(x_small)
    jax.block_until_ready(out_small)
    ref_small = _reference(x_small)
    assert out_small.shape == ref_small.shape, (out_small.shape, ref_small.shape)
    assert jnp.allclose(out_small, ref_small), "small-case mismatch vs reference"

    # 2) A modestly larger input forced through the Pallas kernel to exercise
    #    the row-tiled, pipelined path.
    x_big = jax.random.normal(k_big, (512, 8, 32), dtype=jnp.float32)  # F = 256
    out_big = model_forward(x_big, force_pallas=True)
    jax.block_until_ready(out_big)
    ref_big = _reference(x_big)
    assert out_big.shape == ref_big.shape, (out_big.shape, ref_big.shape)
    assert jnp.allclose(out_big, ref_big), "pallas-path mismatch vs reference"

    print("KERNEL_OK")
</pallas_src>

<mosaic_0001>
module attributes {stable_mosaic.version = 11 : i64} {
  func.func @_dup_cat_kernel(%arg0: i32, %arg1: memref<512x256xf32, #tpu.memory_space<vmem>>, %arg2: memref<512x2x256xf32, #tpu.memory_space<vmem>>) attributes {dimension_semantics = [#tpu.dimension_semantics<parallel>], iteration_bounds = array<i64: 1>, scalar_prefetch = 0 : i64, scratch_operands = 0 : i64, tpu.core_type = #tpu.core_type<tc>, window_params = [{transform_indices = @transform_0, window_bounds = array<i64: 512, 256>}, {transform_indices = @transform_1, window_bounds = array<i64: 512, 2, 256>}]} {
    %c0 = arith.constant 0 : index
    %c0_0 = arith.constant 0 : index
    %0 = vector.load %arg1[%c0, %c0_0] : memref<512x256xf32, #tpu.memory_space<vmem>>, vector<512x256xf32>
    %c0_1 = arith.constant 0 : index
    %c0_2 = arith.constant 0 : index
    %c0_3 = arith.constant 0 : index
    %1 = vector.load %arg2[%c0_1, %c0_2, %c0_3] : memref<512x2x256xf32, #tpu.memory_space<vmem>>, vector<512x1x256xf32>
    %2 = vector.shape_cast %1 : vector<512x1x256xf32> to vector<512x256xf32>
    %3 = vector.shape_cast %0 : vector<512x256xf32> to vector<512x1x256xf32>
    tpu.vector_store %arg2[%c0_1, %c0_2, %c0_3], %3 {strides = array<i32>} : memref<512x2x256xf32, #tpu.memory_space<vmem>>, vector<512x1x256xf32>,
    %c0_4 = arith.constant 0 : index
    %c1 = arith.constant 1 : index
    %c0_5 = arith.constant 0 : index
    %4 = vector.load %arg2[%c0_4, %c1, %c0_5] : memref<512x2x256xf32, #tpu.memory_space<vmem>>, vector<512x1x256xf32>
    %5 = vector.shape_cast %4 : vector<512x1x256xf32> to vector<512x256xf32>
    %6 = vector.shape_cast %0 : vector<512x256xf32> to vector<512x1x256xf32>
    tpu.vector_store %arg2[%c0_4, %c1, %c0_5], %6 {strides = array<i32>} : memref<512x2x256xf32, #tpu.memory_space<vmem>>, vector<512x1x256xf32>,
    return
  }
  func.func @transform_0(%arg0: i32) -> (i32, i32) {
    %c0_i32 = arith.constant 0 : i32
    %c0_i32_0 = arith.constant 0 : i32
    return %arg0, %c0_i32 : i32, i32
  }
  func.func @transform_1(%arg0: i32) -> (i32, i32, i32) {
    %c0_i32 = arith.constant 0 : i32
    %c0_i32_0 = arith.constant 0 : i32
    %c0_i32_1 = arith.constant 0 : i32
    return %arg0, %c0_i32, %c0_i32_0 : i32, i32, i32
  }
}

</mosaic_0001>

<llo_original>
// kernel: tpu_custom_call.1
$region0: #{tpu_custom_call.1}
  #allocation0 [shape = 'u32[]', space=smem, size = 0x4, offset = 0x4, fixed_abs, tag = 'smem constant byte address 0x4 - core index']
  #allocation1 [shape = 'u32[72,128]{1,0:T(1,128)}', space=vmem, size = 0x9000, scoped, tag = 'internal scratch']
  %s0 = inlined_call_operand.hbm [shape: f32[512,256], index: 0, kind: input, shape index: {}]
  %s1 = inlined_call_operand.hbm [shape: f32[512,2,256], index: 1, kind: output, shape index: {}]
  %s2 = sld [smem:[#allocation0]]
  $region18: #{tpu_custom_call.1} parent=0
    _
  %s4 = ssub.s32 1, %s2
  %s5 = scalar_select 0, %s4, %s2
  $region1: #{tpu_custom_call.1} parent=0
    #allocation2 [shape = 'u8[524288]{0}', space=vmem, size = 0x80000, scoped, tag = 'input window, operand 0, single buffered']
    #allocation3 [shape = 's32[1]{0}', space=sflag, size = 0x4, scoped, tag = 'scoped memory for tpu_custom_call.1']
    #allocation4 [shape = 's32[1]{0}', space=sflag, size = 0x4, scoped, tag = 'scoped memory for tpu_custom_call.1']
    #allocation5 [shape = 'u8[1048576]{0}', space=vmem, size = 0x100000, scoped, tag = 'output window, operand 0, single buffered']
    %6 = vsyncpa [#allocation3], 0
    %7 = vsyncpa [#allocation4], 0
    // Predicated region
    $region2: #{tpu_custom_call.1} parent=1 // pred_check
      _
    $region3: #{tpu_custom_call.1} parent=1 // pred_check_branch
      %9 = sbr.rel (0) target = $region5
    $region4: #{tpu_custom_call.1} parent=1 // pred_region
      %11 = vsyncadd [#allocation3], 0
      %s12 = sshll.u32 %s0, 4
      %s13 = int_to_ptr.hbm [resolvable:$true] %s12
      %s14 = sshll.u32 [#allocation2], 4
      %s15 = int_to_ptr.vmem [resolvable:$true] %s14
      %20 = dma.hbm_to_vmem [thread:$0]  %s13, 16384, %s15, [#allocation3], 256, 256, 16
    $region5: #{tpu_custom_call.1} parent=1 // pred_fallthru
      _
    // Predicated region
    $region6: #{tpu_custom_call.1} parent=1 // pred_check
      _
    $region7: #{tpu_custom_call.1} parent=1 // pred_check_branch
      %22 = sbr.rel (0) target = $region9
    $region8: #{tpu_custom_call.1} parent=1 // pred_region
      %24 = dma.done [#allocation3], 16384
    $region9: #{tpu_custom_call.1} parent=1 // pred_fallthru
      _
    %v25 = vld [vmem:[#allocation2] sm:$0xff]
    %v26 = vld [vmem:[#allocation2 + $0x8] sm:$0xff]
    %v27 = vld [vmem:[#allocation2 + $0x10] sm:$0xff]
    %v28 = vld [vmem:[#allocation2 + $0x18] sm:$0xff]
    %v29 = vld [vmem:[#allocation2 + $0x20] sm:$0xff]
    %v30 = vld [vmem:[#allocation2 + $0x28] sm:$0xff]
    %v31 = vld [vmem:[#allocation2 + $0x30] sm:$0xff]
    %v32 = vld [vmem:[#allocation2 + $0x38] sm:$0xff]
    %v33 = vld [vmem:[#allocation2 + $0x40] sm:$0xff]
    %v34 = vld [vmem:[#allocation2 + $0x48] sm:$0xff]
    %v35 = vld [vmem:[#allocation2 + $0x50] sm:$0xff]
    %v36 = vld [vmem:[#allocation2 + $0x58] sm:$0xff]
    %v37 = vld [vmem:[#allocation2 + $0x60] sm:$0xff]
    %v38 = vld [vmem:[#allocation2 + $0x68] sm:$0xff]
    %v39 = vld [vmem:[#allocation2 + $0x70] sm:$0xff]
    %v40 = vld [vmem:[#allocation2 + $0x78] sm:$0xff]
    %v41 = vld [vmem:[#allocation2 + $0x80] sm:$0xff]
    %v42 = vld [vmem:[#allocation2 + $0x88] sm:$0xff]
    %v43 = vld [vmem:[#allocation2 + $0x90] sm:$0xff]
    %v44 = vld [vmem:[#allocation2 + $0x98] sm:$0xff]
    %v45 = vld [vmem:[#allocation2 + $0xa0] sm:$0xff]
    %v46 = vld [vmem:[#allocation2 + $0xa8] sm:$0xff]
    %v47 = vld [vmem:[#allocation2 + $0xb0] sm:$0xff]
    %v48 = vld [vmem:[#allocation2 + $0xb8] sm:$0xff]
    %v49 = vld [vmem:[#allocation2 + $0xc0] sm:$0xff]
    %v50 = vld [vmem:[#allocation2 + $0xc8] sm:$0xff]
    %v51 = vld [vmem:[#allocation2 + $0xd0] sm:$0xff]
    %v52 = vld [vmem:[#allocation2 + $0xd8] sm:$0xff]
    %v53 = vld [vmem:[#allocation2 + $0xe0] sm:$0xff]
    %v54 = vld [vmem:[#allocation2 + $0xe8] sm:$0xff]
    %v55 = vld [vmem:[#allocation2 + $0xf0] sm:$0xff]
    %v56 = vld [vmem:[#allocation2 + $0xf8] sm:$0xff]
    %v57 = vld [vmem:[#allocation2 + $0x100] sm:$0xff]
    %v58 = vld [vmem:[#allocation2 + $0x108] sm:$0xff]
    %v59 = vld [vmem:[#allocation2 + $0x110] sm:$0xff]
    %v60 = vld [vmem:[#allocation2 + $0x118] sm:$0xff]
    %v61 = vld [vmem:[#allocation2 + $0x120] sm:$0xff]
    %v62 = vld [vmem:[#allocation2 + $0x128] sm:$0xff]
    %v63 = vld [vmem:[#allocation2 + $0x130] sm:$0xff]
    %v64 = vld [vmem:[#allocation2 + $0x138] sm:$0xff]
    %v65 = vld [vmem:[#allocation2 + $0x140] sm:$0xff]
    %v66 = vld [vmem:[#allocation2 + $0x148] sm:$0xff]
    %v67 = vld [vmem:[#allocation2 + $0x150] sm:$0xff]
    %v68 = vld [vmem:[#allocation2 + $0x158] sm:$0xff]
    %v69 = vld [vmem:[#allocation2 + $0x160] sm:$0xff]
    %v70 = vld [vmem:[#allocation2 + $0x168] sm:$0xff]
    %v71 = vld [vmem:[#allocation2 + $0x170] sm:$0xff]
    %v72 = vld [vmem:[#allocation2 + $0x178] sm:$0xff]
    %v73 = vld [vmem:[#allocation2 + $0x180] sm:$0xff]
    %v74 = vld [vmem:[#allocation2 + $0x188] sm:$0xff]
    %v75 = vld [vmem:[#allocation2 + $0x190] sm:$0xff]
    %v76 = vld [vmem:[#allocation2 + $0x198] sm:$0xff]
    %v77 = vld [vmem:[#allocation2 + $0x1a0] sm:$0xff]
    %v78 = vld [vmem:[#allocation2 + $0x1a8] sm:$0xff]
    %v79 = vld [vmem:[#allocation2 + $0x1b0] sm:$0xff]
    %v80 = vld [vmem:[#allocation2 + $0x1b8] sm:$0xff]
    %v81 = vld [vmem:[#allocation2 + $0x1c0] sm:$0xff]
    %v82 = vld [vmem:[#allocation2 + $0x1c8] sm:$0xff]
    %v83 = vld [vmem:[#allocation2 + $0x1d0] sm:$0xff]
    %v84 = vld [vmem:[#allocation2 + $0x1d8] sm:$0xff]
    %v85 = vld [vmem:[#allocation2 + $0x1e0] sm:$0xff]
    %v86 = vld [vmem:[#allocation2 + $0x1e8] sm:$0xff]
    %v87 = vld [vmem:[#allocation2 + $0x1f0] sm:$0xff]
    %v88 = vld [vmem:[#allocation2 + $0x1f8] sm:$0xff]
    %v89 = vld [vmem:[#allocation2 + $0x200] sm:$0xff]
    %v90 = vld [vmem:[#allocation2 + $0x208] sm:$0xff]
    %v91 = vld [vmem:[#allocation2 + $0x210] sm:$0xff]
    %v92 = vld [vmem:[#allocation2 + $0x218] sm:$0xff]
    %v93 = vld [vmem:[#allocation2 + $0x220] sm:$0xff]
    %v94 = vld [vmem:[#allocation2 + $0x228] sm:$0xff]
    %v95 = vld [vmem:[#allocation2 + $0x230] sm:$0xff]
    %v96 = vld [vmem:[#allocation2 + $0x238] sm:$0xff]
    %v97 = vld [vmem:[#allocation2 + $0x240] sm:$0xff]
    %v98 = vld [vmem:[#allocation2 + $0x248] sm:$0xff]
    %v99 = vld [vmem:[#allocation2 + $0x250] sm:$0xff]
    %v100 = vld [vmem:[#allocation2 + $0x258] sm:$0xff]
    %v101 = vld [vmem:[#allocation2 + $0x260] sm:$0xff]
    %v102 = vld [vmem:[#allocation2 + $0x268] sm:$0xff]
    %v103 = vld [vmem:[#allocation2 + $0x270] sm:$0xff]
    %v104 = vld [vmem:[#allocation2 + $0x278] sm:$0xff]
    %v105 = vld [vmem:[#allocation2 + $0x280] sm:$0xff]
    %v106 = vld [vmem:[#allocation2 + $0x288] sm:$0xff]
    %v107 = vld [vmem:[#allocation2 + $0x290] sm:$0xff]
    %v108 = vld [vmem:[#allocation2 + $0x298] sm:$0xff]
    %v109 = vld [vmem:[#allocation2 + $0x2a0] sm:$0xff]
    %v110 = vld [vmem:[#allocation2 + $0x2a8] sm:$0xff]
    %v111 = vld [vmem:[#allocation2 + $0x2b0] sm:$0xff]
    %v112 = vld [vmem:[#allocation2 + $0x2b8] sm:$0xff]
    %v113 = vld [vmem:[#allocation2 + $0x2c0] sm:$0xff]
    %v114 = vld [vmem:[#allocation2 + $0x2c8] sm:$0xff]
    %v115 = vld [vmem:[#allocation2 + $0x2d0] sm:$0xff]
    %v116 = vld [vmem:[#allocation2 + $0x2d8] sm:$0xff]
    %v117 = vld [vmem:[#allocation2 + $0x2e0] sm:$0xff]
    %v118 = vld [vmem:[#allocation2 + $0x2e8] sm:$0xff]
    %v119 = vld [vmem:[#allocation2 + $0x2f0] sm:$0xff]
    %v120 = vld [vmem:[#allocation2 + $0x2f8] sm:$0xff]
    %v121 = vld [vmem:[#allocation2 + $0x300] sm:$0xff]
    %v122 = vld [vmem:[#allocation2 + $0x308] sm:$0xff]
    %v123 = vld [vmem:[#allocation2 + $0x310] sm:$0xff]
    %v124 = vld [vmem:[#allocation2 + $0x318] sm:$0xff]
    %v125 = vld [vmem:[#allocation2 + $0x320] sm:$0xff]
    %v126 = vld [vmem:[#allocation2 + $0x328] sm:$0xff]
    %v127 = vld [vmem:[#allocation2 + $0x330] sm:$0xff]
    %v128 = vld [vmem:[#allocation2 + $0x338] sm:$0xff]
    %v129 = vld [vmem:[#allocation2 + $0x340] sm:$0xff]
    %v130 = vld [vmem:[#allocation2 + $0x348] sm:$0xff]
    %v131 = vld [vmem:[#allocation2 + $0x350] sm:$0xff]
    %v132 = vld [vmem:[#allocation2 + $0x358] sm:$0xff]
    %v133 = vld [vmem:[#allocation2 + $0x360] sm:$0xff]
    %v134 = vld [vmem:[#allocation2 + $0x368] sm:$0xff]
    %v135 = vld [vmem:[#allocation2 + $0x370] sm:$0xff]
    %v136 = vld [vmem:[#allocation2 + $0x378] sm:$0xff]
    %v137 = vld [vmem:[#allocation2 + $0x380] sm:$0xff]
    %v138 = vld [vmem:[#allocation2 + $0x388] sm:$0xff]
    %v139 = vld [vmem:[#allocation2 + $0x390] sm:$0xff]
    %v140 = vld [vmem:[#allocation2 + $0x398] sm:$0xff]
    %v141 = vld [vmem:[#allocation2 + $0x3a0] sm:$0xff]
    %v142 = vld [vmem:[#allocation2 + $0x3a8] sm:$0xff]
    %v143 = vld [vmem:[#allocation2 + $0x3b0] sm:$0xff]
    %v144 = vld [vmem:[#allocation2 + $0x3b8] sm:$0xff]
    %v145 = vld [vmem:[#allocation2 + $0x3c0] sm:$0xff]
    %v146 = vld [vmem:[#allocation2 + $0x3c8] sm:$0xff]
    %v147 = vld [vmem:[#allocation2 + $0x3d0] sm:$0xff]
    %v148 = vld [vmem:[#allocation2 + $0x3d8] sm:$0xff]
    %v149 = vld [vmem:[#allocation2 + $0x3e0] sm:$0xff]
    %v150 = vld [vmem:[#allocation2 + $0x3e8] sm:$0xff]
    %v151 = vld [vmem:[#allocation2 + $0x3f0] sm:$0xff]
    %v152 = vld [vmem:[#allocation2 + $0x3f8] sm:$0xff]
    %v281 = vrot.slane %v26, 7
    %v282 = vrot.slane %v28, 7
    %v283 = vrot.slane %v30, 7
    %v284 = vrot.slane %v32, 7
    %v285 = vrot.slane %v34, 7
    %v286 = vrot.slane %v36, 7
    %v287 = vrot.slane %v38, 7
    %v288 = vrot.slane %v40, 7
    %v289 = vrot.slane %v42, 7
    %v290 = vrot.slane %v44, 7
    %v291 = vrot.slane %v46, 7
    %v292 = vrot.slane %v48, 7
    %v293 = vrot.slane %v50, 7
    %v294 = vrot.slane %v52, 7
    %v295 = vrot.slane %v54, 7
    %v296 = vrot.slane %v56, 7
    %v297 = vrot.slane %v58, 7
    %v298 = vrot.slane %v60, 7
    %v299 = vrot.slane %v62, 7
    %v300 = vrot.slane %v64, 7
    %v301 = vrot.slane %v66, 7
    %v302 = vrot.slane %v68, 7
    %v303 = vrot.slane %v70, 7
    %v304 = vrot.slane %v72, 7
    %v305 = vrot.slane %v74, 7
    %v306 = vrot.slane %v76, 7
    %v307 = vrot.slane %v78, 7
    %v308 = vrot.slane %v80, 7
    %v309 = vrot.slane %v82, 7
    %v310 = vrot.slane %v84, 7
    %v311 = vrot.slane %v86, 7
    %v312 = vrot.slane %v88, 7
    %v313 = vrot.slane %v90, 7
    %v314 = vrot.slane %v92, 7
    %v315 = vrot.slane %v94, 7
    %v316 = vrot.slane %v96, 7
    %v317 = vrot.slane %v98, 7
    %v318 = vrot.slane %v100, 7
    %v319 = vrot.slane %v102, 7
    %v320 = vrot.slane %v104, 7
    %v321 = vrot.slane %v106, 7
    %v322 = vrot.slane %v108, 7
    %v323 = vrot.slane %v110, 7
    %v324 = vrot.slane %v112, 7
    %v325 = vrot.slane %v114, 7
    %v326 = vrot.slane %v116, 7
    %v327 = vrot.slane %v118, 7
    %v328 = vrot.slane %v120, 7
    %v329 = vrot.slane %v122, 7
    %v330 = vrot.slane %v124, 7
    %v331 = vrot.slane %v126, 7
    %v332 = vrot.slane %v128, 7
    %v333 = vrot.slane %v130, 7
    %v334 = vrot.slane %v132, 7
    %v335 = vrot.slane %v134, 7
    %v336 = vrot.slane %v136, 7
    %v337 = vrot.slane %v138, 7
    %v338 = vrot.slane %v140, 7
    %v339 = vrot.slane %v142, 7
    %v340 = vrot.slane %v144, 7
    %v341 = vrot.slane %v146, 7
    %v342 = vrot.slane %v148, 7
    %v343 = vrot.slane %v150, 7
    %v344 = vrot.slane %v152, 7
    %vm345 = vcmask 1040384
    %v346 = vsel %vm345, %v25, %v281
    %vm347 = vcmask 1041409
    %v348 = vsel %vm347, %v25, %v281
    %v349 = vrot.slane %v348, 1
    %vm350 = vcmask 1042434
    %v351 = vsel %vm350, %v25, %v281
    %v352 = vrot.slane %v351, 2
    %vm353 = vcmask 1043459
    %v354 = vsel %vm353, %v25, %v281
    %v355 = vrot.slane %v354, 3
    %vm356 = vcmask 1044484
    %v357 = vsel %vm356, %v25, %v281
    %v358 = vrot.slane %v357, 4
    %vm359 = vcmask 1045509
    %v360 = vsel %vm359, %v25, %v281
    %v361 = vrot.slane %v360, 5
    %vm362 = vcmask 1046534
    %v363 = vsel %vm362, %v25, %v281
    %v364 = vrot.slane %v363, 6
    %vm365 = vcmask 1046528
    %v366 = vsel %vm365, %v281, %v25
    %v367 = vrot.slane %v366, 7
    %v368 = vsel %vm345, %v27, %v282
    %v369 = vsel %vm347, %v27, %v282
    %v370 = vrot.slane %v369, 1
    %v371 = vsel %vm350, %v27, %v282
    %v372 = vrot.slane %v371, 2
    %v373 = vsel %vm353, %v27, %v282
    %v374 = vrot.slane %v373, 3
    %v375 = vsel %vm356, %v27, %v282
    %v376 = vrot.slane %v375, 4
    %v377 = vsel %vm359, %v27, %v282
    %v378 = vrot.slane %v377, 5
    %v379 = vsel %vm362, %v27, %v282
    %v380 = vrot.slane %v379, 6
    %v381 = vsel %vm365, %v282, %v27
    %v382 = vrot.slane %v381, 7
    %v383 = vsel %vm345, %v29, %v283
    %v384 = vsel %vm347, %v29, %v283
    %v385 = vrot.slane %v384, 1
    %v386 = vsel %vm350, %v29, %v283
    %v387 = vrot.slane %v386, 2
    %v388 = vsel %vm353, %v29, %v283
    %v389 = vrot.slane %v388, 3
    %v390 = vsel %vm356, %v29, %v283
    %v391 = vrot.slane %v390, 4
    %v392 = vsel %vm359, %v29, %v283
    %v393 = vrot.slane %v392, 5
    %v394 = vsel %vm362, %v29, %v283
    %v395 = vrot.slane %v394, 6
    %v396 = vsel %vm365, %v283, %v29
    %v397 = vrot.slane %v396, 7
    %v398 = vsel %vm345, %v31, %v284
    %v399 = vsel %vm347, %v31, %v284
    %v400 = vrot.slane %v399, 1
    %v401 = vsel %vm350, %v31, %v284
    %v402 = vrot.slane %v401, 2
    %v403 = vsel %vm353, %v31, %v284
    %v404 = vrot.slane %v403, 3
    %v405 = vsel %vm356, %v31, %v284
    %v406 = vrot.slane %v405, 4
    %v407 = vsel %vm359, %v31, %v284
    %v408 = vrot.slane %v407, 5
    %v409 = vsel %vm362, %v31, %v284
    %v410 = vrot.slane %v409, 6
    %v411 = vsel %vm365, %v284, %v31
    %v412 = vrot.slane %v411, 7
    %v413 = vsel %vm345, %v33, %v285
    %v414 = vsel %vm347, %v33, %v285
    %v415 = vrot.slane %v414, 1
    %v416 = vsel %vm350, %v33, %v285
    %v417 = vrot.slane %v416, 2
    %v418 = vsel %vm353, %v33, %v285
    %v419 = vrot.slane %v418, 3
    %v420 = vsel %vm356, %v33, %v285
    %v421 = vrot.slane %v420, 4
    %v422 = vsel %vm359, %v33, %v285
    %v423 = vrot.slane %v422, 5
    %v424 = vsel %vm362, %v33, %v285
    %v425 = vrot.slane %v424, 6
    %v426 = vsel %vm365, %v285, %v33
    %v427 = vrot.slane %v426, 7
    %v428 = vsel %vm345, %v35, %v286
    %v429 = vsel %vm347, %v35, %v286
    %v430 = vrot.slane %v429, 1
    %v431 = vsel %vm350, %v35, %v286
    %v432 = vrot.slane %v431, 2
    %v433 = vsel %vm353, %v35, %v286
    %v434 = vrot.slane %v433, 3
    %v435 = vsel %vm356, %v35, %v286
    %v436 = vrot.slane %v435, 4
    %v437 = vsel %vm359, %v35, %v286
    %v438 = vrot.slane %v437, 5
    %v439 = vsel %vm362, %v35, %v286
    %v440 = vrot.slane %v439, 6
    %v441 = vsel %vm365, %v286, %v35
    %v442 = vrot.slane %v441, 7
    %v443 = vsel %vm345, %v37, %v287
    %v444 = vsel %vm347, %v37, %v287
    %v445 = vrot.slane %v444, 1
    %v446 = vsel %vm350, %v37, %v287
    %v447 = vrot.slane %v446, 2
    %v448 = vsel %vm353, %v37, %v287
    %v449 = vrot.slane %v448, 3
    %v450 = vsel %vm356, %v37, %v287
    %v451 = vrot.slane %v450, 4
    %v452 = vsel %vm359, %v37, %v287
    %v453 = vrot.slane %v452, 5
    %v454 = vsel %vm362, %v37, %v287
    %v455 = vrot.slane %v454, 6
    %v456 = vsel %vm365, %v287, %v37
    %v457 = vrot.slane %v456, 7
    %v458 = vsel %vm345, %v39, %v288
    %v459 = vsel %vm347, %v39, %v288
    %v460 = vrot.slane %v459, 1
    %v461 = vsel %vm350, %v39, %v288
    %v462 = vrot.slane %v461, 2
    %v463 = vsel %vm353, %v39, %v288
    %v464 = vrot.slane %v463, 3
    %v465 = vsel %vm356, %v39, %v288
    %v466 = vrot.slane %v465, 4
    %v467 = vsel %vm359, %v39, %v288
    %v468 = vrot.slane %v467, 5
    %v469 = vsel %vm362, %v39, %v288
    %v470 = vrot.slane %v469, 6
    %v471 = vsel %vm365, %v288, %v39
    %v472 = vrot.slane %v471, 7
    %v473 = vsel %vm345, %v41, %v289
    %v474 = vsel %vm347, %v41, %v289
    %v475 = vrot.slane %v474, 1
    %v476 = vsel %vm350, %v41, %v289
    %v477 = vrot.slane %v476, 2
    %v478 = vsel %vm353, %v41, %v289
    %v479 = vrot.slane %v478, 3
    %v480 = vsel %vm356, %v41, %v289
    %v481 = vrot.slane %v480, 4
    %v482 = vsel %vm359, %v41, %v289
    %v483 = vrot.slane %v482, 5
    %v484 = vsel %vm362, %v41, %v289
    %v485 = vrot.slane %v484, 6
    %v486 = vsel %vm365, %v289, %v41
    %v487 = vrot.slane %v486, 7
    %v488 = vsel %vm345, %v43, %v290
    %v489 = vsel %vm347, %v43, %v290
    %v490 = vrot.slane %v489, 1
    %v491 = vsel %vm350, %v43, %v290
    %v492 = vrot.slane %v491, 2
    %v493 = vsel %vm353, %v43, %v290
    %v494 = vrot.slane %v493, 3
    %v495 = vsel %vm356, %v43, %v290
    %v496 = vrot.slane %v495, 4
    %v497 = vsel %vm359, %v43, %v290
    %v498 = vrot.slane %v497, 5
    %v499 = vsel %vm362, %v43, %v290
    %v500 = vrot.slane %v499, 6
    %v501 = vsel %vm365, %v290, %v43
    %v502 = vrot.slane %v501, 7
    %v503 = vsel %vm345, %v45, %v291
    %v504 = vsel %vm347, %v45, %v291
    %v505 = vrot.slane %v504, 1
    %v506 = vsel %vm350, %v45, %v291
    %v507 = vrot.slane %v506, 2
    %v508 = vsel %vm353, %v45, %v291
    %v509 = vrot.slane %v508, 3
    %v510 = vsel %vm356, %v45, %v291
    %v511 = vrot.slane %v510, 4
    %v512 = vsel %vm359, %v45, %v291
    %v513 = vrot.slane %v512, 5
    %v514 = vsel %vm362, %v45, %v291
    %v515 = vrot.slane %v514, 6
    %v516 = vsel %vm365, %v291, %v45
    %v517 = vrot.slane %v516, 7
    %v518 = vsel %vm345, %v47, %v292
    %v519 = vsel %vm347, %v47, %v292
    %v520 = vrot.slane %v519, 1
    %v521 = vsel %vm350, %v47, %v292
    %v522 = vrot.slane %v521, 2
    %v523 = vsel %vm353, %v47, %v292
    %v524 = vrot.slane %v523, 3
    %v525 = vsel %vm356, %v47, %v292
    %v526 = vrot.slane %v525, 4
    %v527 = vsel %vm359, %v47, %v292
    %v528 = vrot.slane %v527, 5
    %v529 = vsel %vm362, %v47, %v292
    %v530 = vrot.slane %v529, 6
    %v531 = vsel %vm365, %v292, %v47
    %v532 = vrot.slane %v531, 7
    %v533 = vsel %vm345, %v49, %v293
    %v534 = vsel %vm347, %v49, %v293
    %v535 = vrot.slane %v534, 1
    %v536 = vsel %vm350, %v49, %v293
    %v537 = vrot.slane %v536, 2
    %v538 = vsel %vm353, %v49, %v293
    %v539 = vrot.slane %v538, 3
    %v540 = vsel %vm356, %v49, %v293
    %v541 = vrot.slane %v540, 4
    %v542 = vsel %vm359, %v49, %v293
    %v543 = vrot.slane %v542, 5
    %v544 = vsel %vm362, %v49, %v293
    %v545 = vrot.slane %v544, 6
    %v546 = vsel %vm365, %v293, %v49
    %v547 = vrot.slane %v546, 7
    %v548 = vsel %vm345, %v51, %v294
    %v549 = vsel %vm347, %v51, %v294
    %v550 = vrot.slane %v549, 1
    %v551 = vsel %vm350, %v51, %v294
    %v552 = vrot.slane %v551, 2
    %v553 = vsel %vm353, %v51, %v294
    %v554 = vrot.slane %v553, 3
    %v555 = vsel %vm356, %v51, %v294
    %v556 = vrot.slane %v555, 4
    %v557 = vsel %vm359, %v51, %v294
    %v558 = vrot.slane %v557, 5
    %v559 = vsel %vm362, %v51, %v294
    %v560 = vrot.slane %v559, 6
    %v561 = vsel %vm365, %v294, %v51
    %v562 = vrot.slane %v561, 7
    %v563 = vsel %vm345, %v53, %v295
    %v564 = vsel %vm347, %v53, %v295
    %v565 = vrot.slane %v564, 1
    %v566 = vsel %vm350, %v53, %v295
    %v567 = vrot.slane %v566, 2
    %v568 = vsel %vm353, %v53, %v295
    %v569 = vrot.slane %v568, 3
    %v570 = vsel %vm356, %v53, %v295
    %v571 = vrot.slane %v570, 4
    %v572 = vsel %vm359, %v53, %v295
    %v573 = vrot.slane %v572, 5
    %v574 = vsel %vm362, %v53, %v295
    %v575 = vrot.slane %v574, 6
    %v576 = vsel %vm365, %v295, %v53
    %v577 = vrot.slane %v576, 7
    %v578 = vsel %vm345, %v55, %v296
    %v579 = vsel %vm347, %v55, %v296
    %v580 = vrot.slane %v579, 1
    %v581 = vsel %vm350, %v55, %v296
    %v582 = vrot.slane %v581, 2
    %v583 = vsel %vm353, %v55, %v296
    %v584 = vrot.slane %v583, 3
    %v585 = vsel %vm356, %v55, %v296
    %v586 = vrot.slane %v585, 4
    %v587 = vsel %vm359, %v55, %v296
    %v588 = vrot.slane %v587, 5
    %v589 = vsel %vm362, %v55, %v296
    %v590 = vrot.slane %v589, 6
    %v591 = vsel %vm365, %v296, %v55
    %v592 = vrot.slane %v591, 7
    %v593 = vsel %vm345, %v57, %v297
    %v594 = vsel %vm347, %v57, %v297
    %v595 = vrot.slane %v594, 1
    %v596 = vsel %vm350, %v57, %v297
    %v597 = vrot.slane %v596, 2
    %v598 = vsel %vm353, %v57, %v297
    %v599 = vrot.slane %v598, 3
    %v600 = vsel %vm356, %v57, %v297
    %v601 = vrot.slane %v600, 4
    %v602 = vsel %vm359, %v57, %v297
    %v603 = vrot.slane %v602, 5
    %v604 = vsel %vm362, %v57, %v297
    %v605 = vrot.slane %v604, 6
    %v606 = vsel %vm365, %v297, %v57
    %v607 = vrot.slane %v606, 7
    %v608 = vsel %vm345, %v59, %v298
    %v609 = vsel %vm347, %v59, %v298
    %v610 = vrot.slane %v609, 1
    %v611 = vsel %vm350, %v59, %v298
    %v612 = vrot.slane %v611, 2
    %v613 = vsel %vm353, %v59, %v298
    %v614 = vrot.slane %v613, 3
    %v615 = vsel %vm356, %v59, %v298
    %v616 = vrot.slane %v615, 4
    %v617 = vsel %vm359, %v59, %v298
    %v618 = vrot.slane %v617, 5
    %v619 = vsel %vm362, %v59, %v298
    %v620 = vrot.slane %v619, 6
    %v621 = vsel %vm365, %v298, %v59
    %v622 = vrot.slane %v621, 7
    %v623 = vsel %vm345, %v61, %v299
    %v624 = vsel %vm347, %v61, %v299
    %v625 = vrot.slane %v624, 1
    %v626 = vsel %vm350, %v61, %v299
    %v627 = vrot.slane %v626, 2
    %v628 = vsel %vm353, %v61, %v299
    %v629 = vrot.slane %v628, 3
    %v630 = vsel %vm356, %v61, %v299
    %v631 = vrot.slane %v630, 4
    %v632 = vsel %vm359, %v61, %v299
    %v633 = vrot.slane %v632, 5
    %v634 = vsel %vm362, %v61, %v299
    %v635 = vrot.slane %v634, 6
    %v636 = vsel %vm365, %v299, %v61
    %v637 = vrot.slane %v636, 7
    %v638 = vsel %vm345, %v63, %v300
    %v639 = vsel %vm347, %v63, %v300
    %v640 = vrot.slane %v639, 1
    %v641 = vsel %vm350, %v63, %v300
    %v642 = vrot.slane %v641, 2
    %v643 = vsel %vm353, %v63, %v300
    %v644 = vrot.slane %v643, 3
    %v645 = vsel %vm356, %v63, %v300
    %v646 = vrot.slane %v645, 4
    %v647 = vsel %vm359, %v63, %v300
    %v648 = vrot.slane %v647, 5
    %v649 = vsel %vm362, %v63, %v300
    %v650 = vrot.slane %v649, 6
    %v651 = vsel %vm365, %v300, %v63
    %v652 = vrot.slane %v651, 7
    %v653 = vsel %vm345, %v65, %v301
    %v654 = vsel %vm347, %v65, %v301
    %v655 = vrot.slane %v654, 1
    %v656 = vsel %vm350, %v65, %v301
    %v657 = vrot.slane %v656, 2
    %v658 = vsel %vm353, %v65, %v301
    %v659 = vrot.slane %v658, 3
    %v660 = vsel %vm356, %v65, %v301
    %v661 = vrot.slane %v660, 4
    %v662 = vsel %vm359, %v65, %v301
    %v663 = vrot.slane %v662, 5
    %v664 = vsel %vm362, %v65, %v301
    %v665 = vrot.slane %v664, 6
    %v666 = vsel %vm365, %v301, %v65
    %v667 = vrot.slane %v666, 7
    %v668 = vsel %vm345, %v67, %v302
    %v669 = vsel %vm347, %v67, %v302
    %v670 = vrot.slane %v669, 1
    %v671 = vsel %vm350, %v67, %v302
    %v672 = vrot.slane %v671, 2
    %v673 = vsel %vm353, %v67, %v302
    %v674 = vrot.slane %v673, 3
    %v675 = vsel %vm356, %v67, %v302
    %v676 = vrot.slane %v675, 4
    %v677 = vsel %vm359, %v67, %v302
    %v678 = vrot.slane %v677, 5
    %v679 = vsel %vm362, %v67, %v302
    %v680 = vrot.slane %v679, 6
    %v681 = vsel %vm365, %v302, %v67
    %v682 = vrot.slane %v681, 7
    %v683 = vsel %vm345, %v69, %v303
    %v684 = vsel %vm347, %v69, %v303
    %v685 = vrot.slane %v684, 1
    %v686 = vsel %vm350, %v69, %v303
    %v687 = vrot.slane %v686, 2
    %v688 = vsel %vm353, %v69, %v303
    %v689 = vrot.slane %v688, 3
    %v690 = vsel %vm356, %v69, %v303
    %v691 = vrot.slane %v690, 4
    %v692 = vsel %vm359, %v69, %v303
    %v693 = vrot.slane %v692, 5
    %v694 = vsel %vm362, %v69, %v303
    %v695 = vrot.slane %v694, 6
    %v696 = vsel %vm365, %v303, %v69
    %v697 = vrot.slane %v696, 7
    %v698 = vsel %vm345, %v71, %v304
    %v699 = vsel %vm347, %v71, %v304
    %v700 = vrot.slane %v699, 1
    %v701 = vsel %vm350, %v71, %v304
    %v702 = vrot.slane %v701, 2
    %v703 = vsel %vm353, %v71, %v304
    %v704 = vrot.slane %v703, 3
    %v705 = vsel %vm356, %v71, %v304
    %v706 = vrot.slane %v705, 4
    %v707 = vsel %vm359, %v71, %v304
    %v708 = vrot.slane %v707, 5
    %v709 = vsel %vm362, %v71, %v304
    %v710 = vrot.slane %v709, 6
    %v711 = vsel %vm365, %v304, %v71
    %v712 = vrot.slane %v711, 7
    %v713 = vsel %vm345, %v73, %v305
    %v714 = vsel %vm347, %v73, %v305
    %v715 = vrot.slane %v714, 1
    %v716 = vsel %vm350, %v73, %v305
    %v717 = vrot.slane %v716, 2
    %v718 = vsel %vm353, %v73, %v305
    %v719 = vrot.slane %v718, 3
    %v720 = vsel %vm356, %v73, %v305
    %v721 = vrot.slane %v720, 4
    %v722 = vsel %vm359, %v73, %v305
    %v723 = vrot.slane %v722, 5
    %v724 = vsel %vm362, %v73, %v305
    %v725 = vrot.slane %v724, 6
    %v726 = vsel %vm365, %v305, %v73
    %v727 = vrot.slane %v726, 7
    %v728 = vsel %vm345, %v75, %v306
    %v729 = vsel %vm347, %v75, %v306
    %v730 = vrot.slane %v729, 1
    %v731 = vsel %vm350, %v75, %v306
    %v732 = vrot.slane %v731, 2
    %v733 = vsel %vm353, %v75, %v306
    %v734 = vrot.slane %v733, 3
    %v735 = vsel %vm356, %v75, %v306
    %v736 = vrot.slane %v735, 4
    %v737 = vsel %vm359, %v75, %v306
    %v738 = vrot.slane %v737, 5
    %v739 = vsel %vm362, %v75, %v306
    %v740 = vrot.slane %v739, 6
    %v741 = vsel %vm365, %v306, %v75
    %v742 = vrot.slane %v741, 7
    %v743 = vsel %vm345, %v77, %v307
    %v744 = vsel %vm347, %v77, %v307
    %v745 = vrot.slane %v744, 1
    %v746 = vsel %vm350, %v77, %v307
    %v747 = vrot.slane %v746, 2
    %v748 = vsel %vm353, %v77, %v307
    %v749 = vrot.slane %v748, 3
    %v750 = vsel %vm356, %v77, %v307
    %v751 = vrot.slane %v750, 4
    %v752 = vsel %vm359, %v77, %v307
    %v753 = vrot.slane %v752, 5
    %v754 = vsel %vm362, %v77, %v307
    %v755 = vrot.slane %v754, 6
    %v756 = vsel %vm365, %v307, %v77
    %v757 = vrot.slane %v756, 7
    %v758 = vsel %vm345, %v79, %v308
    %v759 = vsel %vm347, %v79, %v308
    %v760 = vrot.slane %v759, 1
    %v761 = vsel %vm350, %v79, %v308
    %v762 = vrot.slane %v761, 2
    %v763 = vsel %vm353, %v79, %v308
    %v764 = vrot.slane %v763, 3
    %v765 = vsel %vm356, %v79, %v308
    %v766 = vrot.slane %v765, 4
    %v767 = vsel %vm359, %v79, %v308
    %v768 = vrot.slane %v767, 5
    %v769 = vsel %vm362, %v79, %v308
    %v770 = vrot.slane %v769, 6
    %v771 = vsel %vm365, %v308, %v79
    %v772 = vrot.slane %v771, 7
    %v773 = vsel %vm345, %v81, %v309
    %v774 = vsel %vm347, %v81, %v309
    %v775 = vrot.slane %v774, 1
    %v776 = vsel %vm350, %v81, %v309
    %v777 = vrot.slane %v776, 2
    %v778 = vsel %vm353, %v81, %v309
    %v779 = vrot.slane %v778, 3
    %v780 = vsel %vm356, %v81, %v309
    %v781 = vrot.slane %v780, 4
    %v782 = vsel %vm359, %v81, %v309
    %v783 = vrot.slane %v782, 5
    %v784 = vsel %vm362, %v81, %v309
    %v785 = vrot.slane %v784, 6
    %v786 = vsel %vm365, %v309, %v81
    %v787 = vrot.slane %v786, 7
    %v788 = vsel %vm345, %v83, %v310
    %v789 = vsel %vm347, %v83, %v310
    %v790 = vrot.slane %v789, 1
    %v791 = vsel %vm350, %v83, %v310
    %v792 = vrot.slane %v791, 2
    %v793 = vsel %vm353, %v83, %v310
    %v794 = vrot.slane %v793, 3
    %v795 = vsel %vm356, %v83, %v310
    %v796 = vrot.slane %v795, 4
    %v797 = vsel %vm359, %v83, %v310
    %v798 = vrot.slane %v797, 5
    %v799 = vsel %vm362, %v83, %v310
    %v800 = vrot.slane %v799, 6
    %v801 = vsel %vm365, %v310, %v83
    %v802 = vrot.slane %v801, 7
    %v803 = vsel %vm345, %v85, %v311
    %v804 = vsel %vm347, %v85, %v311
    %v805 = vrot.slane %v804, 1
    %v806 = vsel %vm350, %v85, %v311
    %v807 = vrot.slane %v806, 2
    %v808 = vsel %vm353, %v85, %v311
    %v809 = vrot.slane %v808, 3
    %v810 = vsel %vm356, %v85, %v311
    %v811 = vrot.slane %v810, 4
    %v812 = vsel %vm359, %v85, %v311
    %v813 = vrot.slane %v812, 5
    %v814 = vsel %vm362, %v85, %v311
    %v815 = vrot.slane %v814, 6
    %v816 = vsel %vm365, %v311, %v85
    %v817 = vrot.slane %v816, 7
    %v818 = vsel %vm345, %v87, %v312
    %v819 = vsel %vm347, %v87, %v312
    %v820 = vrot.slane %v819, 1
    %v821 = vsel %vm350, %v87, %v312
    %v822 = vrot.slane %v821, 2
    %v823 = vsel %vm353, %v87, %v312
    %v824 = vrot.slane %v823, 3
    %v825 = vsel %vm356, %v87, %v312
    %v826 = vrot.slane %v825, 4
    %v827 = vsel %vm359, %v87, %v312
    %v828 = vrot.slane %v827, 5
    %v829 = vsel %vm362, %v87, %v312
    %v830 = vrot.slane %v829, 6
    %v831 = vsel %vm365, %v312, %v87
    %v832 = vrot.slane %v831, 7
    %v833 = vsel %vm345, %v89, %v313
    %v834 = vsel %vm347, %v89, %v313
    %v835 = vrot.slane %v834, 1
    %v836 = vsel %vm350, %v89, %v313
    %v837 = vrot.slane %v836, 2
    %v838 = vsel %vm353, %v89, %v313
    %v839 = vrot.slane %v838, 3
    %v840 = vsel %vm356, %v89, %v313
    %v841 = vrot.slane %v840, 4
    %v842 = vsel %vm359, %v89, %v313
    %v843 = vrot.slane %v842, 5
    %v844 = vsel %vm362, %v89, %v313
    %v845 = vrot.slane %v844, 6
    %v846 = vsel %vm365, %v313, %v89
    %v847 = vrot.slane %v846, 7
    %v848 = vsel %vm345, %v91, %v314
    %v849 = vsel %vm347, %v91, %v314
    %v850 = vrot.slane %v849, 1
    %v851 = vsel %vm350, %v91, %v314
    %v852 = vrot.slane %v851, 2
    %v853 = vsel %vm353, %v91, %v314
    %v854 = vrot.slane %v853, 3
    %v855 = vsel %vm356, %v91, %v314
    %v856 = vrot.slane %v855, 4
    %v857 = vsel %vm359, %v91, %v314
    %v858 = vrot.slane %v857, 5
    %v859 = vsel %vm362, %v91, %v314
    %v860 = vrot.slane %v859, 6
    %v861 = vsel %vm365, %v314, %v91
    %v862 = vrot.slane %v861, 7
    %v863 = vsel %vm345, %v93, %v315
    %v864 = vsel %vm347, %v93, %v315
    %v865 = vrot.slane %v864, 1
    %v866 = vsel %vm350, %v93, %v315
    %v867 = vrot.slane %v866, 2
    %v868 = vsel %vm353, %v93, %v315
    %v869 = vrot.slane %v868, 3
    %v870 = vsel %vm356, %v93, %v315
    %v871 = vrot.slane %v870, 4
    %v872 = vsel %vm359, %v93, %v315
    %v873 = vrot.slane %v872, 5
    %v874 = vsel %vm362, %v93, %v315
    %v875 = vrot.slane %v874, 6
    %v876 = vsel %vm365, %v315, %v93
    %v877 = vrot.slane %v876, 7
    %v878 = vsel %vm345, %v95, %v316
    %v879 = vsel %vm347, %v95, %v316
    %v880 = vrot.slane %v879, 1
    %v881 = vsel %vm350, %v95, %v316
    %v882 = vrot.slane %v881, 2
    %v883 = vsel %vm353, %v95, %v316
    %v884 = vrot.slane %v883, 3
    %v885 = vsel %vm356, %v95, %v316
    %v886 = vrot.slane %v885, 4
    %v887 = vsel %vm359, %v95, %v316
    %v888 = vrot.slane %v887, 5
    %v889 = vsel %vm362, %v95, %v316
    %v890 = vrot.slane %v889, 6
    %v891 = vsel %vm365, %v316, %v95
    %v892 = vrot.slane %v891, 7
    %v893 = vsel %vm345, %v97, %v317
    %v894 = vsel %vm347, %v97, %v317
    %v895 = vrot.slane %v894, 1
    %v896 = vsel %vm350, %v97, %v317
    %v897 = vrot.slane %v896, 2
    %v898 = vsel %vm353, %v97, %v317
    %v899 = vrot.slane %v898, 3
    %v900 = vsel %vm356, %v97, %v317
    %v901 = vrot.slane %v900, 4
    %v902 = vsel %vm359, %v97, %v317
    %v903 = vrot.slane %v902, 5
    %v904 = vsel %vm362, %v97, %v317
    %v905 = vrot.slane %v904, 6
    %v906 = vsel %vm365, %v317, %v97
    %v907 = vrot.slane %v906, 7
    %v908 = vsel %vm345, %v99, %v318
    %v909 = vsel %vm347, %v99, %v318
    %v910 = vrot.slane %v909, 1
    %v911 = vsel %vm350, %v99, %v318
    %v912 = vrot.slane %v911, 2
    %v913 = vsel %vm353, %v99, %v318
    %v914 = vrot.slane %v913, 3
    %v915 = vsel %vm356, %v99, %v318
    %v916 = vrot.slane %v915, 4
    %v917 = vsel %vm359, %v99, %v318
    %v918 = vrot.slane %v917, 5
    %v919 = vsel %vm362, %v99, %v318
    %v920 = vrot.slane %v919, 6
    %v921 = vsel %vm365, %v318, %v99
    %v922 = vrot.slane %v921, 7
    %v923 = vsel %vm345, %v101, %v319
    %v924 = vsel %vm347, %v101, %v319
    %v925 = vrot.slane %v924, 1
    %v926 = vsel %vm350, %v101, %v319
    %v927 = vrot.slane %v926, 2
    %v928 = vsel %vm353, %v101, %v319
    %v929 = vrot.slane %v928, 3
    %v930 = vsel %vm356, %v101, %v319
    %v931 = vrot.slane %v930, 4
    %v932 = vsel %vm359, %v101, %v319
    %v933 = vrot.slane %v932, 5
    %v934 = vsel %vm362, %v101, %v319
    %v935 = vrot.slane %v934, 6
    %v936 = vsel %vm365, %v319, %v101
    %v937 = vrot.slane %v936, 7
    %v938 = vsel %vm345, %v103, %v320
    %v939 = vsel %vm347, %v103, %v320
    %v940 = vrot.slane %v939, 1
    %v941 = vsel %vm350, %v103, %v320
    %v942 = vrot.slane %v941, 2
    %v943 = vsel %vm353, %v103, %v320
    %v944 = vrot.slane %v943, 3
    %v945 = vsel %vm356, %v103, %v320
    %v946 = vrot.slane %v945, 4
    %v947 = vsel %vm359, %v103, %v320
    %v948 = vrot.slane %v947, 5
    %v949 = vsel %vm362, %v103, %v320
    %v950 = vrot.slane %v949, 6
    %v951 = vsel %vm365, %v320, %v103
    %v952 = vrot.slane %v951, 7
    %v953 = vsel %vm345, %v105, %v321
    %v954 = vsel %vm347, %v105, %v321
    %v955 = vrot.slane %v954, 1
    %v956 = vsel %vm350, %v105, %v321
    %v957 = vrot.slane %v956, 2
    %v958 = vsel %vm353, %v105, %v321
    %v959 = vrot.slane %v958, 3
    %v960 = vsel %vm356, %v105, %v321
    %v961 = vrot.slane %v960, 4
    %v962 = vsel %vm359, %v105, %v321
    %v963 = vrot.slane %v962, 5
    %v964 = vsel %vm362, %v105, %v321
    %v965 = vrot.slane %v964, 6
    %v966 = vsel %vm365, %v321, %v105
    %v967 = vrot.slane %v966, 7
    %v968 = vsel %vm345, %v107, %v322
    %v969 = vsel %vm347, %v107, %v322
    %v970 = vrot.slane %v969, 1
    %v971 = vsel %vm350, %v107, %v322
    %v972 = vrot.slane %v971, 2
    %v973 = vsel %vm353, %v107, %v322
    %v974 = vrot.slane %v973, 3
    %v975 = vsel %vm356, %v107, %v322
    %v976 = vrot.slane %v975, 4
    %v977 = vsel %vm359, %v107, %v322
    %v978 = vrot.slane %v977, 5
    %v979 = vsel %vm362, %v107, %v322
    %v980 = vrot.slane %v979, 6
    %v981 = vsel %vm365, %v322, %v107
    %v982 = vrot.slane %v981, 7
    %v983 = vsel %vm345, %v109, %v323
    %v984 = vsel %vm347, %v109, %v323
    %v985 = vrot.slane %v984, 1
    %v986 = vsel %vm350, %v109, %v323
    %v987 = vrot.slane %v986, 2
    %v988 = vsel %vm353, %v109, %v323
    %v989 = vrot.slane %v988, 3
    %v990 = vsel %vm356, %v109, %v323
    %v991 = vrot.slane %v990, 4
    %v992 = vsel %vm359, %v109, %v323
    %v993 = vrot.slane %v992, 5
    %v994 = vsel %vm362, %v109, %v323
    %v995 = vrot.slane %v994, 6
    %v996 = vsel %vm365, %v323, %v109
    %v997 = vrot.slane %v996, 7
    %v998 = vsel %vm345, %v111, %v324
    %v999 = vsel %vm347, %v111, %v324
    %v1000 = vrot.slane %v999, 1
    %v1001 = vsel %vm350, %v111, %v324
    %v1002 = vrot.slane %v1001, 2
    %v1003 = vsel %vm353, %v111, %v324
    %v1004 = vrot.slane %v1003, 3
    %v1005 = vsel %vm356, %v111, %v324
    %v1006 = vrot.slane %v1005, 4
    %v1007 = vsel %vm359, %v111, %v324
    %v1008 = vrot.slane %v1007, 5
    %v1009 = vsel %vm362, %v111, %v324
    %v1010 = vrot.slane %v1009, 6
    %v1011 = vsel %vm365, %v324, %v111
    %v1012 = vrot.slane %v1011, 7
    %v1013 = vsel %vm345, %v113, %v325
    %v1014 = vsel %vm347, %v113, %v325
    %v1015 = vrot.slane %v1014, 1
    %v1016 = vsel %vm350, %v113, %v325
    %v1017 = vrot.slane %v1016, 2
    %v1018 = vsel %vm353, %v113, %v325
    %v1019 = vrot.slane %v1018, 3
    %v1020 = vsel %vm356, %v113, %v325
    %v1021 = vrot.slane %v1020, 4
    %v1022 = vsel %vm359, %v113, %v325
    %v1023 = vrot.slane %v1022, 5
    %v1024 = vsel %vm362, %v113, %v325
    %v1025 = vrot.slane %v1024, 6
    %v1026 = vsel %vm365, %v325, %v113
    %v1027 = vrot.slane %v1026, 7
    %v1028 = vsel %vm345, %v115, %v326
    %v1029 = vsel %vm347, %v115, %v326
    %v1030 = vrot.slane %v1029, 1
    %v1031 = vsel %vm350, %v115, %v326
    %v1032 = vrot.slane %v1031, 2
    %v1033 = vsel %vm353, %v115, %v326
    %v1034 = vrot.slane %v1033, 3
    %v1035 = vsel %vm356, %v115, %v326
    %v1036 = vrot.slane %v1035, 4
    %v1037 = vsel %vm359, %v115, %v326
    %v1038 = vrot.slane %v1037, 5
    %v1039 = vsel %vm362, %v115, %v326
    %v1040 = vrot.slane %v1039, 6
    %v1041 = vsel %vm365, %v326, %v115
    %v1042 = vrot.slane %v1041, 7
    %v1043 = vsel %vm345, %v117, %v327
    %v1044 = vsel %vm347, %v117, %v327
    %v1045 = vrot.slane %v1044, 1
    %v1046 = vsel %vm350, %v117, %v327
    %v1047 = vrot.slane %v1046, 2
    %v1048 = vsel %vm353, %v117, %v327
    %v1049 = vrot.slane %v1048, 3
    %v1050 = vsel %vm356, %v117, %v327
    %v1051 = vrot.slane %v1050, 4
    %v1052 = vsel %vm359, %v117, %v327
    %v1053 = vrot.slane %v1052, 5
    %v1054 = vsel %vm362, %v117, %v327
    %v1055 = vrot.slane %v1054, 6
    %v1056 = vsel %vm365, %v327, %v117
    %v1057 = vrot.slane %v1056, 7
    %v1058 = vsel %vm345, %v119, %v328
    %v1059 = vsel %vm347, %v119, %v328
    %v1060 = vrot.slane %v1059, 1
    %v1061 = vsel %vm350, %v119, %v328
    %v1062 = vrot.slane %v1061, 2
    %v1063 = vsel %vm353, %v119, %v328
    %v1064 = vrot.slane %v1063, 3
    %v1065 = vsel %vm356, %v119, %v328
    %v1066 = vrot.slane %v1065, 4
    %v1067 = vsel %vm359, %v119, %v328
    %v1068 = vrot.slane %v1067, 5
    %v1069 = vsel %vm362, %v119, %v328
    %v1070 = vrot.slane %v1069, 6
    %v1071 = vsel %vm365, %v328, %v119
    %v1072 = vrot.slane %v1071, 7
    %v1073 = vsel %vm345, %v121, %v329
    %v1074 = vsel %vm347, %v121, %v329
    %v1075 = vrot.slane %v1074, 1
    %v1076 = vsel %vm350, %v121, %v329
    %v1077 = vrot.slane %v1076, 2
    %v1078 = vsel %vm353, %v121, %v329
    %v1079 = vrot.slane %v1078, 3
    %v1080 = vsel %vm356, %v121, %v329
    %v1081 = vrot.slane %v1080, 4
    %v1082 = vsel %vm359, %v121, %v329
    %v1083 = vrot.slane %v1082, 5
    %v1084 = vsel %vm362, %v121, %v329
    %v1085 = vrot.slane %v1084, 6
    %v1086 = vsel %vm365, %v329, %v121
    %v1087 = vrot.slane %v1086, 7
    %v1088 = vsel %vm345, %v123, %v330
    %v1089 = vsel %vm347, %v123, %v330
    %v1090 = vrot.slane %v1089, 1
    %v1091 = vsel %vm350, %v123, %v330
    %v1092 = vrot.slane %v1091, 2
    %v1093 = vsel %vm353, %v123, %v330
    %v1094 = vrot.slane %v1093, 3
    %v1095 = vsel %vm356, %v123, %v330
    %v1096 = vrot.slane %v1095, 4
    %v1097 = vsel %vm359, %v123, %v330
    %v1098 = vrot.slane %v1097, 5
    %v1099 = vsel %vm362, %v123, %v330
    %v1100 = vrot.slane %v1099, 6
    %v1101 = vsel %vm365, %v330, %v123
    %v1102 = vrot.slane %v1101, 7
    %v1103 = vsel %vm345, %v125, %v331
    %v1104 = vsel %vm347, %v125, %v331
    %v1105 = vrot.slane %v1104, 1
    %v1106 = vsel %vm350, %v125, %v331
    %v1107 = vrot.slane %v1106, 2
    %v1108 = vsel %vm353, %v125, %v331
    %v1109 = vrot.slane %v1108, 3
    %v1110 = vsel %vm356, %v125, %v331
    %v1111 = vrot.slane %v1110, 4
    %v1112 = vsel %vm359, %v125, %v331
    %v1113 = vrot.slane %v1112, 5
    %v1114 = vsel %vm362, %v125, %v331
    %v1115 = vrot.slane %v1114, 6
    %v1116 = vsel %vm365, %v331, %v125
    %v1117 = vrot.slane %v1116, 7
    %v1118 = vsel %vm345, %v127, %v332
    %v1119 = vsel %vm347, %v127, %v332
    %v1120 = vrot.slane %v1119, 1
    %v1121 = vsel %vm350, %v127, %v332
    %v1122 = vrot.slane %v1121, 2
    %v1123 = vsel %vm353, %v127, %v332
    %v1124 = vrot.slane %v1123, 3
    %v1125 = vsel %vm356, %v127, %v332
    %v1126 = vrot.slane %v1125, 4
    %v1127 = vsel %vm359, %v127, %v332
    %v1128 = vrot.slane %v1127, 5
    %v1129 = vsel %vm362, %v127, %v332
    %v1130 = vrot.slane %v1129, 6
    %v1131 = vsel %vm365, %v332, %v127
    %v1132 = vrot.slane %v1131, 7
    %v1133 = vsel %vm345, %v129, %v333
    %v1134 = vsel %vm347, %v129, %v333
    %v1135 = vrot.slane %v1134, 1
    %v1136 = vsel %vm350, %v129, %v333
    %v1137 = vrot.slane %v1136, 2
    %v1138 = vsel %vm353, %v129, %v333
    %v1139 = vrot.slane %v1138, 3
    %v1140 = vsel %vm356, %v129, %v333
    %v1141 = vrot.slane %v1140, 4
    %v1142 = vsel %vm359, %v129, %v333
    %v1143 = vrot.slane %v1142, 5
    %v1144 = vsel %vm362, %v129, %v333
    %v1145 = vrot.slane %v1144, 6
    %v1146 = vsel %vm365, %v333, %v129
    %v1147 = vrot.slane %v1146, 7
    %v1148 = vsel %vm345, %v131, %v334
    %v1149 = vsel %vm347, %v131, %v334
    %v1150 = vrot.slane %v1149, 1
    %v1151 = vsel %vm350, %v131, %v334
    %v1152 = vrot.slane %v1151, 2
    %v1153 = vsel %vm353, %v131, %v334
    %v1154 = vrot.slane %v1153, 3
    %v1155 = vsel %vm356, %v131, %v334
    %v1156 = vrot.slane %v1155, 4
    %v1157 = vsel %vm359, %v131, %v334
    %v1158 = vrot.slane %v1157, 5
    %v1159 = vsel %vm362, %v131, %v334
    %v1160 = vrot.slane %v1159, 6
    %v1161 = vsel %vm365, %v334, %v131
    %v1162 = vrot.slane %v1161, 7
    %v1163 = vsel %vm345, %v133, %v335
    %v1164 = vsel %vm347, %v133, %v335
    %v1165 = vrot.slane %v1164, 1
    %v1166 = vsel %vm350, %v133, %v335
    %v1167 = vrot.slane %v1166, 2
    %v1168 = vsel %vm353, %v133, %v335
    %v1169 = vrot.slane %v1168, 3
    %v1170 = vsel %vm356, %v133, %v335
    %v1171 = vrot.slane %v1170, 4
    %v1172 = vsel %vm359, %v133, %v335
    %v1173 = vrot.slane %v1172, 5
    %v1174 = vsel %vm362, %v133, %v335
    %v1175 = vrot.slane %v1174, 6
    %v1176 = vsel %vm365, %v335, %v133
    %v1177 = vrot.slane %v1176, 7
    %v1178 = vsel %vm345, %v135, %v336
    %v1179 = vsel %vm347, %v135, %v336
    %v1180 = vrot.slane %v1179, 1
    %v1181 = vsel %vm350, %v135, %v336
    %v1182 = vrot.slane %v1181, 2
    %v1183 = vsel %vm353, %v135, %v336
    %v1184 = vrot.slane %v1183, 3
    %v1185 = vsel %vm356, %v135, %v336
    %v1186 = vrot.slane %v1185, 4
    %v1187 = vsel %vm359, %v135, %v336
    %v1188 = vrot.slane %v1187, 5
    %v1189 = vsel %vm362, %v135, %v336
    %v1190 = vrot.slane %v1189, 6
    %v1191 = vsel %vm365, %v336, %v135
    %v1192 = vrot.slane %v1191, 7
    %v1193 = vsel %vm345, %v137, %v337
    %v1194 = vsel %vm347, %v137, %v337
    %v1195 = vrot.slane %v1194, 1
    %v1196 = vsel %vm350, %v137, %v337
    %v1197 = vrot.slane %v1196, 2
    %v1198 = vsel %vm353, %v137, %v337
    %v1199 = vrot.slane %v1198, 3
    %v1200 = vsel %vm356, %v137, %v337
    %v1201 = vrot.slane %v1200, 4
    %v1202 = vsel %vm359, %v137, %v337
    %v1203 = vrot.slane %v1202, 5
    %v1204 = vsel %vm362, %v137, %v337
    %v1205 = vrot.slane %v1204, 6
    %v1206 = vsel %vm365, %v337, %v137
    %v1207 = vrot.slane %v1206, 7
    %v1208 = vsel %vm345, %v139, %v338
    %v1209 = vsel %vm347, %v139, %v338
    %v1210 = vrot.slane %v1209, 1
    %v1211 = vsel %vm350, %v139, %v338
    %v1212 = vrot.slane %v1211, 2
    %v1213 = vsel %vm353, %v139, %v338
    %v1214 = vrot.slane %v1213, 3
    %v1215 = vsel %vm356, %v139, %v338
    %v1216 = vrot.slane %v1215, 4
    %v1217 = vsel %vm359, %v139, %v338
    %v1218 = vrot.slane %v1217, 5
    %v1219 = vsel %vm362, %v139, %v338
    %v1220 = vrot.slane %v1219, 6
    %v1221 = vsel %vm365, %v338, %v139
    %v1222 = vrot.slane %v1221, 7
    %v1223 = vsel %vm345, %v141, %v339
    %v1224 = vsel %vm347, %v141, %v339
    %v1225 = vrot.slane %v1224, 1
    %v1226 = vsel %vm350, %v141, %v339
    %v1227 = vrot.slane %v1226, 2
    %v1228 = vsel %vm353, %v141, %v339
    %v1229 = vrot.slane %v1228, 3
    %v1230 = vsel %vm356, %v141, %v339
    %v1231 = vrot.slane %v1230, 4
    %v1232 = vsel %vm359, %v141, %v339
    %v1233 = vrot.slane %v1232, 5
    %v1234 = vsel %vm362, %v141, %v339
    %v1235 = vrot.slane %v1234, 6
    %v1236 = vsel %vm365, %v339, %v141
    %v1237 = vrot.slane %v1236, 7
    %v1238 = vsel %vm345, %v143, %v340
    %v1239 = vsel %vm347, %v143, %v340
    %v1240 = vrot.slane %v1239, 1
    %v1241 = vsel %vm350, %v143, %v340
    %v1242 = vrot.slane %v1241, 2
    %v1243 = vsel %vm353, %v143, %v340
    %v1244 = vrot.slane %v1243, 3
    %v1245 = vsel %vm356, %v143, %v340
    %v1246 = vrot.slane %v1245, 4
    %v1247 = vsel %vm359, %v143, %v340
    %v1248 = vrot.slane %v1247, 5
    %v1249 = vsel %vm362, %v143, %v340
    %v1250 = vrot.slane %v1249, 6
    %v1251 = vsel %vm365, %v340, %v143
    %v1252 = vrot.slane %v1251, 7
    %v1253 = vsel %vm345, %v145, %v341
    %v1254 = vsel %vm347, %v145, %v341
    %v1255 = vrot.slane %v1254, 1
    %v1256 = vsel %vm350, %v145, %v341
    %v1257 = vrot.slane %v1256, 2
    %v1258 = vsel %vm353, %v145, %v341
    %v1259 = vrot.slane %v1258, 3
    %v1260 = vsel %vm356, %v145, %v341
    %v1261 = vrot.slane %v1260, 4
    %v1262 = vsel %vm359, %v145, %v341
    %v1263 = vrot.slane %v1262, 5
    %v1264 = vsel %vm362, %v145, %v341
    %v1265 = vrot.slane %v1264, 6
    %v1266 = vsel %vm365, %v341, %v145
    %v1267 = vrot.slane %v1266, 7
    %v1268 = vsel %vm345, %v147, %v342
    %v1269 = vsel %vm347, %v147, %v342
    %v1270 = vrot.slane %v1269, 1
    %v1271 = vsel %vm350, %v147, %v342
    %v1272 = vrot.slane %v1271, 2
    %v1273 = vsel %vm353, %v147, %v342
    %v1274 = vrot.slane %v1273, 3
    %v1275 = vsel %vm356, %v147, %v342
    %v1276 = vrot.slane %v1275, 4
    %v1277 = vsel %vm359, %v147, %v342
    %v1278 = vrot.slane %v1277, 5
    %v1279 = vsel %vm362, %v147, %v342
    %v1280 = vrot.slane %v1279, 6
    %v1281 = vsel %vm365, %v342, %v147
    %v1282 = vrot.slane %v1281, 7
    %v1283 = vsel %vm345, %v149, %v343
    %v1284 = vsel %vm347, %v149, %v343
    %v1285 = vrot.slane %v1284, 1
    %v1286 = vsel %vm350, %v149, %v343
    %v1287 = vrot.slane %v1286, 2
    %v1288 = vsel %vm353, %v149, %v343
    %v1289 = vrot.slane %v1288, 3
    %v1290 = vsel %vm356, %v149, %v343
    %v1291 = vrot.slane %v1290, 4
    %v1292 = vsel %vm359, %v149, %v343
    %v1293 = vrot.slane %v1292, 5
    %v1294 = vsel %vm362, %v149, %v343
    %v1295 = vrot.slane %v1294, 6
    %v1296 = vsel %vm365, %v343, %v149
    %v1297 = vrot.slane %v1296, 7
    %v1298 = vsel %vm345, %v151, %v344
    %v1299 = vsel %vm347, %v151, %v344
    %v1300 = vrot.slane %v1299, 1
    %v1301 = vsel %vm350, %v151, %v344
    %v1302 = vrot.slane %v1301, 2
    %v1303 = vsel %vm353, %v151, %v344
    %v1304 = vrot.slane %v1303, 3
    %v1305 = vsel %vm356, %v151, %v344
    %v1306 = vrot.slane %v1305, 4
    %v1307 = vsel %vm359, %v151, %v344
    %v1308 = vrot.slane %v1307, 5
    %v1309 = vsel %vm362, %v151, %v344
    %v1310 = vrot.slane %v1309, 6
    %v1311 = vsel %vm365, %v344, %v151
    %v1312 = vrot.slane %v1311, 7
    %v1825 = vlaneseq
    %vm1826 = vcmp.ge.s32.totalorder %v1825, 0
    %vm1827 = vcmp.lt.s32.totalorder %v1825, 256
    %vm1828 = vmand %vm1826, %vm1827
    %1829 = vst.msk [vmem:[#allocation5] ss:$2 sm:$0x3] %vm1828, %v346
    %s1830 = scalar_lea.vmem [#allocation5], 4
    %1831 = vst.msk [vmem:[%s1830] ss:$2 sm:$0x3] %vm1828, %v349
    %s1832 = scalar_lea.vmem [#allocation5], 8
    %1833 = vst.msk [vmem:[%s1832] ss:$2 sm:$0x3] %vm1828, %v352
    %s1834 = scalar_lea.vmem [#allocation5], 12
    %1835 = vst.msk [vmem:[%s1834] ss:$2 sm:$0x3] %vm1828, %v355
    %s1836 = scalar_lea.vmem [#allocation5], 16
    %1837 = vst.msk [vmem:[%s1836] ss:$2 sm:$0x3] %vm1828, %v358
    %s1838 = scalar_lea.vmem [#allocation5], 20
    %1839 = vst.msk [vmem:[%s1838] ss:$2 sm:$0x3] %vm1828, %v361
    %s1840 = scalar_lea.vmem [#allocation5], 24
    %1841 = vst.msk [vmem:[%s1840] ss:$2 sm:$0x3] %vm1828, %v364
    %s1842 = scalar_lea.vmem [#allocation5], 28
    %1843 = vst.msk [vmem:[%s1842] ss:$2 sm:$0x3] %vm1828, %v367
    %s1844 = scalar_lea.vmem [#allocation5], 32
    %1845 = vst.msk [vmem:[%s1844] ss:$2 sm:$0x3] %vm1828, %v368
    %s1846 = scalar_lea.vmem [#allocation5], 36
    %1847 = vst.msk [vmem:[%s1846] ss:$2 sm:$0x3] %vm1828, %v370
    %s1848 = scalar_lea.vmem [#allocation5], 40
    %1849 = vst.msk [vmem:[%s1848] ss:$2 sm:$0x3] %vm1828, %v372
    %s1850 = scalar_lea.vmem [#allocation5], 44
    %1851 = vst.msk [vmem:[%s1850] ss:$2 sm:$0x3] %vm1828, %v374
    %s1852 = scalar_lea.vmem [#allocation5], 48
    %1853 = vst.msk [vmem:[%s1852] ss:$2 sm:$0x3] %vm1828, %v376
    %s1854 = scalar_lea.vmem [#allocation5], 52
    %1855 = vst.msk [vmem:[%s1854] ss:$2 sm:$0x3] %vm1828, %v378
    %s1856 = scalar_lea.vmem [#allocation5], 56
    %1857 = vst.msk [vmem:[%s1856] ss:$2 sm:$0x3] %vm1828, %v380
    %s1858 = scalar_lea.vmem [#allocation5], 60
    %1859 = vst.msk [vmem:[%s1858] ss:$2 sm:$0x3] %vm1828, %v382
    %s1860 = scalar_lea.vmem [#allocation5], 64
    %1861 = vst.msk [vmem:[%s1860] ss:$2 sm:$0x3] %vm1828, %v383
    %s1862 = scalar_lea.vmem [#allocation5], 68
    %1863 = vst.msk [vmem:[%s1862] ss:$2 sm:$0x3] %vm1828, %v385
    %s1864 = scalar_lea.vmem [#allocation5], 72
    %1865 = vst.msk [vmem:[%s1864] ss:$2 sm:$0x3] %vm1828, %v387
    %s1866 = scalar_lea.vmem [#allocation5], 76
    %1867 = vst.msk [vmem:[%s1866] ss:$2 sm:$0x3] %vm1828, %v389
    %s1868 = scalar_lea.vmem [#allocation5], 80
    %1869 = vst.msk [vmem:[%s1868] ss:$2 sm:$0x3] %vm1828, %v391
    %s1870 = scalar_lea.vmem [#allocation5], 84
    %1871 = vst.msk [vmem:[%s1870] ss:$2 sm:$0x3] %vm1828, %v393
    %s1872 = scalar_lea.vmem [#allocation5], 88
    %1873 = vst.msk [vmem:[%s1872] ss:$2 sm:$0x3] %vm1828, %v395
    %s1874 = scalar_lea.vmem [#allocation5], 92
    %1875 = vst.msk [vmem:[%s1874] ss:$2 sm:$0x3] %vm1828, %v397
    %s1876 = scalar_lea.vmem [#allocation5], 96
    %1877 = vst.msk [vmem:[%s1876] ss:$2 sm:$0x3] %vm1828, %v398
    %s1878 = scalar_lea.vmem [#allocation5], 100
    %1879 = vst.msk [vmem:[%s1878] ss:$2 sm:$0x3] %vm1828, %v400
    %s1880 = scalar_lea.vmem [#allocation5], 104
    %1881 = vst.msk [vmem:[%s1880] ss:$2 sm:$0x3] %vm1828, %v402
    %s1882 = scalar_lea.vmem [#allocation5], 108
    %1883 = vst.msk [vmem:[%s1882] ss:$2 sm:$0x3] %vm1828, %v404
    %s1884 = scalar_lea.vmem [#allocation5], 112
    %1885 = vst.msk [vmem:[%s1884] ss:$2 sm:$0x3] %vm1828, %v406
    %s1886 = scalar_lea.vmem [#allocation5], 116
    %1887 = vst.msk [vmem:[%s1886] ss:$2 sm:$0x3] %vm1828, %v408
    %s1888 = scalar_lea.vmem [#allocation5], 120
    %1889 = vst.msk [vmem:[%s1888] ss:$2 sm:$0x3] %vm1828, %v410
    %s1890 = scalar_lea.vmem [#allocation5], 124
    %1891 = vst.msk [vmem:[%s1890] ss:$2 sm:$0x3] %vm1828, %v412
    %s1892 = scalar_lea.vmem [#allocation5], 128
    %1893 = vst.msk [vmem:[%s1892] ss:$2 sm:$0x3] %vm1828, %v413
    %s1894 = scalar_lea.vmem [#allocation5], 132
    %1895 = vst.msk [vmem:[%s1894] ss:$2 sm:$0x3] %vm1828, %v415
    %s1896 = scalar_lea.vmem [#allocation5], 136
    %1897 = vst.msk [vmem:[%s1896] ss:$2 sm:$0x3] %vm1828, %v417
    %s1898 = scalar_lea.vmem [#allocation5], 140
    %1899 = vst.msk [vmem:[%s1898] ss:$2 sm:$0x3] %vm1828, %v419
    %s1900 = scalar_lea.vmem [#allocation5], 144
    %1901 = vst.msk [vmem:[%s1900] ss:$2 sm:$0x3] %vm1828, %v421
    %s1902 = scalar_lea.vmem [#allocation5], 148
    %1903 = vst.msk [vmem:[%s1902] ss:$2 sm:$0x3] %vm1828, %v423
    %s1904 = scalar_lea.vmem [#allocation5], 152
    %1905 = vst.msk [vmem:[%s1904] ss:$2 sm:$0x3] %vm1828, %v425
    %s1906 = scalar_lea.vmem [#allocation5], 156
    %1907 = vst.msk [vmem:[%s1906] ss:$2 sm:$0x3] %vm1828, %v427
    %s1908 = scalar_lea.vmem [#allocation5], 160
    %1909 = vst.msk [vmem:[%s1908] ss:$2 sm:$0x3] %vm1828, %v428
    %s1910 = scalar_lea.vmem [#allocation5], 164
    %1911 = vst.msk [vmem:[%s1910] ss:$2 sm:$0x3] %vm1828, %v430
    %s1912 = scalar_lea.vmem [#allocation5], 168
    %1913 = vst.msk [vmem:[%s1912] ss:$2 sm:$0x3] %vm1828, %v432
    %s1914 = scalar_lea.vmem [#allocation5], 172
    %1915 = vst.msk [vmem:[%s1914] ss:$2 sm:$0x3] %vm1828, %v434
    %s1916 = scalar_lea.vmem [#allocation5], 176
    %1917 = vst.msk [vmem:[%s1916] ss:$2 sm:$0x3] %vm1828, %v436
    %s1918 = scalar_lea.vmem [#allocation5], 180
    %1919 = vst.msk [vmem:[%s1918] ss:$2 sm:$0x3] %vm1828, %v438
    %s1920 = scalar_lea.vmem [#allocation5], 184
    %1921 = vst.msk [vmem:[%s1920] ss:$2 sm:$0x3] %vm1828, %v440
    %s1922 = scalar_lea.vmem [#allocation5], 188
    %1923 = vst.msk [vmem:[%s1922] ss:$2 sm:$0x3] %vm1828, %v442
    %s1924 = scalar_lea.vmem [#allocation5], 192
    %1925 = vst.msk [vmem:[%s1924] ss:$2 sm:$0x3] %vm1828, %v443
    %s1926 = scalar_lea.vmem [#allocation5], 196
    %1927 = vst.msk [vmem:[%s1926] ss:$2 sm:$0x3] %vm1828, %v445
    %s1928 = scalar_lea.vmem [#allocation5], 200
    %1929 = vst.msk [vmem:[%s1928] ss:$2 sm:$0x3] %vm1828, %v447
    %s1930 = scalar_lea.vmem [#allocation5], 204
    %1931 = vst.msk [vmem:[%s1930] ss:$2 sm:$0x3] %vm1828, %v449
    %s1932 = scalar_lea.vmem [#allocation5], 208
    %1933 = vst.msk [vmem:[%s1932] ss:$2 sm:$0x3] %vm1828, %v451
    %s1934 = scalar_lea.vmem [#allocation5], 212
    %1935 = vst.msk [vmem:[%s1934] ss:$2 sm:$0x3] %vm1828, %v453
    %s1936 = scalar_lea.vmem [#allocation5], 216
    %1937 = vst.msk [vmem:[%s1936] ss:$2 sm:$0x3] %vm1828, %v455
    %s1938 = scalar_lea.vmem [#allocation5], 220
    %1939 = vst.msk [vmem:[%s1938] ss:$2 sm:$0x3] %vm1828, %v457
    %s1940 = scalar_lea.vmem [#allocation5], 224
    %1941 = vst.msk [vmem:[%s1940] ss:$2 sm:$0x3] %vm1828, %v458
    %s1942 = scalar_lea.vmem [#allocation5], 228
    %1943 = vst.msk [vmem:[%s1942] ss:$2 sm:$0x3] %vm1828, %v460
    %s1944 = scalar_lea.vmem [#allocation5], 232
    %1945 = vst.msk [vmem:[%s1944] ss:$2 sm:$0x3] %vm1828, %v462
    %s1946 = scalar_lea.vmem [#allocation5], 236
    %1947 = vst.msk [vmem:[%s1946] ss:$2 sm:$0x3] %vm1828, %v464
    %s1948 = scalar_lea.vmem [#allocation5], 240
    %1949 = vst.msk [vmem:[%s1948] ss:$2 sm:$0x3] %vm1828, %v466
    %s1950 = scalar_lea.vmem [#allocation5], 244
    %1951 = vst.msk [vmem:[%s1950] ss:$2 sm:$0x3] %vm1828, %v468
    %s1952 = scalar_lea.vmem [#allocation5], 248
    %1953 = vst.msk [vmem:[%s1952] ss:$2 sm:$0x3] %vm1828, %v470
    %s1954 = scalar_lea.vmem [#allocation5], 252
    %1955 = vst.msk [vmem:[%s1954] ss:$2 sm:$0x3] %vm1828, %v472
    %s1956 = scalar_lea.vmem [#allocation5], 256
    %1957 = vst.msk [vmem:[%s1956] ss:$2 sm:$0x3] %vm1828, %v473
    %s1958 = scalar_lea.vmem [#allocation5], 260
    %1959 = vst.msk [vmem:[%s1958] ss:$2 sm:$0x3] %vm1828, %v475
    %s1960 = scalar_lea.vmem [#allocation5], 264
    %1961 = vst.msk [vmem:[%s1960] ss:$2 sm:$0x3] %vm1828, %v477
    %s1962 = scalar_lea.vmem [#allocation5], 268
    %1963 = vst.msk [vmem:[%s1962] ss:$2 sm:$0x3] %vm1828, %v479
    %s1964 = scalar_lea.vmem [#allocation5], 272
    %1965 = vst.msk [vmem:[%s1964] ss:$2 sm:$0x3] %vm1828, %v481
    %s1966 = scalar_lea.vmem [#allocation5], 276
    %1967 = vst.msk [vmem:[%s1966] ss:$2 sm:$0x3] %vm1828, %v483
    %s1968 = scalar_lea.vmem [#allocation5], 280
    %1969 = vst.msk [vmem:[%s1968] ss:$2 sm:$0x3] %vm1828, %v485
    %s1970 = scalar_lea.vmem [#allocation5], 284
    %1971 = vst.msk [vmem:[%s1970] ss:$2 sm:$0x3] %vm1828, %v487
    %s1972 = scalar_lea.vmem [#allocation5], 288
    %1973 = vst.msk [vmem:[%s1972] ss:$2 sm:$0x3] %vm1828, %v488
    %s1974 = scalar_lea.vmem [#allocation5], 292
    %1975 = vst.msk [vmem:[%s1974] ss:$2 sm:$0x3] %vm1828, %v490
    %s1976 = scalar_lea.vmem [#allocation5], 296
    %1977 = vst.msk [vmem:[%s1976] ss:$2 sm:$0x3] %vm1828, %v492
    %s1978 = scalar_lea.vmem [#allocation5], 300
    %1979 = vst.msk [vmem:[%s1978] ss:$2 sm:$0x3] %vm1828, %v494
    %s1980 = scalar_lea.vmem [#allocation5], 304
    %1981 = vst.msk [vmem:[%s1980] ss:$2 sm:$0x3] %vm1828, %v496
    %s1982 = scalar_lea.vmem [#allocation5], 308
    %1983 = vst.msk [vmem:[%s1982] ss:$2 sm:$0x3] %vm1828, %v498
    %s1984 = scalar_lea.vmem [#allocation5], 312
    %1985 = vst.msk [vmem:[%s1984] ss:$2 sm:$0x3] %vm1828, %v500
    %s1986 = scalar_lea.vmem [#allocation5], 316
    %1987 = vst.msk [vmem:[%s1986] ss:$2 sm:$0x3] %vm1828, %v502
    %s1988 = scalar_lea.vmem [#allocation5], 320
    %1989 = vst.msk [vmem:[%s1988] ss:$2 sm:$0x3] %vm1828, %v503
    %s1990 = scalar_lea.vmem [#allocation5], 324
    %1991 = vst.msk [vmem:[%s1990] ss:$2 sm:$0x3] %vm1828, %v505
    %s1992 = scalar_lea.vmem [#allocation5], 328
    %1993 = vst.msk [vmem:[%s1992] ss:$2 sm:$0x3] %vm1828, %v507
    %s1994 = scalar_lea.vmem [#allocation5], 332
    %1995 = vst.msk [vmem:[%s1994] ss:$2 sm:$0x3] %vm1828, %v509
    %s1996 = scalar_lea.vmem [#allocation5], 336
    %1997 = vst.msk [vmem:[%s1996] ss:$2 sm:$0x3] %vm1828, %v511
    %s1998 = scalar_lea.vmem [#allocation5], 340
    %1999 = vst.msk [vmem:[%s1998] ss:$2 sm:$0x3] %vm1828, %v513
    %s2000 = scalar_lea.vmem [#allocation5], 344
    %2001 = vst.msk [vmem:[%s2000] ss:$2 sm:$0x3] %vm1828, %v515
    %s2002 = scalar_lea.vmem [#allocation5], 348
    %2003 = vst.msk [vmem:[%s2002] ss:$2 sm:$0x3] %vm1828, %v517
    %s2004 = scalar_lea.vmem [#allocation5], 352
    %2005 = vst.msk [vmem:[%s2004] ss:$2 sm:$0x3] %vm1828, %v518
    %s2006 = scalar_lea.vmem [#allocation5], 356
    %2007 = vst.msk [vmem:[%s2006] ss:$2 sm:$0x3] %vm1828, %v520
    %s2008 = scalar_lea.vmem [#allocation5], 360
    %2009 = vst.msk [vmem:[%s2008] ss:$2 sm:$0x3] %vm1828, %v522
    %s2010 = scalar_lea.vmem [#allocation5], 364
    %2011 = vst.msk [vmem:[%s2010] ss:$2 sm:$0x3] %vm1828, %v524
    %s2012 = scalar_lea.vmem [#allocation5], 368
    %2013 = vst.msk [vmem:[%s2012] ss:$2 sm:$0x3] %vm1828, %v526
    %s2014 = scalar_lea.vmem [#allocation5], 372
    %2015 = vst.msk [vmem:[%s2014] ss:$2 sm:$0x3] %vm1828, %v528
    %s2016 = scalar_lea.vmem [#allocation5], 376
    %2017 = vst.msk [vmem:[%s2016] ss:$2 sm:$0x3] %vm1828, %v530
    %s2018 = scalar_lea.vmem [#allocation5], 380
    %2019 = vst.msk [vmem:[%s2018] ss:$2 sm:$0x3] %vm1828, %v532
    %s2020 = scalar_lea.vmem [#allocation5], 384
    %2021 = vst.msk [vmem:[%s2020] ss:$2 sm:$0x3] %vm1828, %v533
    %s2022 = scalar_lea.vmem [#allocation5], 388
    %2023 = vst.msk [vmem:[%s2022] ss:$2 sm:$0x3] %vm1828, %v535
    %s2024 = scalar_lea.vmem [#allocation5], 392
    %2025 = vst.msk [vmem:[%s2024] ss:$2 sm:$0x3] %vm1828, %v537
    %s2026 = scalar_lea.vmem [#allocation5], 396
    %2027 = vst.msk [vmem:[%s2026] ss:$2 sm:$0x3] %vm1828, %v539
    %s2028 = scalar_lea.vmem [#allocation5], 400
    %2029 = vst.msk [vmem:[%s2028] ss:$2 sm:$0x3] %vm1828, %v541
    %s2030 = scalar_lea.vmem [#allocation5], 404
    %2031 = vst.msk [vmem:[%s2030] ss:$2 sm:$0x3] %vm1828, %v543
    %s2032 = scalar_lea.vmem [#allocation5], 408
    %2033 = vst.msk [vmem:[%s2032] ss:$2 sm:$0x3] %vm1828, %v545
    %s2034 = scalar_lea.vmem [#allocation5], 412
    %2035 = vst.msk [vmem:[%s2034] ss:$2 sm:$0x3] %vm1828, %v547
    %s2036 = scalar_lea.vmem [#allocation5], 416
    %2037 = vst.msk [vmem:[%s2036] ss:$2 sm:$0x3] %vm1828, %v548
    %s2038 = scalar_lea.vmem [#allocation5], 420
    %2039 = vst.msk [vmem:[%s2038] ss:$2 sm:$0x3] %vm1828, %v550
    %s2040 = scalar_lea.vmem [#allocation5], 424
    %2041 = vst.msk [vmem:[%s2040] ss:$2 sm:$0x3] %vm1828, %v552
    %s2042 = scalar_lea.vmem [#allocation5], 428
    %2043 = vst.msk [vmem:[%s2042] ss:$2 sm:$0x3] %vm1828, %v554
    %s2044 = scalar_lea.vmem [#allocation5], 432
    %2045 = vst.msk [vmem:[%s2044] ss:$2 sm:$0x3] %vm1828, %v556
    %s2046 = scalar_lea.vmem [#allocation5], 436
    %2047 = vst.msk [vmem:[%s2046] ss:$2 sm:$0x3] %vm1828, %v558
    %s2048 = scalar_lea.vmem [#allocation5], 440
    %2049 = vst.msk [vmem:[%s2048] ss:$2 sm:$0x3] %vm1828, %v560
    %s2050 = scalar_lea.vmem [#allocation5], 444
    %2051 = vst.msk [vmem:[%s2050] ss:$2 sm:$0x3] %vm1828, %v562
    %s2052 = scalar_lea.vmem [#allocation5], 448
    %2053 = vst.msk [vmem:[%s2052] ss:$2 sm:$0x3] %vm1828, %v563
    %s2054 = scalar_lea.vmem [#allocation5], 452
    %2055 = vst.msk [vmem:[%s2054] ss:$2 sm:$0x3] %vm1828, %v565
    %s2056 = scalar_lea.vmem [#allocation5], 456
    %2057 = vst.msk [vmem:[%s2056] ss:$2 sm:$0x3] %vm1828, %v567
    %s2058 = scalar_lea.vmem [#allocation5], 460
    %2059 = vst.msk [vmem:[%s2058] ss:$2 sm:$0x3] %vm1828, %v569
    %s2060 = scalar_lea.vmem [#allocation5], 464
    %2061 = vst.msk [vmem:[%s2060] ss:$2 sm:$0x3] %vm1828, %v571
    %s2062 = scalar_lea.vmem [#allocation5], 468
    %2063 = vst.msk [vmem:[%s2062] ss:$2 sm:$0x3] %vm1828, %v573
    %s2064 = scalar_lea.vmem [#allocation5], 472
    %2065 = vst.msk [vmem:[%s2064] ss:$2 sm:$0x3] %vm1828, %v575
    %s2066 = scalar_lea.vmem [#allocation5], 476
    %2067 = vst.msk [vmem:[%s2066] ss:$2 sm:$0x3] %vm1828, %v577
    %s2068 = scalar_lea.vmem [#allocation5], 480
    %2069 = vst.msk [vmem:[%s2068] ss:$2 sm:$0x3] %vm1828, %v578
    %s2070 = scalar_lea.vmem [#allocation5], 484
    %2071 = vst.msk [vmem:[%s2070] ss:$2 sm:$0x3] %vm1828, %v580
    %s2072 = scalar_lea.vmem [#allocation5], 488
    %2073 = vst.msk [vmem:[%s2072] ss:$2 sm:$0x3] %vm1828, %v582
    %s2074 = scalar_lea.vmem [#allocation5], 492
    %2075 = vst.msk [vmem:[%s2074] ss:$2 sm:$0x3] %vm1828, %v584
    %s2076 = scalar_lea.vmem [#allocation5], 496
    %2077 = vst.msk [vmem:[%s2076] ss:$2 sm:$0x3] %vm1828, %v586
    %s2078 = scalar_lea.vmem [#allocation5], 500
    %2079 = vst.msk [vmem:[%s2078] ss:$2 sm:$0x3] %vm1828, %v588
    %s2080 = scalar_lea.vmem [#allocation5], 504
    %2081 = vst.msk [vmem:[%s2080] ss:$2 sm:$0x3] %vm1828, %v590
    %s2082 = scalar_lea.vmem [#allocation5], 508
    %2083 = vst.msk [vmem:[%s2082] ss:$2 sm:$0x3] %vm1828, %v592
    %s2084 = scalar_lea.vmem [#allocation5], 512
    %2085 = vst.msk [vmem:[%s2084] ss:$2 sm:$0x3] %vm1828, %v593
    %s2086 = scalar_lea.vmem [#allocation5], 516
    %2087 = vst.msk [vmem:[%s2086] ss:$2 sm:$0x3] %vm1828, %v595
    %s2088 = scalar_lea.vmem [#allocation5], 520
    %2089 = vst.msk [vmem:[%s2088] ss:$2 sm:$0x3] %vm1828, %v597
    %s2090 = scalar_lea.vmem [#allocation5], 524
    %2091 = vst.msk [vmem:[%s2090] ss:$2 sm:$0x3] %vm1828, %v599
    %s2092 = scalar_lea.vmem [#allocation5], 528
    %2093 = vst.msk [vmem:[%s2092] ss:$2 sm:$0x3] %vm1828, %v601
    %s2094 = scalar_lea.vmem [#allocation5], 532
    %2095 = vst.msk [vmem:[%s2094] ss:$2 sm:$0x3] %vm1828, %v603
    %s2096 = scalar_lea.vmem [#allocation5], 536
    %2097 = vst.msk [vmem:[%s2096] ss:$2 sm:$0x3] %vm1828, %v605
    %s2098 = scalar_lea.vmem [#allocation5], 540
    %2099 = vst.msk [vmem:[%s2098] ss:$2 sm:$0x3] %vm1828, %v607
    %s2100 = scalar_lea.vmem [#allocation5], 544
    %2101 = vst.msk [vmem:[%s2100] ss:$2 sm:$0x3] %vm1828, %v608
    %s2102 = scalar_lea.vmem [#allocation5], 548
    %2103 = vst.msk [vmem:[%s2102] ss:$2 sm:$0x3] %vm1828, %v610
    %s2104 = scalar_lea.vmem [#allocation5], 552
    %2105 = vst.msk [vmem:[%s2104] ss:$2 sm:$0x3] %vm1828, %v612
    %s2106 = scalar_lea.vmem [#allocation5], 556
    %2107 = vst.msk [vmem:[%s2106] ss:$2 sm:$0x3] %vm1828, %v614
    %s2108 = scalar_lea.vmem [#allocation5], 560
    %2109 = vst.msk [vmem:[%s2108] ss:$2 sm:$0x3] %vm1828, %v616
    %s2110 = scalar_lea.vmem [#allocation5], 564
    %2111 = vst.msk [vmem:[%s2110] ss:$2 sm:$0x3] %vm1828, %v618
    %s2112 = scalar_lea.vmem [#allocation5], 568
    %2113 = vst.msk [vmem:[%s2112] ss:$2 sm:$0x3] %vm1828, %v620
    %s2114 = scalar_lea.vmem [#allocation5], 572
    %2115 = vst.msk [vmem:[%s2114] ss:$2 sm:$0x3] %vm1828, %v622
    %s2116 = scalar_lea.vmem [#allocation5], 576
    %2117 = vst.msk [vmem:[%s2116] ss:$2 sm:$0x3] %vm1828, %v623
    %s2118 = scalar_lea.vmem [#allocation5], 580
    %2119 = vst.msk [vmem:[%s2118] ss:$2 sm:$0x3] %vm1828, %v625
    %s2120 = scalar_lea.vmem [#allocation5], 584
    %2121 = vst.msk [vmem:[%s2120] ss:$2 sm:$0x3] %vm1828, %v627
    %s2122 = scalar_lea.vmem [#allocation5], 588
    %2123 = vst.msk [vmem:[%s2122] ss:$2 sm:$0x3] %vm1828, %v629
    %s2124 = scalar_lea.vmem [#allocation5], 592
    %2125 = vst.msk [vmem:[%s2124] ss:$2 sm:$0x3] %vm1828, %v631
    %s2126 = scalar_lea.vmem [#allocation5], 596
    %2127 = vst.msk [vmem:[%s2126] ss:$2 sm:$0x3] %vm1828, %v633
    %s2128 = scalar_lea.vmem [#allocation5], 600
    %2129 = vst.msk [vmem:[%s2128] ss:$2 sm:$0x3] %vm1828, %v635
    %s2130 = scalar_lea.vmem [#allocation5], 604
    %2131 = vst.msk [vmem:[%s2130] ss:$2 sm:$0x3] %vm1828, %v637
    %s2132 = scalar_lea.vmem [#allocation5], 608
    %2133 = vst.msk [vmem:[%s2132] ss:$2 sm:$0x3] %vm1828, %v638
    %s2134 = scalar_lea.vmem [#allocation5], 612
    %2135 = vst.msk [vmem:[%s2134] ss:$2 sm:$0x3] %vm1828, %v640
    %s2136 = scalar_lea.vmem [#allocation5], 616
    %2137 = vst.msk [vmem:[%s2136] ss:$2 sm:$0x3] %vm1828, %v642
    %s2138 = scalar_lea.vmem [#allocation5], 620
    %2139 = vst.msk [vmem:[%s2138] ss:$2 sm:$0x3] %vm1828, %v644
    %s2140 = scalar_lea.vmem [#allocation5], 624
    %2141 = vst.msk [vmem:[%s2140] ss:$2 sm:$0x3] %vm1828, %v646
    %s2142 = scalar_lea.vmem [#allocation5], 628
    %2143 = vst.msk [vmem:[%s2142] ss:$2 sm:$0x3] %vm1828, %v648
    %s2144 = scalar_lea.vmem [#allocation5], 632
    %2145 = vst.msk [vmem:[%s2144] ss:$2 sm:$0x3] %vm1828, %v650
    %s2146 = scalar_lea.vmem [#allocation5], 636
    %2147 = vst.msk [vmem:[%s2146] ss:$2 sm:$0x3] %vm1828, %v652
    %s2148 = scalar_lea.vmem [#allocation5], 640
    %2149 = vst.msk [vmem:[%s2148] ss:$2 sm:$0x3] %vm1828, %v653
    %s2150 = scalar_lea.vmem [#allocation5], 644
    %2151 = vst.msk [vmem:[%s2150] ss:$2 sm:$0x3] %vm1828, %v655
    %s2152 = scalar_lea.vmem [#allocation5], 648
    %2153 = vst.msk [vmem:[%s2152] ss:$2 sm:$0x3] %vm1828, %v657
    %s2154 = scalar_lea.vmem [#allocation5], 652
    %2155 = vst.msk [vmem:[%s2154] ss:$2 sm:$0x3] %vm1828, %v659
    %s2156 = scalar_lea.vmem [#allocation5], 656
    %2157 = vst.msk [vmem:[%s2156] ss:$2 sm:$0x3] %vm1828, %v661
    %s2158 = scalar_lea.vmem [#allocation5], 660
    %2159 = vst.msk [vmem:[%s2158] ss:$2 sm:$0x3] %vm1828, %v663
    %s2160 = scalar_lea.vmem [#allocation5], 664
    %2161 = vst.msk [vmem:[%s2160] ss:$2 sm:$0x3] %vm1828, %v665
    %s2162 = scalar_lea.vmem [#allocation5], 668
    %2163 = vst.msk [vmem:[%s2162] ss:$2 sm:$0x3] %vm1828, %v667
    %s2164 = scalar_lea.vmem [#allocation5], 672
    %2165 = vst.msk [vmem:[%s2164] ss:$2 sm:$0x3] %vm1828, %v668
    %s2166 = scalar_lea.vmem [#allocation5], 676
    %2167 = vst.msk [vmem:[%s2166] ss:$2 sm:$0x3] %vm1828, %v670
    %s2168 = scalar_lea.vmem [#allocation5], 680
    %2169 = vst.msk [vmem:[%s2168] ss:$2 sm:$0x3] %vm1828, %v672
    %s2170 = scalar_lea.vmem [#allocation5], 684
    %2171 = vst.msk [vmem:[%s2170] ss:$2 sm:$0x3] %vm1828, %v674
    %s2172 = scalar_lea.vmem [#allocation5], 688
    %2173 = vst.msk [vmem:[%s2172] ss:$2 sm:$0x3] %vm1828, %v676
    %s2174 = scalar_lea.vmem [#allocation5], 692
    %2175 = vst.msk [vmem:[%s2174] ss:$2 sm:$0x3] %vm1828, %v678
    %s2176 = scalar_lea.vmem [#allocation5], 696
    %2177 = vst.msk [vmem:[%s2176] ss:$2 sm:$0x3] %vm1828, %v680
    %s2178 = scalar_lea.vmem [#allocation5], 700
    %2179 = vst.msk [vmem:[%s2178] ss:$2 sm:$0x3] %vm1828, %v682
    %s2180 = scalar_lea.vmem [#allocation5], 704
    %2181 = vst.msk [vmem:[%s2180] ss:$2 sm:$0x3] %vm1828, %v683
    %s2182 = scalar_lea.vmem [#allocation5], 708
    %2183 = vst.msk [vmem:[%s2182] ss:$2 sm:$0x3] %vm1828, %v685
    %s2184 = scalar_lea.vmem [#allocation5], 712
    %2185 = vst.msk [vmem:[%s2184] ss:$2 sm:$0x3] %vm1828, %v687
    %s2186 = scalar_lea.vmem [#allocation5], 716
    %2187 = vst.msk [vmem:[%s2186] ss:$2 sm:$0x3] %vm1828, %v689
    %s2188 = scalar_lea.vmem [#allocation5], 720
    %2189 = vst.msk [vmem:[%s2188] ss:$2 sm:$0x3] %vm1828, %v691
    %s2190 = scalar_lea.vmem [#allocation5], 724
    %2191 = vst.msk [vmem:[%s2190] ss:$2 sm:$0x3] %vm1828, %v693
    %s2192 = scalar_lea.vmem [#allocation5], 728
    %2193 = vst.msk [vmem:[%s2192] ss:$2 sm:$0x3] %vm1828, %v695
    %s2194 = scalar_lea.vmem [#allocation5], 732
    %2195 = vst.msk [vmem:[%s2194] ss:$2 sm:$0x3] %vm1828, %v697
    %s2196 = scalar_lea.vmem [#allocation5], 736
    %2197 = vst.msk [vmem:[%s2196] ss:$2 sm:$0x3] %vm1828, %v698
    %s2198 = scalar_lea.vmem [#allocation5], 740
    %2199 = vst.msk [vmem:[%s2198] ss:$2 sm:$0x3] %vm1828, %v700
    %s2200 = scalar_lea.vmem [#allocation5], 744
    %2201 = vst.msk [vmem:[%s2200] ss:$2 sm:$0x3] %vm1828, %v702
    %s2202 = scalar_lea.vmem [#allocation5], 748
    %2203 = vst.msk [vmem:[%s2202] ss:$2 sm:$0x3] %vm1828, %v704
    %s2204 = scalar_lea.vmem [#allocation5], 752
    %2205 = vst.msk [vmem:[%s2204] ss:$2 sm:$0x3] %vm1828, %v706
    %s2206 = scalar_lea.vmem [#allocation5], 756
    %2207 = vst.msk [vmem:[%s2206] ss:$2 sm:$0x3] %vm1828, %v708
    %s2208 = scalar_lea.vmem [#allocation5], 760
    %2209 = vst.msk [vmem:[%s2208] ss:$2 sm:$0x3] %vm1828, %v710
    %s2210 = scalar_lea.vmem [#allocation5], 764
    %2211 = vst.msk [vmem:[%s2210] ss:$2 sm:$0x3] %vm1828, %v712
    %s2212 = scalar_lea.vmem [#allocation5], 768
    %2213 = vst.msk [vmem:[%s2212] ss:$2 sm:$0x3] %vm1828, %v713
    %s2214 = scalar_lea.vmem [#allocation5], 772
    %2215 = vst.msk [vmem:[%s2214] ss:$2 sm:$0x3] %vm1828, %v715
    %s2216 = scalar_lea.vmem [#allocation5], 776
    %2217 = vst.msk [vmem:[%s2216] ss:$2 sm:$0x3] %vm1828, %v717
    %s2218 = scalar_lea.vmem [#allocation5], 780
    %2219 = vst.msk [vmem:[%s2218] ss:$2 sm:$0x3] %vm1828, %v719
    %s2220 = scalar_lea.vmem [#allocation5], 784
    %2221 = vst.msk [vmem:[%s2220] ss:$2 sm:$0x3] %vm1828, %v721
    %s2222 = scalar_lea.vmem [#allocation5], 788
    %2223 = vst.msk [vmem:[%s2222] ss:$2 sm:$0x3] %vm1828, %v723
    %s2224 = scalar_lea.vmem [#allocation5], 792
    %2225 = vst.msk [vmem:[%s2224] ss:$2 sm:$0x3] %vm1828, %v725
    %s2226 = scalar_lea.vmem [#allocation5], 796
    %2227 = vst.msk [vmem:[%s2226] ss:$2 sm:$0x3] %vm1828, %v727
    %s2228 = scalar_lea.vmem [#allocation5], 800
    %2229 = vst.msk [vmem:[%s2228] ss:$2 sm:$0x3] %vm1828, %v728
    %s2230 = scalar_lea.vmem [#allocation5], 804
    %2231 = vst.msk [vmem:[%s2230] ss:$2 sm:$0x3] %vm1828, %v730
    %s2232 = scalar_lea.vmem [#allocation5], 808
    %2233 = vst.msk [vmem:[%s2232] ss:$2 sm:$0x3] %vm1828, %v732
    %s2234 = scalar_lea.vmem [#allocation5], 812
    %2235 = vst.msk [vmem:[%s2234] ss:$2 sm:$0x3] %vm1828, %v734
    %s2236 = scalar_lea.vmem [#allocation5], 816
    %2237 = vst.msk [vmem:[%s2236] ss:$2 sm:$0x3] %vm1828, %v736
    %s2238 = scalar_lea.vmem [#allocation5], 820
    %2239 = vst.msk [vmem:[%s2238] ss:$2 sm:$0x3] %vm1828, %v738
    %s2240 = scalar_lea.vmem [#allocation5], 824
    %2241 = vst.msk [vmem:[%s2240] ss:$2 sm:$0x3] %vm1828, %v740
    %s2242 = scalar_lea.vmem [#allocation5], 828
    %2243 = vst.msk [vmem:[%s2242] ss:$2 sm:$0x3] %vm1828, %v742
    %s2244 = scalar_lea.vmem [#allocation5], 832
    %2245 = vst.msk [vmem:[%s2244] ss:$2 sm:$0x3] %vm1828, %v743
    %s2246 = scalar_lea.vmem [#allocation5], 836
    %2247 = vst.msk [vmem:[%s2246] ss:$2 sm:$0x3] %vm1828, %v745
    %s2248 = scalar_lea.vmem [#allocation5], 840
    %2249 = vst.msk [vmem:[%s2248] ss:$2 sm:$0x3] %vm1828, %v747
    %s2250 = scalar_lea.vmem [#allocation5], 844
    %2251 = vst.msk [vmem:[%s2250] ss:$2 sm:$0x3] %vm1828, %v749
    %s2252 = scalar_lea.vmem [#allocation5], 848
    %2253 = vst.msk [vmem:[%s2252] ss:$2 sm:$0x3] %vm1828, %v751
    %s2254 = scalar_lea.vmem [#allocation5], 852
    %2255 = vst.msk [vmem:[%s2254] ss:$2 sm:$0x3] %vm1828, %v753
    %s2256 = scalar_lea.vmem [#allocation5], 856
    %2257 = vst.msk [vmem:[%s2256] ss:$2 sm:$0x3] %vm1828, %v755
    %s2258 = scalar_lea.vmem [#allocation5], 860
    %2259 = vst.msk [vmem:[%s2258] ss:$2 sm:$0x3] %vm1828, %v757
    %s2260 = scalar_lea.vmem [#allocation5], 864
    %2261 = vst.msk [vmem:[%s2260] ss:$2 sm:$0x3] %vm1828, %v758
    %s2262 = scalar_lea.vmem [#allocation5], 868
    %2263 = vst.msk [vmem:[%s2262] ss:$2 sm:$0x3] %vm1828, %v760
    %s2264 = scalar_lea.vmem [#allocation5], 872
    %2265 = vst.msk [vmem:[%s2264] ss:$2 sm:$0x3] %vm1828, %v762
    %s2266 = scalar_lea.vmem [#allocation5], 876
    %2267 = vst.msk [vmem:[%s2266] ss:$2 sm:$0x3] %vm1828, %v764
    %s2268 = scalar_lea.vmem [#allocation5], 880
    %2269 = vst.msk [vmem:[%s2268] ss:$2 sm:$0x3] %vm1828, %v766
    %s2270 = scalar_lea.vmem [#allocation5], 884
    %2271 = vst.msk [vmem:[%s2270] ss:$2 sm:$0x3] %vm1828, %v768
    %s2272 = scalar_lea.vmem [#allocation5], 888
    %2273 = vst.msk [vmem:[%s2272] ss:$2 sm:$0x3] %vm1828, %v770
    %s2274 = scalar_lea.vmem [#allocation5], 892
    %2275 = vst.msk [vmem:[%s2274] ss:$2 sm:$0x3] %vm1828, %v772
    %s2276 = scalar_lea.vmem [#allocation5], 896
    %2277 = vst.msk [vmem:[%s2276] ss:$2 sm:$0x3] %vm1828, %v773
    %s2278 = scalar_lea.vmem [#allocation5], 900
    %2279 = vst.msk [vmem:[%s2278] ss:$2 sm:$0x3] %vm1828, %v775
    %s2280 = scalar_lea.vmem [#allocation5], 904
    %2281 = vst.msk [vmem:[%s2280] ss:$2 sm:$0x3] %vm1828, %v777
    %s2282 = scalar_lea.vmem [#allocation5], 908
    %2283 = vst.msk [vmem:[%s2282] ss:$2 sm:$0x3] %vm1828, %v779
    %s2284 = scalar_lea.vmem [#allocation5], 912
    %2285 = vst.msk [vmem:[%s2284] ss:$2 sm:$0x3] %vm1828, %v781
    %s2286 = scalar_lea.vmem [#allocation5], 916
    %2287 = vst.msk [vmem:[%s2286] ss:$2 sm:$0x3] %vm1828, %v783
    %s2288 = scalar_lea.vmem [#allocation5], 920
    %2289 = vst.msk [vmem:[%s2288] ss:$2 sm:$0x3] %vm1828, %v785
    %s2290 = scalar_lea.vmem [#allocation5], 924
    %2291 = vst.msk [vmem:[%s2290] ss:$2 sm:$0x3] %vm1828, %v787
    %s2292 = scalar_lea.vmem [#allocation5], 928
    %2293 = vst.msk [vmem:[%s2292] ss:$2 sm:$0x3] %vm1828, %v788
    %s2294 = scalar_lea.vmem [#allocation5], 932
    %2295 = vst.msk [vmem:[%s2294] ss:$2 sm:$0x3] %vm1828, %v790
    %s2296 = scalar_lea.vmem [#allocation5], 936
    %2297 = vst.msk [vmem:[%s2296] ss:$2 sm:$0x3] %vm1828, %v792
    %s2298 = scalar_lea.vmem [#allocation5], 940
    %2299 = vst.msk [vmem:[%s2298] ss:$2 sm:$0x3] %vm1828, %v794
    %s2300 = scalar_lea.vmem [#allocation5], 944
    %2301 = vst.msk [vmem:[%s2300] ss:$2 sm:$0x3] %vm1828, %v796
    %s2302 = scalar_lea.vmem [#allocation5], 948
    %2303 = vst.msk [vmem:[%s2302] ss:$2 sm:$0x3] %vm1828, %v798
    %s2304 = scalar_lea.vmem [#allocation5], 952
    %2305 = vst.msk [vmem:[%s2304] ss:$2 sm:$0x3] %vm1828, %v800
    %s2306 = scalar_lea.vmem [#allocation5], 956
    %2307 = vst.msk [vmem:[%s2306] ss:$2 sm:$0x3] %vm1828, %v802
    %s2308 = scalar_lea.vmem [#allocation5], 960
    %2309 = vst.msk [vmem:[%s2308] ss:$2 sm:$0x3] %vm1828, %v803
    %s2310 = scalar_lea.vmem [#allocation5], 964
    %2311 = vst.msk [vmem:[%s2310] ss:$2 sm:$0x3] %vm1828, %v805
    %s2312 = scalar_lea.vmem [#allocation5], 968
    %2313 = vst.msk [vmem:[%s2312] ss:$2 sm:$0x3] %vm1828, %v807
    %s2314 = scalar_lea.vmem [#allocation5], 972
    %2315 = vst.msk [vmem:[%s2314] ss:$2 sm:$0x3] %vm1828, %v809
    %s2316 = scalar_lea.vmem [#allocation5], 976
    %2317 = vst.msk [vmem:[%s2316] ss:$2 sm:$0x3] %vm1828, %v811
    %s2318 = scalar_lea.vmem [#allocation5], 980
    %2319 = vst.msk [vmem:[%s2318] ss:$2 sm:$0x3] %vm1828, %v813
    %s2320 = scalar_lea.vmem [#allocation5], 984
    %2321 = vst.msk [vmem:[%s2320] ss:$2 sm:$0x3] %vm1828, %v815
    %s2322 = scalar_lea.vmem [#allocation5], 988
    %2323 = vst.msk [vmem:[%s2322] ss:$2 sm:$0x3] %vm1828, %v817
    %s2324 = scalar_lea.vmem [#allocation5], 992
    %2325 = vst.msk [vmem:[%s2324] ss:$2 sm:$0x3] %vm1828, %v818
    %s2326 = scalar_lea.vmem [#allocation5], 996
    %2327 = vst.msk [vmem:[%s2326] ss:$2 sm:$0x3] %vm1828, %v820
    %s2328 = scalar_lea.vmem [#allocation5], 1000
    %2329 = vst.msk [vmem:[%s2328] ss:$2 sm:$0x3] %vm1828, %v822
    %s2330 = scalar_lea.vmem [#allocation5], 1004
    %2331 = vst.msk [vmem:[%s2330] ss:$2 sm:$0x3] %vm1828, %v824
    %s2332 = scalar_lea.vmem [#allocation5], 1008
    %2333 = vst.msk [vmem:[%s2332] ss:$2 sm:$0x3] %vm1828, %v826
    %s2334 = scalar_lea.vmem [#allocation5], 1012
    %2335 = vst.msk [vmem:[%s2334] ss:$2 sm:$0x3] %vm1828, %v828
    %s2336 = scalar_lea.vmem [#allocation5], 1016
    %2337 = vst.msk [vmem:[%s2336] ss:$2 sm:$0x3] %vm1828, %v830
    %s2338 = scalar_lea.vmem [#allocation5], 1020
    %2339 = vst.msk [vmem:[%s2338] ss:$2 sm:$0x3] %vm1828, %v832
    %s2340 = scalar_lea.vmem [#allocation5], 1024
    %2341 = vst.msk [vmem:[%s2340] ss:$2 sm:$0x3] %vm1828, %v833
    %s2342 = scalar_lea.vmem [#allocation5], 1028
    %2343 = vst.msk [vmem:[%s2342] ss:$2 sm:$0x3] %vm1828, %v835
    %s2344 = scalar_lea.vmem [#allocation5], 1032
    %2345 = vst.msk [vmem:[%s2344] ss:$2 sm:$0x3] %vm1828, %v837
    %s2346 = scalar_lea.vmem [#allocation5], 1036
    %2347 = vst.msk [vmem:[%s2346] ss:$2 sm:$0x3] %vm1828, %v839
    %s2348 = scalar_lea.vmem [#allocation5], 1040
    %2349 = vst.msk [vmem:[%s2348] ss:$2 sm:$0x3] %vm1828, %v841
    %s2350 = scalar_lea.vmem [#allocation5], 1044
    %2351 = vst.msk [vmem:[%s2350] ss:$2 sm:$0x3] %vm1828, %v843
    %s2352 = scalar_lea.vmem [#allocation5], 1048
    %2353 = vst.msk [vmem:[%s2352] ss:$2 sm:$0x3] %vm1828, %v845
    %s2354 = scalar_lea.vmem [#allocation5], 1052
    %2355 = vst.msk [vmem:[%s2354] ss:$2 sm:$0x3] %vm1828, %v847
    %s2356 = scalar_lea.vmem [#allocation5], 1056
    %2357 = vst.msk [vmem:[%s2356] ss:$2 sm:$0x3] %vm1828, %v848
    %s2358 = scalar_lea.vmem [#allocation5], 1060
    %2359 = vst.msk [vmem:[%s2358] ss:$2 sm:$0x3] %vm1828, %v850
    %s2360 = scalar_lea.vmem [#allocation5], 1064
    %2361 = vst.msk [vmem:[%s2360] ss:$2 sm:$0x3] %vm1828, %v852
    %s2362 = scalar_lea.vmem [#allocation5], 1068
    %2363 = vst.msk [vmem:[%s2362] ss:$2 sm:$0x3] %vm1828, %v854
    %s2364 = scalar_lea.vmem [#allocation5], 1072
    %2365 = vst.msk [vmem:[%s2364] ss:$2 sm:$0x3] %vm1828, %v856
    %s2366 = scalar_lea.vmem [#allocation5], 1076
    %2367 = vst.msk [vmem:[%s2366] ss:$2 sm:$0x3] %vm1828, %v858
    %s2368 = scalar_lea.vmem [#allocation5], 1080
    %2369 = vst.msk [vmem:[%s2368] ss:$2 sm:$0x3] %vm1828, %v860
    %s2370 = scalar_lea.vmem [#allocation5], 1084
    %2371 = vst.msk [vmem:[%s2370] ss:$2 sm:$0x3] %vm1828, %v862
    %s2372 = scalar_lea.vmem [#allocation5], 1088
    %2373 = vst.msk [vmem:[%s2372] ss:$2 sm:$0x3] %vm1828, %v863
    %s2374 = scalar_lea.vmem [#allocation5], 1092
    %2375 = vst.msk [vmem:[%s2374] ss:$2 sm:$0x3] %vm1828, %v865
    %s2376 = scalar_lea.vmem [#allocation5], 1096
    %2377 = vst.msk [vmem:[%s2376] ss:$2 sm:$0x3] %vm1828, %v867
    %s2378 = scalar_lea.vmem [#allocation5], 1100
    %2379 = vst.msk [vmem:[%s2378] ss:$2 sm:$0x3] %vm1828, %v869
    %s2380 = scalar_lea.vmem [#allocation5], 1104
    %2381 = vst.msk [vmem:[%s2380] ss:$2 sm:$0x3] %vm1828, %v871
    %s2382 = scalar_lea.vmem [#allocation5], 1108
    %2383 = vst.msk [vmem:[%s2382] ss:$2 sm:$0x3] %vm1828, %v873
    %s2384 = scalar_lea.vmem [#allocation5], 1112
    %2385 = vst.msk [vmem:[%s2384] ss:$2 sm:$0x3] %vm1828, %v875
    %s2386 = scalar_lea.vmem [#allocation5], 1116
    %2387 = vst.msk [vmem:[%s2386] ss:$2 sm:$0x3] %vm1828, %v877
    %s2388 = scalar_lea.vmem [#allocation5], 1120
    %2389 = vst.msk [vmem:[%s2388] ss:$2 sm:$0x3] %vm1828, %v878
    %s2390 = scalar_lea.vmem [#allocation5], 1124
    %2391 = vst.msk [vmem:[%s2390] ss:$2 sm:$0x3] %vm1828, %v880
    %s2392 = scalar_lea.vmem [#allocation5], 1128
    %2393 = vst.msk [vmem:[%s2392] ss:$2 sm:$0x3] %vm1828, %v882
    %s2394 = scalar_lea.vmem [#allocation5], 1132
    %2395 = vst.msk [vmem:[%s2394] ss:$2 sm:$0x3] %vm1828, %v884
    %s2396 = scalar_lea.vmem [#allocation5], 1136
    %2397 = vst.msk [vmem:[%s2396] ss:$2 sm:$0x3] %vm1828, %v886
    %s2398 = scalar_lea.vmem [#allocation5], 1140
    %2399 = vst.msk [vmem:[%s2398] ss:$2 sm:$0x3] %vm1828, %v888
    %s2400 = scalar_lea.vmem [#allocation5], 1144
    %2401 = vst.msk [vmem:[%s2400] ss:$2 sm:$0x3] %vm1828, %v890
    %s2402 = scalar_lea.vmem [#allocation5], 1148
    %2403 = vst.msk [vmem:[%s2402] ss:$2 sm:$0x3] %vm1828, %v892
    %s2404 = scalar_lea.vmem [#allocation5], 1152
    %2405 = vst.msk [vmem:[%s2404] ss:$2 sm:$0x3] %vm1828, %v893
    %s2406 = scalar_lea.vmem [#allocation5], 1156
    %2407 = vst.msk [vmem:[%s2406] ss:$2 sm:$0x3] %vm1828, %v895
    %s2408 = scalar_lea.vmem [#allocation5], 1160
    %2409 = vst.msk [vmem:[%s2408] ss:$2 sm:$0x3] %vm1828, %v897
    %s2410 = scalar_lea.vmem [#allocation5], 1164
    %2411 = vst.msk [vmem:[%s2410] ss:$2 sm:$0x3] %vm1828, %v899
    %s2412 = scalar_lea.vmem [#allocation5], 1168
    %2413 = vst.msk [vmem:[%s2412] ss:$2 sm:$0x3] %vm1828, %v901
    %s2414 = scalar_lea.vmem [#allocation5], 1172
    %2415 = vst.msk [vmem:[%s2414] ss:$2 sm:$0x3] %vm1828, %v903
    %s2416 = scalar_lea.vmem [#allocation5], 1176
    %2417 = vst.msk [vmem:[%s2416] ss:$2 sm:$0x3] %vm1828, %v905
    %s2418 = scalar_lea.vmem [#allocation5], 1180
    %2419 = vst.msk [vmem:[%s2418] ss:$2 sm:$0x3] %vm1828, %v907
    %s2420 = scalar_lea.vmem [#allocation5], 1184
    %2421 = vst.msk [vmem:[%s2420] ss:$2 sm:$0x3] %vm1828, %v908
    %s2422 = scalar_lea.vmem [#allocation5], 1188
    %2423 = vst.msk [vmem:[%s2422] ss:$2 sm:$0x3] %vm1828, %v910
    %s2424 = scalar_lea.vmem [#allocation5], 1192
    %2425 = vst.msk [vmem:[%s2424] ss:$2 sm:$0x3] %vm1828, %v912
    %s2426 = scalar_lea.vmem [#allocation5], 1196
    %2427 = vst.msk [vmem:[%s2426] ss:$2 sm:$0x3] %vm1828, %v914
    %s2428 = scalar_lea.vmem [#allocation5], 1200
    %2429 = vst.msk [vmem:[%s2428] ss:$2 sm:$0x3] %vm1828, %v916
    %s2430 = scalar_lea.vmem [#allocation5], 1204
    %2431 = vst.msk [vmem:[%s2430] ss:$2 sm:$0x3] %vm1828, %v918
    %s2432 = scalar_lea.vmem [#allocation5], 1208
    %2433 = vst.msk [vmem:[%s2432] ss:$2 sm:$0x3] %vm1828, %v920
    %s2434 = scalar_lea.vmem [#allocation5], 1212
    %2435 = vst.msk [vmem:[%s2434] ss:$2 sm:$0x3] %vm1828, %v922
    %s2436 = scalar_lea.vmem [#allocation5], 1216
    %2437 = vst.msk [vmem:[%s2436] ss:$2 sm:$0x3] %vm1828, %v923
    %s2438 = scalar_lea.vmem [#allocation5], 1220
    %2439 = vst.msk [vmem:[%s2438] ss:$2 sm:$0x3] %vm1828, %v925
    %s2440 = scalar_lea.vmem [#allocation5], 1224
    %2441 = vst.msk [vmem:[%s2440] ss:$2 sm:$0x3] %vm1828, %v927
    %s2442 = scalar_lea.vmem [#allocation5], 1228
    %2443 = vst.msk [vmem:[%s2442] ss:$2 sm:$0x3] %vm1828, %v929
    %s2444 = scalar_lea.vmem [#allocation5], 1232
    %2445 = vst.msk [vmem:[%s2444] ss:$2 sm:$0x3] %vm1828, %v931
    %s2446 = scalar_lea.vmem [#allocation5], 1236
    %2447 = vst.msk [vmem:[%s2446] ss:$2 sm:$0x3] %vm1828, %v933
    %s2448 = scalar_lea.vmem [#allocation5], 1240
    %2449 = vst.msk [vmem:[%s2448] ss:$2 sm:$0x3] %vm1828, %v935
    %s2450 = scalar_lea.vmem [#allocation5], 1244
    %2451 = vst.msk [vmem:[%s2450] ss:$2 sm:$0x3] %vm1828, %v937
    %s2452 = scalar_lea.vmem [#allocation5], 1248
    %2453 = vst.msk [vmem:[%s2452] ss:$2 sm:$0x3] %vm1828, %v938
    %s2454 = scalar_lea.vmem [#allocation5], 1252
    %2455 = vst.msk [vmem:[%s2454] ss:$2 sm:$0x3] %vm1828, %v940
    %s2456 = scalar_lea.vmem [#allocation5], 1256
    %2457 = vst.msk [vmem:[%s2456] ss:$2 sm:$0x3] %vm1828, %v942
    %s2458 = scalar_lea.vmem [#allocation5], 1260
    %2459 = vst.msk [vmem:[%s2458] ss:$2 sm:$0x3] %vm1828, %v944
    %s2460 = scalar_lea.vmem [#allocation5], 1264
    %2461 = vst.msk [vmem:[%s2460] ss:$2 sm:$0x3] %vm1828, %v946
    %s2462 = scalar_lea.vmem [#allocation5], 1268
    %2463 = vst.msk [vmem:[%s2462] ss:$2 sm:$0x3] %vm1828, %v948
    %s2464 = scalar_lea.vmem [#allocation5], 1272
    %2465 = vst.msk [vmem:[%s2464] ss:$2 sm:$0x3] %vm1828, %v950
    %s2466 = scalar_lea.vmem [#allocation5], 1276
    %2467 = vst.msk [vmem:[%s2466] ss:$2 sm:$0x3] %vm1828, %v952
    %s2468 = scalar_lea.vmem [#allocation5], 1280
    %2469 = vst.msk [vmem:[%s2468] ss:$2 sm:$0x3] %vm1828, %v953
    %s2470 = scalar_lea.vmem [#allocation5], 1284
    %2471 = vst.msk [vmem:[%s2470] ss:$2 sm:$0x3] %vm1828, %v955
    %s2472 = scalar_lea.vmem [#allocation5], 1288
    %2473 = vst.msk [vmem:[%s2472] ss:$2 sm:$0x3] %vm1828, %v957
    %s2474 = scalar_lea.vmem [#allocation5], 1292
    %2475 = vst.msk [vmem:[%s2474] ss:$2 sm:$0x3] %vm1828, %v959
    %s2476 = scalar_lea.vmem [#allocation5], 1296
    %2477 = vst.msk [vmem:[%s2476] ss:$2 sm:$0x3] %vm1828, %v961
    %s2478 = scalar_lea.vmem [#allocation5], 1300
    %2479 = vst.msk [vmem:[%s2478] ss:$2 sm:$0x3] %vm1828, %v963
    %s2480 = scalar_lea.vmem [#allocation5], 1304
    %2481 = vst.msk [vmem:[%s2480] ss:$2 sm:$0x3] %vm1828, %v965
    %s2482 = scalar_lea.vmem [#allocation5], 1308
    %2483 = vst.msk [vmem:[%s2482] ss:$2 sm:$0x3] %vm1828, %v967
    %s2484 = scalar_lea.vmem [#allocation5], 1312
    %2485 = vst.msk [vmem:[%s2484] ss:$2 sm:$0x3] %vm1828, %v968
    %s2486 = scalar_lea.vmem [#allocation5], 1316
    %2487 = vst.msk [vmem:[%s2486] ss:$2 sm:$0x3] %vm1828, %v970
    %s2488 = scalar_lea.vmem [#allocation5], 1320
    %2489 = vst.msk [vmem:[%s2488] ss:$2 sm:$0x3] %vm1828, %v972
    %s2490 = scalar_lea.vmem [#allocation5], 1324
    %2491 = vst.msk [vmem:[%s2490] ss:$2 sm:$0x3] %vm1828, %v974
    %s2492 = scalar_lea.vmem [#allocation5], 1328
    %2493 = vst.msk [vmem:[%s2492] ss:$2 sm:$0x3] %vm1828, %v976
    %s2494 = scalar_lea.vmem [#allocation5], 1332
    %2495 = vst.msk [vmem:[%s2494] ss:$2 sm:$0x3] %vm1828, %v978
    %s2496 = scalar_lea.vmem [#allocation5], 1336
    %2497 = vst.msk [vmem:[%s2496] ss:$2 sm:$0x3] %vm1828, %v980
    %s2498 = scalar_lea.vmem [#allocation5], 1340
    %2499 = vst.msk [vmem:[%s2498] ss:$2 sm:$0x3] %vm1828, %v982
    %s2500 = scalar_lea.vmem [#allocation5], 1344
    %2501 = vst.msk [vmem:[%s2500] ss:$2 sm:$0x3] %vm1828, %v983
    %s2502 = scalar_lea.vmem [#allocation5], 1348
    %2503 = vst.msk [vmem:[%s2502] ss:$2 sm:$0x3] %vm1828, %v985
    %s2504 = scalar_lea.vmem [#allocation5], 1352
    %2505 = vst.msk [vmem:[%s2504] ss:$2 sm:$0x3] %vm1828, %v987
    %s2506 = scalar_lea.vmem [#allocation5], 1356
    %2507 = vst.msk [vmem:[%s2506] ss:$2 sm:$0x3] %vm1828, %v989
    %s2508 = scalar_lea.vmem [#allocation5], 1360
    %2509 = vst.msk [vmem:[%s2508] ss:$2 sm:$0x3] %vm1828, %v991
    %s2510 = scalar_lea.vmem [#allocation5], 1364
    %2511 = vst.msk [vmem:[%s2510] ss:$2 sm:$0x3] %vm1828, %v993
    %s2512 = scalar_lea.vmem [#allocation5], 1368
    %2513 = vst.msk [vmem:[%s2512] ss:$2 sm:$0x3] %vm1828, %v995
    %s2514 = scalar_lea.vmem [#allocation5], 1372
    %2515 = vst.msk [vmem:[%s2514] ss:$2 sm:$0x3] %vm1828, %v997
    %s2516 = scalar_lea.vmem [#allocation5], 1376
    %2517 = vst.msk [vmem:[%s2516] ss:$2 sm:$0x3] %vm1828, %v998
    %s2518 = scalar_lea.vmem [#allocation5], 1380
    %2519 = vst.msk [vmem:[%s2518] ss:$2 sm:$0x3] %vm1828, %v1000
    %s2520 = scalar_lea.vmem [#allocation5], 1384
    %2521 = vst.msk [vmem:[%s2520] ss:$2 sm:$0x3] %vm1828, %v1002
    %s2522 = scalar_lea.vmem [#allocation5], 1388
    %2523 = vst.msk [vmem:[%s2522] ss:$2 sm:$0x3] %vm1828, %v1004
    %s2524 = scalar_lea.vmem [#allocation5], 1392
    %2525 = vst.msk [vmem:[%s2524] ss:$2 sm:$0x3] %vm1828, %v1006
    %s2526 = scalar_lea.vmem [#allocation5], 1396
    %2527 = vst.msk [vmem:[%s2526] ss:$2 sm:$0x3] %vm1828, %v1008
    %s2528 = scalar_lea.vmem [#allocation5], 1400
    %2529 = vst.msk [vmem:[%s2528] ss:$2 sm:$0x3] %vm1828, %v1010
    %s2530 = scalar_lea.vmem [#allocation5], 1404
    %2531 = vst.msk [vmem:[%s2530] ss:$2 sm:$0x3] %vm1828, %v1012
    %s2532 = scalar_lea.vmem [#allocation5], 1408
    %2533 = vst.msk [vmem:[%s2532] ss:$2 sm:$0x3] %vm1828, %v1013
    %s2534 = scalar_lea.vmem [#allocation5], 1412
    %2535 = vst.msk [vmem:[%s2534] ss:$2 sm:$0x3] %vm1828, %v1015
    %s2536 = scalar_lea.vmem [#allocation5], 1416
    %2537 = vst.msk [vmem:[%s2536] ss:$2 sm:$0x3] %vm1828, %v1017
    %s2538 = scalar_lea.vmem [#allocation5], 1420
    %2539 = vst.msk [vmem:[%s2538] ss:$2 sm:$0x3] %vm1828, %v1019
    %s2540 = scalar_lea.vmem [#allocation5], 1424
    %2541 = vst.msk [vmem:[%s2540] ss:$2 sm:$0x3] %vm1828, %v1021
    %s2542 = scalar_lea.vmem [#allocation5], 1428
    %2543 = vst.msk [vmem:[%s2542] ss:$2 sm:$0x3] %vm1828, %v1023
    %s2544 = scalar_lea.vmem [#allocation5], 1432
    %2545 = vst.msk [vmem:[%s2544] ss:$2 sm:$0x3] %vm1828, %v1025
    %s2546 = scalar_lea.vmem [#allocation5], 1436
    %2547 = vst.msk [vmem:[%s2546] ss:$2 sm:$0x3] %vm1828, %v1027
    %s2548 = scalar_lea.vmem [#allocation5], 1440
    %2549 = vst.msk [vmem:[%s2548] ss:$2 sm:$0x3] %vm1828, %v1028
    %s2550 = scalar_lea.vmem [#allocation5], 1444
    %2551 = vst.msk [vmem:[%s2550] ss:$2 sm:$0x3] %vm1828, %v1030
    %s2552 = scalar_lea.vmem [#allocation5], 1448
    %2553 = vst.msk [vmem:[%s2552] ss:$2 sm:$0x3] %vm1828, %v1032
    %s2554 = scalar_lea.vmem [#allocation5], 1452
    %2555 = vst.msk [vmem:[%s2554] ss:$2 sm:$0x3] %vm1828, %v1034
    %s2556 = scalar_lea.vmem [#allocation5], 1456
    %2557 = vst.msk [vmem:[%s2556] ss:$2 sm:$0x3] %vm1828, %v1036
    %s2558 = scalar_lea.vmem [#allocation5], 1460
    %2559 = vst.msk [vmem:[%s2558] ss:$2 sm:$0x3] %vm1828, %v1038
    %s2560 = scalar_lea.vmem [#allocation5], 1464
    %2561 = vst.msk [vmem:[%s2560] ss:$2 sm:$0x3] %vm1828, %v1040
    %s2562 = scalar_lea.vmem [#allocation5], 1468
    %2563 = vst.msk [vmem:[%s2562] ss:$2 sm:$0x3] %vm1828, %v1042
    %s2564 = scalar_lea.vmem [#allocation5], 1472
    %2565 = vst.msk [vmem:[%s2564] ss:$2 sm:$0x3] %vm1828, %v1043
    %s2566 = scalar_lea.vmem [#allocation5], 1476
    %2567 = vst.msk [vmem:[%s2566] ss:$2 sm:$0x3] %vm1828, %v1045
    %s2568 = scalar_lea.vmem [#allocation5], 1480
    %2569 = vst.msk [vmem:[%s2568] ss:$2 sm:$0x3] %vm1828, %v1047
    %s2570 = scalar_lea.vmem [#allocation5], 1484
    %2571 = vst.msk [vmem:[%s2570] ss:$2 sm:$0x3] %vm1828, %v1049
    %s2572 = scalar_lea.vmem [#allocation5], 1488
    %2573 = vst.msk [vmem:[%s2572] ss:$2 sm:$0x3] %vm1828, %v1051
    %s2574 = scalar_lea.vmem [#allocation5], 1492
    %2575 = vst.msk [vmem:[%s2574] ss:$2 sm:$0x3] %vm1828, %v1053
    %s2576 = scalar_lea.vmem [#allocation5], 1496
    %2577 = vst.msk [vmem:[%s2576] ss:$2 sm:$0x3] %vm1828, %v1055
    %s2578 = scalar_lea.vmem [#allocation5], 1500
    %2579 = vst.msk [vmem:[%s2578] ss:$2 sm:$0x3] %vm1828, %v1057
    %s2580 = scalar_lea.vmem [#allocation5], 1504
    %2581 = vst.msk [vmem:[%s2580] ss:$2 sm:$0x3] %vm1828, %v1058
    %s2582 = scalar_lea.vmem [#allocation5], 1508
    %2583 = vst.msk [vmem:[%s2582] ss:$2 sm:$0x3] %vm1828, %v1060
    %s2584 = scalar_lea.vmem [#allocation5], 1512
    %2585 = vst.msk [vmem:[%s2584] ss:$2 sm:$0x3] %vm1828, %v1062
    %s2586 = scalar_lea.vmem [#allocation5], 1516
    %2587 = vst.msk [vmem:[%s2586] ss:$2 sm:$0x3] %vm1828, %v1064
    %s2588 = scalar_lea.vmem [#allocation5], 1520
    %2589 = vst.msk [vmem:[%s2588] ss:$2 sm:$0x3] %vm1828, %v1066
    %s2590 = scalar_lea.vmem [#allocation5], 1524
    %2591 = vst.msk [vmem:[%s2590] ss:$2 sm:$0x3] %vm1828, %v1068
    %s2592 = scalar_lea.vmem [#allocation5], 1528
    %2593 = vst.msk [vmem:[%s2592] ss:$2 sm:$0x3] %vm1828, %v1070
    %s2594 = scalar_lea.vmem [#allocation5], 1532
    %2595 = vst.msk [vmem:[%s2594] ss:$2 sm:$0x3] %vm1828, %v1072
    %s2596 = scalar_lea.vmem [#allocation5], 1536
    %2597 = vst.msk [vmem:[%s2596] ss:$2 sm:$0x3] %vm1828, %v1073
    %s2598 = scalar_lea.vmem [#allocation5], 1540
    %2599 = vst.msk [vmem:[%s2598] ss:$2 sm:$0x3] %vm1828, %v1075
    %s2600 = scalar_lea.vmem [#allocation5], 1544
    %2601 = vst.msk [vmem:[%s2600] ss:$2 sm:$0x3] %vm1828, %v1077
    %s2602 = scalar_lea.vmem [#allocation5], 1548
    %2603 = vst.msk [vmem:[%s2602] ss:$2 sm:$0x3] %vm1828, %v1079
    %s2604 = scalar_lea.vmem [#allocation5], 1552
    %2605 = vst.msk [vmem:[%s2604] ss:$2 sm:$0x3] %vm1828, %v1081
    %s2606 = scalar_lea.vmem [#allocation5], 1556
    %2607 = vst.msk [vmem:[%s2606] ss:$2 sm:$0x3] %vm1828, %v1083
    %s2608 = scalar_lea.vmem [#allocation5], 1560
    %2609 = vst.msk [vmem:[%s2608] ss:$2 sm:$0x3] %vm1828, %v1085
    %s2610 = scalar_lea.vmem [#allocation5], 1564
    %2611 = vst.msk [vmem:[%s2610] ss:$2 sm:$0x3] %vm1828, %v1087
    %s2612 = scalar_lea.vmem [#allocation5], 1568
    %2613 = vst.msk [vmem:[%s2612] ss:$2 sm:$0x3] %vm1828, %v1088
    %s2614 = scalar_lea.vmem [#allocation5], 1572
    %2615 = vst.msk [vmem:[%s2614] ss:$2 sm:$0x3] %vm1828, %v1090
    %s2616 = scalar_lea.vmem [#allocation5], 1576
    %2617 = vst.msk [vmem:[%s2616] ss:$2 sm:$0x3] %vm1828, %v1092
    %s2618 = scalar_lea.vmem [#allocation5], 1580
    %2619 = vst.msk [vmem:[%s2618] ss:$2 sm:$0x3] %vm1828, %v1094
    %s2620 = scalar_lea.vmem [#allocation5], 1584
    %2621 = vst.msk [vmem:[%s2620] ss:$2 sm:$0x3] %vm1828, %v1096
    %s2622 = scalar_lea.vmem [#allocation5], 1588
    %2623 = vst.msk [vmem:[%s2622] ss:$2 sm:$0x3] %vm1828, %v1098
    %s2624 = scalar_lea.vmem [#allocation5], 1592
    %2625 = vst.msk [vmem:[%s2624] ss:$2 sm:$0x3] %vm1828, %v1100
    %s2626 = scalar_lea.vmem [#allocation5], 1596
    %2627 = vst.msk [vmem:[%s2626] ss:$2 sm:$0x3] %vm1828, %v1102
    %s2628 = scalar_lea.vmem [#allocation5], 1600
    %2629 = vst.msk [vmem:[%s2628] ss:$2 sm:$0x3] %vm1828, %v1103
    %s2630 = scalar_lea.vmem [#allocation5], 1604
    %2631 = vst.msk [vmem:[%s2630] ss:$2 sm:$0x3] %vm1828, %v1105
    %s2632 = scalar_lea.vmem [#allocation5], 1608
    %2633 = vst.msk [vmem:[%s2632] ss:$2 sm:$0x3] %vm1828, %v1107
    %s2634 = scalar_lea.vmem [#allocation5], 1612
    %2635 = vst.msk [vmem:[%s2634] ss:$2 sm:$0x3] %vm1828, %v1109
    %s2636 = scalar_lea.vmem [#allocation5], 1616
    %2637 = vst.msk [vmem:[%s2636] ss:$2 sm:$0x3] %vm1828, %v1111
    %s2638 = scalar_lea.vmem [#allocation5], 1620
    %2639 = vst.msk [vmem:[%s2638] ss:$2 sm:$0x3] %vm1828, %v1113
    %s2640 = scalar_lea.vmem [#allocation5], 1624
    %2641 = vst.msk [vmem:[%s2640] ss:$2 sm:$0x3] %vm1828, %v1115
    %s2642 = scalar_lea.vmem [#allocation5], 1628
    %2643 = vst.msk [vmem:[%s2642] ss:$2 sm:$0x3] %vm1828, %v1117
    %s2644 = scalar_lea.vmem [#allocation5], 1632
    %2645 = vst.msk [vmem:[%s2644] ss:$2 sm:$0x3] %vm1828, %v1118
    %s2646 = scalar_lea.vmem [#allocation5], 1636
    %2647 = vst.msk [vmem:[%s2646] ss:$2 sm:$0x3] %vm1828, %v1120
    %s2648 = scalar_lea.vmem [#allocation5], 1640
    %2649 = vst.msk [vmem:[%s2648] ss:$2 sm:$0x3] %vm1828, %v1122
    %s2650 = scalar_lea.vmem [#allocation5], 1644
    %2651 = vst.msk [vmem:[%s2650] ss:$2 sm:$0x3] %vm1828, %v1124
    %s2652 = scalar_lea.vmem [#allocation5], 1648
    %2653 = vst.msk [vmem:[%s2652] ss:$2 sm:$0x3] %vm1828, %v1126
    %s2654 = scalar_lea.vmem [#allocation5], 1652
    %2655 = vst.msk [vmem:[%s2654] ss:$2 sm:$0x3] %vm1828, %v1128
    %s2656 = scalar_lea.vmem [#allocation5], 1656
    %2657 = vst.msk [vmem:[%s2656] ss:$2 sm:$0x3] %vm1828, %v1130
    %s2658 = scalar_lea.vmem [#allocation5], 1660
    %2659 = vst.msk [vmem:[%s2658] ss:$2 sm:$0x3] %vm1828, %v1132
    %s2660 = scalar_lea.vmem [#allocation5], 1664
    %2661 = vst.msk [vmem:[%s2660] ss:$2 sm:$0x3] %vm1828, %v1133
    %s2662 = scalar_lea.vmem [#allocation5], 1668
    %2663 = vst.msk [vmem:[%s2662] ss:$2 sm:$0x3] %vm1828, %v1135
    %s2664 = scalar_lea.vmem [#allocation5], 1672
    %2665 = vst.msk [vmem:[%s2664] ss:$2 sm:$0x3] %vm1828, %v1137
    %s2666 = scalar_lea.vmem [#allocation5], 1676
    %2667 = vst.msk [vmem:[%s2666] ss:$2 sm:$0x3] %vm1828, %v1139
    %s2668 = scalar_lea.vmem [#allocation5], 1680
    %2669 = vst.msk [vmem:[%s2668] ss:$2 sm:$0x3] %vm1828, %v1141
    %s2670 = scalar_lea.vmem [#allocation5], 1684
    %2671 = vst.msk [vmem:[%s2670] ss:$2 sm:$0x3] %vm1828, %v1143
    %s2672 = scalar_lea.vmem [#allocation5], 1688
    %2673 = vst.msk [vmem:[%s2672] ss:$2 sm:$0x3] %vm1828, %v1145
    %s2674 = scalar_lea.vmem [#allocation5], 1692
    %2675 = vst.msk [vmem:[%s2674] ss:$2 sm:$0x3] %vm1828, %v1147
    %s2676 = scalar_lea.vmem [#allocation5], 1696
    %2677 = vst.msk [vmem:[%s2676] ss:$2 sm:$0x3] %vm1828, %v1148
    %s2678 = scalar_lea.vmem [#allocation5], 1700
    %2679 = vst.msk [vmem:[%s2678] ss:$2 sm:$0x3] %vm1828, %v1150
    %s2680 = scalar_lea.vmem [#allocation5], 1704
    %2681 = vst.msk [vmem:[%s2680] ss:$2 sm:$0x3] %vm1828, %v1152
    %s2682 = scalar_lea.vmem [#allocation5], 1708
    %2683 = vst.msk [vmem:[%s2682] ss:$2 sm:$0x3] %vm1828, %v1154
    %s2684 = scalar_lea.vmem [#allocation5], 1712
    %2685 = vst.msk [vmem:[%s2684] ss:$2 sm:$0x3] %vm1828, %v1156
    %s2686 = scalar_lea.vmem [#allocation5], 1716
    %2687 = vst.msk [vmem:[%s2686] ss:$2 sm:$0x3] %vm1828, %v1158
    %s2688 = scalar_lea.vmem [#allocation5], 1720
    %2689 = vst.msk [vmem:[%s2688] ss:$2 sm:$0x3] %vm1828, %v1160
    %s2690 = scalar_lea.vmem [#allocation5], 1724
    %2691 = vst.msk [vmem:[%s2690] ss:$2 sm:$0x3] %vm1828, %v1162
    %s2692 = scalar_lea.vmem [#allocation5], 1728
    %2693 = vst.msk [vmem:[%s2692] ss:$2 sm:$0x3] %vm1828, %v1163
    %s2694 = scalar_lea.vmem [#allocation5], 1732
    %2695 = vst.msk [vmem:[%s2694] ss:$2 sm:$0x3] %vm1828, %v1165
    %s2696 = scalar_lea.vmem [#allocation5], 1736
    %2697 = vst.msk [vmem:[%s2696] ss:$2 sm:$0x3] %vm1828, %v1167
    %s2698 = scalar_lea.vmem [#allocation5], 1740
    %2699 = vst.msk [vmem:[%s2698] ss:$2 sm:$0x3] %vm1828, %v1169
    %s2700 = scalar_lea.vmem [#allocation5], 1744
    %2701 = vst.msk [vmem:[%s2700] ss:$2 sm:$0x3] %vm1828, %v1171
    %s2702 = scalar_lea.vmem [#allocation5], 1748
    %2703 = vst.msk [vmem:[%s2702] ss:$2 sm:$0x3] %vm1828, %v1173
    %s2704 = scalar_lea.vmem [#allocation5], 1752
    %2705 = vst.msk [vmem:[%s2704] ss:$2 sm:$0x3] %vm1828, %v1175
    %s2706 = scalar_lea.vmem [#allocation5], 1756
    %2707 = vst.msk [vmem:[%s2706] ss:$2 sm:$0x3] %vm1828, %v1177
    %s2708 = scalar_lea.vmem [#allocation5], 1760
    %2709 = vst.msk [vmem:[%s2708] ss:$2 sm:$0x3] %vm1828, %v1178
    %s2710 = scalar_lea.vmem [#allocation5], 1764
    %2711 = vst.msk [vmem:[%s2710] ss:$2 sm:$0x3] %vm1828, %v1180
    %s2712 = scalar_lea.vmem [#allocation5], 1768
    %2713 = vst.msk [vmem:[%s2712] ss:$2 sm:$0x3] %vm1828, %v1182
    %s2714 = scalar_lea.vmem [#allocation5], 1772
    %2715 = vst.msk [vmem:[%s2714] ss:$2 sm:$0x3] %vm1828, %v1184
    %s2716 = scalar_lea.vmem [#allocation5], 1776
    %2717 = vst.msk [vmem:[%s2716] ss:$2 sm:$0x3] %vm1828, %v1186
    %s2718 = scalar_lea.vmem [#allocation5], 1780
    %2719 = vst.msk [vmem:[%s2718] ss:$2 sm:$0x3] %vm1828, %v1188
    %s2720 = scalar_lea.vmem [#allocation5], 1784
    %2721 = vst.msk [vmem:[%s2720] ss:$2 sm:$0x3] %vm1828, %v1190
    %s2722 = scalar_lea.vmem [#allocation5], 1788
    %2723 = vst.msk [vmem:[%s2722] ss:$2 sm:$0x3] %vm1828, %v1192
    %s2724 = scalar_lea.vmem [#allocation5], 1792
    %2725 = vst.msk [vmem:[%s2724] ss:$2 sm:$0x3] %vm1828, %v1193
    %s2726 = scalar_lea.vmem [#allocation5], 1796
    %2727 = vst.msk [vmem:[%s2726] ss:$2 sm:$0x3] %vm1828, %v1195
    %s2728 = scalar_lea.vmem [#allocation5], 1800
    %2729 = vst.msk [vmem:[%s2728] ss:$2 sm:$0x3] %vm1828, %v1197
    %s2730 = scalar_lea.vmem [#allocation5], 1804
    %2731 = vst.msk [vmem:[%s2730] ss:$2 sm:$0x3] %vm1828, %v1199
    %s2732 = scalar_lea.vmem [#allocation5], 1808
    %2733 = vst.msk [vmem:[%s2732] ss:$2 sm:$0x3] %vm1828, %v1201
    %s2734 = scalar_lea.vmem [#allocation5], 1812
    %2735 = vst.msk [vmem:[%s2734] ss:$2 sm:$0x3] %vm1828, %v1203
    %s2736 = scalar_lea.vmem [#allocation5], 1816
    %2737 = vst.msk [vmem:[%s2736] ss:$2 sm:$0x3] %vm1828, %v1205
    %s2738 = scalar_lea.vmem [#allocation5], 1820
    %2739 = vst.msk [vmem:[%s2738] ss:$2 sm:$0x3] %vm1828, %v1207
    %s2740 = scalar_lea.vmem [#allocation5], 1824
    %2741 = vst.msk [vmem:[%s2740] ss:$2 sm:$0x3] %vm1828, %v1208
    %s2742 = scalar_lea.vmem [#allocation5], 1828
    %2743 = vst.msk [vmem:[%s2742] ss:$2 sm:$0x3] %vm1828, %v1210
    %s2744 = scalar_lea.vmem [#allocation5], 1832
    %2745 = vst.msk [vmem:[%s2744] ss:$2 sm:$0x3] %vm1828, %v1212
    %s2746 = scalar_lea.vmem [#allocation5], 1836
    %2747 = vst.msk [vmem:[%s2746] ss:$2 sm:$0x3] %vm1828, %v1214
    %s2748 = scalar_lea.vmem [#allocation5], 1840
    %2749 = vst.msk [vmem:[%s2748] ss:$2 sm:$0x3] %vm1828, %v1216
    %s2750 = scalar_lea.vmem [#allocation5], 1844
    %2751 = vst.msk [vmem:[%s2750] ss:$2 sm:$0x3] %vm1828, %v1218
    %s2752 = scalar_lea.vmem [#allocation5], 1848
    %2753 = vst.msk [vmem:[%s2752] ss:$2 sm:$0x3] %vm1828, %v1220
    %s2754 = scalar_lea.vmem [#allocation5], 1852
    %2755 = vst.msk [vmem:[%s2754] ss:$2 sm:$0x3] %vm1828, %v1222
    %s2756 = scalar_lea.vmem [#allocation5], 1856
    %2757 = vst.msk [vmem:[%s2756] ss:$2 sm:$0x3] %vm1828, %v1223
    %s2758 = scalar_lea.vmem [#allocation5], 1860
    %2759 = vst.msk [vmem:[%s2758] ss:$2 sm:$0x3] %vm1828, %v1225
    %s2760 = scalar_lea.vmem [#allocation5], 1864
    %2761 = vst.msk [vmem:[%s2760] ss:$2 sm:$0x3] %vm1828, %v1227
    %s2762 = scalar_lea.vmem [#allocation5], 1868
    %2763 = vst.msk [vmem:[%s2762] ss:$2 sm:$0x3] %vm1828, %v1229
    %s2764 = scalar_lea.vmem [#allocation5], 1872
    %2765 = vst.msk [vmem:[%s2764] ss:$2 sm:$0x3] %vm1828, %v1231
    %s2766 = scalar_lea.vmem [#allocation5], 1876
    %2767 = vst.msk [vmem:[%s2766] ss:$2 sm:$0x3] %vm1828, %v1233
    %s2768 = scalar_lea.vmem [#allocation5], 1880
    %2769 = vst.msk [vmem:[%s2768] ss:$2 sm:$0x3] %vm1828, %v1235
    %s2770 = scalar_lea.vmem [#allocation5], 1884
    %2771 = vst.msk [vmem:[%s2770] ss:$2 sm:$0x3] %vm1828, %v1237
    %s2772 = scalar_lea.vmem [#allocation5], 1888
    %2773 = vst.msk [vmem:[%s2772] ss:$2 sm:$0x3] %vm1828, %v1238
    %s2774 = scalar_lea.vmem [#allocation5], 1892
    %2775 = vst.msk [vmem:[%s2774] ss:$2 sm:$0x3] %vm1828, %v1240
    %s2776 = scalar_lea.vmem [#allocation5], 1896
    %2777 = vst.msk [vmem:[%s2776] ss:$2 sm:$0x3] %vm1828, %v1242
    %s2778 = scalar_lea.vmem [#allocation5], 1900
    %2779 = vst.msk [vmem:[%s2778] ss:$2 sm:$0x3] %vm1828, %v1244
    %s2780 = scalar_lea.vmem [#allocation5], 1904
    %2781 = vst.msk [vmem:[%s2780] ss:$2 sm:$0x3] %vm1828, %v1246
    %s2782 = scalar_lea.vmem [#allocation5], 1908
    %2783 = vst.msk [vmem:[%s2782] ss:$2 sm:$0x3] %vm1828, %v1248
    %s2784 = scalar_lea.vmem [#allocation5], 1912
    %2785 = vst.msk [vmem:[%s2784] ss:$2 sm:$0x3] %vm1828, %v1250
    %s2786 = scalar_lea.vmem [#allocation5], 1916
    %2787 = vst.msk [vmem:[%s2786] ss:$2 sm:$0x3] %vm1828, %v1252
    %s2788 = scalar_lea.vmem [#allocation5], 1920
    %2789 = vst.msk [vmem:[%s2788] ss:$2 sm:$0x3] %vm1828, %v1253
    %s2790 = scalar_lea.vmem [#allocation5], 1924
    %2791 = vst.msk [vmem:[%s2790] ss:$2 sm:$0x3] %vm1828, %v1255
    %s2792 = scalar_lea.vmem [#allocation5], 1928
    %2793 = vst.msk [vmem:[%s2792] ss:$2 sm:$0x3] %vm1828, %v1257
    %s2794 = scalar_lea.vmem [#allocation5], 1932
    %2795 = vst.msk [vmem:[%s2794] ss:$2 sm:$0x3] %vm1828, %v1259
    %s2796 = scalar_lea.vmem [#allocation5], 1936
    %2797 = vst.msk [vmem:[%s2796] ss:$2 sm:$0x3] %vm1828, %v1261
    %s2798 = scalar_lea.vmem [#allocation5], 1940
    %2799 = vst.msk [vmem:[%s2798] ss:$2 sm:$0x3] %vm1828, %v1263
    %s2800 = scalar_lea.vmem [#allocation5], 1944
    %2801 = vst.msk [vmem:[%s2800] ss:$2 sm:$0x3] %vm1828, %v1265
    %s2802 = scalar_lea.vmem [#allocation5], 1948
    %2803 = vst.msk [vmem:[%s2802] ss:$2 sm:$0x3] %vm1828, %v1267
    %s2804 = scalar_lea.vmem [#allocation5], 1952
    %2805 = vst.msk [vmem:[%s2804] ss:$2 sm:$0x3] %vm1828, %v1268
    %s2806 = scalar_lea.vmem [#allocation5], 1956
    %2807 = vst.msk [vmem:[%s2806] ss:$2 sm:$0x3] %vm1828, %v1270
    %s2808 = scalar_lea.vmem [#allocation5], 1960
    %2809 = vst.msk [vmem:[%s2808] ss:$2 sm:$0x3] %vm1828, %v1272
    %s2810 = scalar_lea.vmem [#allocation5], 1964
    %2811 = vst.msk [vmem:[%s2810] ss:$2 sm:$0x3] %vm1828, %v1274
    %s2812 = scalar_lea.vmem [#allocation5], 1968
    %2813 = vst.msk [vmem:[%s2812] ss:$2 sm:$0x3] %vm1828, %v1276
    %s2814 = scalar_lea.vmem [#allocation5], 1972
    %2815 = vst.msk [vmem:[%s2814] ss:$2 sm:$0x3] %vm1828, %v1278
    %s2816 = scalar_lea.vmem [#allocation5], 1976
    %2817 = vst.msk [vmem:[%s2816] ss:$2 sm:$0x3] %vm1828, %v1280
    %s2818 = scalar_lea.vmem [#allocation5], 1980
    %2819 = vst.msk [vmem:[%s2818] ss:$2 sm:$0x3] %vm1828, %v1282
    %s2820 = scalar_lea.vmem [#allocation5], 1984
    %2821 = vst.msk [vmem:[%s2820] ss:$2 sm:$0x3] %vm1828, %v1283
    %s2822 = scalar_lea.vmem [#allocation5], 1988
    %2823 = vst.msk [vmem:[%s2822] ss:$2 sm:$0x3] %vm1828, %v1285
    %s2824 = scalar_lea.vmem [#allocation5], 1992
    %2825 = vst.msk [vmem:[%s2824] ss:$2 sm:$0x3] %vm1828, %v1287
    %s2826 = scalar_lea.vmem [#allocation5], 1996
    %2827 = vst.msk [vmem:[%s2826] ss:$2 sm:$0x3] %vm1828, %v1289
    %s2828 = scalar_lea.vmem [#allocation5], 2000
    %2829 = vst.msk [vmem:[%s2828] ss:$2 sm:$0x3] %vm1828, %v1291
    %s2830 = scalar_lea.vmem [#allocation5], 2004
    %2831 = vst.msk [vmem:[%s2830] ss:$2 sm:$0x3] %vm1828, %v1293
    %s2832 = scalar_lea.vmem [#allocation5], 2008
    %2833 = vst.msk [vmem:[%s2832] ss:$2 sm:$0x3] %vm1828, %v1295
    %s2834 = scalar_lea.vmem [#allocation5], 2012
    %2835 = vst.msk [vmem:[%s2834] ss:$2 sm:$0x3] %vm1828, %v1297
    %s2836 = scalar_lea.vmem [#allocation5], 2016
    %2837 = vst.msk [vmem:[%s2836] ss:$2 sm:$0x3] %vm1828, %v1298
    %s2838 = scalar_lea.vmem [#allocation5], 2020
    %2839 = vst.msk [vmem:[%s2838] ss:$2 sm:$0x3] %vm1828, %v1300
    %s2840 = scalar_lea.vmem [#allocation5], 2024
    %2841 = vst.msk [vmem:[%s2840] ss:$2 sm:$0x3] %vm1828, %v1302
    %s2842 = scalar_lea.vmem [#allocation5], 2028
    %2843 = vst.msk [vmem:[%s2842] ss:$2 sm:$0x3] %vm1828, %v1304
    %s2844 = scalar_lea.vmem [#allocation5], 2032
    %2845 = vst.msk [vmem:[%s2844] ss:$2 sm:$0x3] %vm1828, %v1306
    %s2846 = scalar_lea.vmem [#allocation5], 2036
    %2847 = vst.msk [vmem:[%s2846] ss:$2 sm:$0x3] %vm1828, %v1308
    %s2848 = scalar_lea.vmem [#allocation5], 2040
    %2849 = vst.msk [vmem:[%s2848] ss:$2 sm:$0x3] %vm1828, %v1310
    %s2850 = scalar_lea.vmem [#allocation5], 2044
    %2851 = vst.msk [vmem:[%s2850] ss:$2 sm:$0x3] %vm1828, %v1312
    %s2852 = scalar_lea.vmem [#allocation5], 1
    %2853 = vst.msk [vmem:[%s2852] ss:$2 sm:$0x3] %vm1828, %v346
    %s2854 = scalar_lea.vmem [#allocation5], 5
    %2855 = vst.msk [vmem:[%s2854] ss:$2 sm:$0x3] %vm1828, %v349
    %s2856 = scalar_lea.vmem [#allocation5], 9
    %2857 = vst.msk [vmem:[%s2856] ss:$2 sm:$0x3] %vm1828, %v352
    %s2858 = scalar_lea.vmem [#allocation5], 13
    %2859 = vst.msk [vmem:[%s2858] ss:$2 sm:$0x3] %vm1828, %v355
    %s2860 = scalar_lea.vmem [#allocation5], 17
    %2861 = vst.msk [vmem:[%s2860] ss:$2 sm:$0x3] %vm1828, %v358
    %s2862 = scalar_lea.vmem [#allocation5], 21
    %2863 = vst.msk [vmem:[%s2862] ss:$2 sm:$0x3] %vm1828, %v361
    %s2864 = scalar_lea.vmem [#allocation5], 25
    %2865 = vst.msk [vmem:[%s2864] ss:$2 sm:$0x3] %vm1828, %v364
    %s2866 = scalar_lea.vmem [#allocation5], 29
    %2867 = vst.msk [vmem:[%s2866] ss:$2 sm:$0x3] %vm1828, %v367
    %s2868 = scalar_lea.vmem [#allocation5], 33
    %2869 = vst.msk [vmem:[%s2868] ss:$2 sm:$0x3] %vm1828, %v368
    %s2870 = scalar_lea.vmem [#allocation5], 37
    %2871 = vst.msk [vmem:[%s2870] ss:$2 sm:$0x3] %vm1828, %v370
    %s2872 = scalar_lea.vmem [#allocation5], 41
    %2873 = vst.msk [vmem:[%s2872] ss:$2 sm:$0x3] %vm1828, %v372
    %s2874 = scalar_lea.vmem [#allocation5], 45
    %2875 = vst.msk [vmem:[%s2874] ss:$2 sm:$0x3] %vm1828, %v374
    %s2876 = scalar_lea.vmem [#allocation5], 49
    %2877 = vst.msk [vmem:[%s2876] ss:$2 sm:$0x3] %vm1828, %v376
    %s2878 = scalar_lea.vmem [#allocation5], 53
    %2879 = vst.msk [vmem:[%s2878] ss:$2 sm:$0x3] %vm1828, %v378
    %s2880 = scalar_lea.vmem [#allocation5], 57
    %2881 = vst.msk [vmem:[%s2880] ss:$2 sm:$0x3] %vm1828, %v380
    %s2882 = scalar_lea.vmem [#allocation5], 61
    %2883 = vst.msk [vmem:[%s2882] ss:$2 sm:$0x3] %vm1828, %v382
    %s2884 = scalar_lea.vmem [#allocation5], 65
    %2885 = vst.msk [vmem:[%s2884] ss:$2 sm:$0x3] %vm1828, %v383
    %s2886 = scalar_lea.vmem [#allocation5], 69
    %2887 = vst.msk [vmem:[%s2886] ss:$2 sm:$0x3] %vm1828, %v385
    %s2888 = scalar_lea.vmem [#allocation5], 73
    %2889 = vst.msk [vmem:[%s2888] ss:$2 sm:$0x3] %vm1828, %v387
    %s2890 = scalar_lea.vmem [#allocation5], 77
    %2891 = vst.msk [vmem:[%s2890] ss:$2 sm:$0x3] %vm1828, %v389
    %s2892 = scalar_lea.vmem [#allocation5], 81
    %2893 = vst.msk [vmem:[%s2892] ss:$2 sm:$0x3] %vm1828, %v391
    %s2894 = scalar_lea.vmem [#allocation5], 85
    %2895 = vst.msk [vmem:[%s2894] ss:$2 sm:$0x3] %vm1828, %v393
    %s2896 = scalar_lea.vmem [#allocation5], 89
    %2897 = vst.msk [vmem:[%s2896] ss:$2 sm:$0x3] %vm1828, %v395
    %s2898 = scalar_lea.vmem [#allocation5], 93
    %2899 = vst.msk [vmem:[%s2898] ss:$2 sm:$0x3] %vm1828, %v397
    %s2900 = scalar_lea.vmem [#allocation5], 97
    %2901 = vst.msk [vmem:[%s2900] ss:$2 sm:$0x3] %vm1828, %v398
    %s2902 = scalar_lea.vmem [#allocation5], 101
    %2903 = vst.msk [vmem:[%s2902] ss:$2 sm:$0x3] %vm1828, %v400
    %s2904 = scalar_lea.vmem [#allocation5], 105
    %2905 = vst.msk [vmem:[%s2904] ss:$2 sm:$0x3] %vm1828, %v402
    %s2906 = scalar_lea.vmem [#allocation5], 109
    %2907 = vst.msk [vmem:[%s2906] ss:$2 sm:$0x3] %vm1828, %v404
    %s2908 = scalar_lea.vmem [#allocation5], 113
    %2909 = vst.msk [vmem:[%s2908] ss:$2 sm:$0x3] %vm1828, %v406
    %s2910 = scalar_lea.vmem [#allocation5], 117
    %2911 = vst.msk [vmem:[%s2910] ss:$2 sm:$0x3] %vm1828, %v408
    %s2912 = scalar_lea.vmem [#allocation5], 121
    %2913 = vst.msk [vmem:[%s2912] ss:$2 sm:$0x3] %vm1828, %v410
    %s2914 = scalar_lea.vmem [#allocation5], 125
    %2915 = vst.msk [vmem:[%s2914] ss:$2 sm:$0x3] %vm1828, %v412
    %s2916 = scalar_lea.vmem [#allocation5], 129
    %2917 = vst.msk [vmem:[%s2916] ss:$2 sm:$0x3] %vm1828, %v413
    %s2918 = scalar_lea.vmem [#allocation5], 133
    %2919 = vst.msk [vmem:[%s2918] ss:$2 sm:$0x3] %vm1828, %v415
    %s2920 = scalar_lea.vmem [#allocation5], 137
    %2921 = vst.msk [vmem:[%s2920] ss:$2 sm:$0x3] %vm1828, %v417
    %s2922 = scalar_lea.vmem [#allocation5], 141
    %2923 = vst.msk [vmem:[%s2922] ss:$2 sm:$0x3] %vm1828, %v419
    %s2924 = scalar_lea.vmem [#allocation5], 145
    %2925 = vst.msk [vmem:[%s2924] ss:$2 sm:$0x3] %vm1828, %v421
    %s2926 = scalar_lea.vmem [#allocation5], 149
    %2927 = vst.msk [vmem:[%s2926] ss:$2 sm:$0x3] %vm1828, %v423
    %s2928 = scalar_lea.vmem [#allocation5], 153
    %2929 = vst.msk [vmem:[%s2928] ss:$2 sm:$0x3] %vm1828, %v425
    %s2930 = scalar_lea.vmem [#allocation5], 157
    %2931 = vst.msk [vmem:[%s2930] ss:$2 sm:$0x3] %vm1828, %v427
    %s2932 = scalar_lea.vmem [#allocation5], 161
    %2933 = vst.msk [vmem:[%s2932] ss:$2 sm:$0x3] %vm1828, %v428
    %s2934 = scalar_lea.vmem [#allocation5], 165
    %2935 = vst.msk [vmem:[%s2934] ss:$2 sm:$0x3] %vm1828, %v430
    %s2936 = scalar_lea.vmem [#allocation5], 169
    %2937 = vst.msk [vmem:[%s2936] ss:$2 sm:$0x3] %vm1828, %v432
    %s2938 = scalar_lea.vmem [#allocation5], 173
    %2939 = vst.msk [vmem:[%s2938] ss:$2 sm:$0x3] %vm1828, %v434
    %s2940 = scalar_lea.vmem [#allocation5], 177
    %2941 = vst.msk [vmem:[%s2940] ss:$2 sm:$0x3] %vm1828, %v436
    %s2942 = scalar_lea.vmem [#allocation5], 181
    %2943 = vst.msk [vmem:[%s2942] ss:$2 sm:$0x3] %vm1828, %v438
    %s2944 = scalar_lea.vmem [#allocation5], 185
    %2945 = vst.msk [vmem:[%s2944] ss:$2 sm:$0x3] %vm1828, %v440
    %s2946 = scalar_lea.vmem [#allocation5], 189
    %2947 = vst.msk [vmem:[%s2946] ss:$2 sm:$0x3] %vm1828, %v442
    %s2948 = scalar_lea.vmem [#allocation5], 193
    %2949 = vst.msk [vmem:[%s2948] ss:$2 sm:$0x3] %vm1828, %v443
    %s2950 = scalar_lea.vmem [#allocation5], 197
    %2951 = vst.msk [vmem:[%s2950] ss:$2 sm:$0x3] %vm1828, %v445
    %s2952 = scalar_lea.vmem [#allocation5], 201
    %2953 = vst.msk [vmem:[%s2952] ss:$2 sm:$0x3] %vm1828, %v447
    %s2954 = scalar_lea.vmem [#allocation5], 205
    %2955 = vst.msk [vmem:[%s2954] ss:$2 sm:$0x3] %vm1828, %v449
    %s2956 = scalar_lea.vmem [#allocation5], 209
    %2957 = vst.msk [vmem:[%s2956] ss:$2 sm:$0x3] %vm1828, %v451
    %s2958 = scalar_lea.vmem [#allocation5], 213
    %2959 = vst.msk [vmem:[%s2958] ss:$2 sm:$0x3] %vm1828, %v453
    %s2960 = scalar_lea.vmem [#allocation5], 217
    %2961 = vst.msk [vmem:[%s2960] ss:$2 sm:$0x3] %vm1828, %v455
    %s2962 = scalar_lea.vmem [#allocation5], 221
    %2963 = vst.msk [vmem:[%s2962] ss:$2 sm:$0x3] %vm1828, %v457
    %s2964 = scalar_lea.vmem [#allocation5], 225
    %2965 = vst.msk [vmem:[%s2964] ss:$2 sm:$0x3] %vm1828, %v458
    %s2966 = scalar_lea.vmem [#allocation5], 229
    %2967 = vst.msk [vmem:[%s2966] ss:$2 sm:$0x3] %vm1828, %v460
    %s2968 = scalar_lea.vmem [#allocation5], 233
    %2969 = vst.msk [vmem:[%s2968] ss:$2 sm:$0x3] %vm1828, %v462
    %s2970 = scalar_lea.vmem [#allocation5], 237
    %2971 = vst.msk [vmem:[%s2970] ss:$2 sm:$0x3] %vm1828, %v464
    %s2972 = scalar_lea.vmem [#allocation5], 241
    %2973 = vst.msk [vmem:[%s2972] ss:$2 sm:$0x3] %vm1828, %v466
    %s2974 = scalar_lea.vmem [#allocation5], 245
    %2975 = vst.msk [vmem:[%s2974] ss:$2 sm:$0x3] %vm1828, %v468
    %s2976 = scalar_lea.vmem [#allocation5], 249
    %2977 = vst.msk [vmem:[%s2976] ss:$2 sm:$0x3] %vm1828, %v470
    %s2978 = scalar_lea.vmem [#allocation5], 253
    %2979 = vst.msk [vmem:[%s2978] ss:$2 sm:$0x3] %vm1828, %v472
    %s2980 = scalar_lea.vmem [#allocation5], 257
    %2981 = vst.msk [vmem:[%s2980] ss:$2 sm:$0x3] %vm1828, %v473
    %s2982 = scalar_lea.vmem [#allocation5], 261
    %2983 = vst.msk [vmem:[%s2982] ss:$2 sm:$0x3] %vm1828, %v475
    %s2984 = scalar_lea.vmem [#allocation5], 265
    %2985 = vst.msk [vmem:[%s2984] ss:$2 sm:$0x3] %vm1828, %v477
    %s2986 = scalar_lea.vmem [#allocation5], 269
    %2987 = vst.msk [vmem:[%s2986] ss:$2 sm:$0x3] %vm1828, %v479
    %s2988 = scalar_lea.vmem [#allocation5], 273
    %2989 = vst.msk [vmem:[%s2988] ss:$2 sm:$0x3] %vm1828, %v481
    %s2990 = scalar_lea.vmem [#allocation5], 277
    %2991 = vst.msk [vmem:[%s2990] ss:$2 sm:$0x3] %vm1828, %v483
    %s2992 = scalar_lea.vmem [#allocation5], 281
    %2993 = vst.msk [vmem:[%s2992] ss:$2 sm:$0x3] %vm1828, %v485
    %s2994 = scalar_lea.vmem [#allocation5], 285
    %2995 = vst.msk [vmem:[%s2994] ss:$2 sm:$0x3] %vm1828, %v487
    %s2996 = scalar_lea.vmem [#allocation5], 289
    %2997 = vst.msk [vmem:[%s2996] ss:$2 sm:$0x3] %vm1828, %v488
    %s2998 = scalar_lea.vmem [#allocation5], 293
    %2999 = vst.msk [vmem:[%s2998] ss:$2 sm:$0x3] %vm1828, %v490
    %s3000 = scalar_lea.vmem [#allocation5], 297
    %3001 = vst.msk [vmem:[%s3000] ss:$2 sm:$0x3] %vm1828, %v492
    %s3002 = scalar_lea.vmem [#allocation5], 301
    %3003 = vst.msk [vmem:[%s3002] ss:$2 sm:$0x3] %vm1828, %v494
    %s3004 = scalar_lea.vmem [#allocation5], 305
    %3005 = vst.msk [vmem:[%s3004] ss:$2 sm:$0x3] %vm1828, %v496
    %s3006 = scalar_lea.vmem [#allocation5], 309
    %3007 = vst.msk [vmem:[%s3006] ss:$2 sm:$0x3] %vm1828, %v498
    %s3008 = scalar_lea.vmem [#allocation5], 313
    %3009 = vst.msk [vmem:[%s3008] ss:$2 sm:$0x3] %vm1828, %v500
    %s3010 = scalar_lea.vmem [#allocation5], 317
    %3011 = vst.msk [vmem:[%s3010] ss:$2 sm:$0x3] %vm1828, %v502
    %s3012 = scalar_lea.vmem [#allocation5], 321
    %3013 = vst.msk [vmem:[%s3012] ss:$2 sm:$0x3] %vm1828, %v503
    %s3014 = scalar_lea.vmem [#allocation5], 325
    %3015 = vst.msk [vmem:[%s3014] ss:$2 sm:$0x3] %vm1828, %v505
    %s3016 = scalar_lea.vmem [#allocation5], 329
    %3017 = vst.msk [vmem:[%s3016] ss:$2 sm:$0x3] %vm1828, %v507
    %s3018 = scalar_lea.vmem [#allocation5], 333
    %3019 = vst.msk [vmem:[%s3018] ss:$2 sm:$0x3] %vm1828, %v509
    %s3020 = scalar_lea.vmem [#allocation5], 337
    %3021 = vst.msk [vmem:[%s3020] ss:$2 sm:$0x3] %vm1828, %v511
    %s3022 = scalar_lea.vmem [#allocation5], 341
    %3023 = vst.msk [vmem:[%s3022] ss:$2 sm:$0x3] %vm1828, %v513
    %s3024 = scalar_lea.vmem [#allocation5], 345
    %3025 = vst.msk [vmem:[%s3024] ss:$2 sm:$0x3] %vm1828, %v515
    %s3026 = scalar_lea.vmem [#allocation5], 349
    %3027 = vst.msk [vmem:[%s3026] ss:$2 sm:$0x3] %vm1828, %v517
    %s3028 = scalar_lea.vmem [#allocation5], 353
    %3029 = vst.msk [vmem:[%s3028] ss:$2 sm:$0x3] %vm1828, %v518
    %s3030 = scalar_lea.vmem [#allocation5], 357
    %3031 = vst.msk [vmem:[%s3030] ss:$2 sm:$0x3] %vm1828, %v520
    %s3032 = scalar_lea.vmem [#allocation5], 361
    %3033 = vst.msk [vmem:[%s3032] ss:$2 sm:$0x3] %vm1828, %v522
    %s3034 = scalar_lea.vmem [#allocation5], 365
    %3035 = vst.msk [vmem:[%s3034] ss:$2 sm:$0x3] %vm1828, %v524
    %s3036 = scalar_lea.vmem [#allocation5], 369
    %3037 = vst.msk [vmem:[%s3036] ss:$2 sm:$0x3] %vm1828, %v526
    %s3038 = scalar_lea.vmem [#allocation5], 373
    %3039 = vst.msk [vmem:[%s3038] ss:$2 sm:$0x3] %vm1828, %v528
    %s3040 = scalar_lea.vmem [#allocation5], 377
    %3041 = vst.msk [vmem:[%s3040] ss:$2 sm:$0x3] %vm1828, %v530
    %s3042 = scalar_lea.vmem [#allocation5], 381
    %3043 = vst.msk [vmem:[%s3042] ss:$2 sm:$0x3] %vm1828, %v532
    %s3044 = scalar_lea.vmem [#allocation5], 385
    %3045 = vst.msk [vmem:[%s3044] ss:$2 sm:$0x3] %vm1828, %v533
    %s3046 = scalar_lea.vmem [#allocation5], 389
    %3047 = vst.msk [vmem:[%s3046] ss:$2 sm:$0x3] %vm1828, %v535
    %s3048 = scalar_lea.vmem [#allocation5], 393
    %3049 = vst.msk [vmem:[%s3048] ss:$2 sm:$0x3] %vm1828, %v537
    %s3050 = scalar_lea.vmem [#allocation5], 397
    %3051 = vst.msk [vmem:[%s3050] ss:$2 sm:$0x3] %vm1828, %v539
    %s3052 = scalar_lea.vmem [#allocation5], 401
    %3053 = vst.msk [vmem:[%s3052] ss:$2 sm:$0x3] %vm1828, %v541
    %s3054 = scalar_lea.vmem [#allocation5], 405
    %3055 = vst.msk [vmem:[%s3054] ss:$2 sm:$0x3] %vm1828, %v543
    %s3056 = scalar_lea.vmem [#allocation5], 409
    %3057 = vst.msk [vmem:[%s3056] ss:$2 sm:$0x3] %vm1828, %v545
    %s3058 = scalar_lea.vmem [#allocation5], 413
    %3059 = vst.msk [vmem:[%s3058] ss:$2 sm:$0x3] %vm1828, %v547
    %s3060 = scalar_lea.vmem [#allocation5], 417
    %3061 = vst.msk [vmem:[%s3060] ss:$2 sm:$0x3] %vm1828, %v548
    %s3062 = scalar_lea.vmem [#allocation5], 421
    %3063 = vst.msk [vmem:[%s3062] ss:$2 sm:$0x3] %vm1828, %v550
    %s3064 = scalar_lea.vmem [#allocation5], 425
    %3065 = vst.msk [vmem:[%s3064] ss:$2 sm:$0x3] %vm1828, %v552
    %s3066 = scalar_lea.vmem [#allocation5], 429
    %3067 = vst.msk [vmem:[%s3066] ss:$2 sm:$0x3] %vm1828, %v554
    %s3068 = scalar_lea.vmem [#allocation5], 433
    %3069 = vst.msk [vmem:[%s3068] ss:$2 sm:$0x3] %vm1828, %v556
    %s3070 = scalar_lea.vmem [#allocation5], 437
    %3071 = vst.msk [vmem:[%s3070] ss:$2 sm:$0x3] %vm1828, %v558
    %s3072 = scalar_lea.vmem [#allocation5], 441
    %3073 = vst.msk [vmem:[%s3072] ss:$2 sm:$0x3] %vm1828, %v560
    %s3074 = scalar_lea.vmem [#allocation5], 445
    %3075 = vst.msk [vmem:[%s3074] ss:$2 sm:$0x3] %vm1828, %v562
    %s3076 = scalar_lea.vmem [#allocation5], 449
    %3077 = vst.msk [vmem:[%s3076] ss:$2 sm:$0x3] %vm1828, %v563
    %s3078 = scalar_lea.vmem [#allocation5], 453
    %3079 = vst.msk [vmem:[%s3078] ss:$2 sm:$0x3] %vm1828, %v565
    %s3080 = scalar_lea.vmem [#allocation5], 457
    %3081 = vst.msk [vmem:[%s3080] ss:$2 sm:$0x3] %vm1828, %v567
    %s3082 = scalar_lea.vmem [#allocation5], 461
    %3083 = vst.msk [vmem:[%s3082] ss:$2 sm:$0x3] %vm1828, %v569
    %s3084 = scalar_lea.vmem [#allocation5], 465
    %3085 = vst.msk [vmem:[%s3084] ss:$2 sm:$0x3] %vm1828, %v571
    %s3086 = scalar_lea.vmem [#allocation5], 469
    %3087 = vst.msk [vmem:[%s3086] ss:$2 sm:$0x3] %vm1828, %v573
    %s3088 = scalar_lea.vmem [#allocation5], 473
    %3089 = vst.msk [vmem:[%s3088] ss:$2 sm:$0x3] %vm1828, %v575
    %s3090 = scalar_lea.vmem [#allocation5], 477
    %3091 = vst.msk [vmem:[%s3090] ss:$2 sm:$0x3] %vm1828, %v577
    %s3092 = scalar_lea.vmem [#allocation5], 481
    %3093 = vst.msk [vmem:[%s3092] ss:$2 sm:$0x3] %vm1828, %v578
    %s3094 = scalar_lea.vmem [#allocation5], 485
    %3095 = vst.msk [vmem:[%s3094] ss:$2 sm:$0x3] %vm1828, %v580
    %s3096 = scalar_lea.vmem [#allocation5], 489
    %3097 = vst.msk [vmem:[%s3096] ss:$2 sm:$0x3] %vm1828, %v582
    %s3098 = scalar_lea.vmem [#allocation5], 493
    %3099 = vst.msk [vmem:[%s3098] ss:$2 sm:$0x3] %vm1828, %v584
    %s3100 = scalar_lea.vmem [#allocation5], 497
    %3101 = vst.msk [vmem:[%s3100] ss:$2 sm:$0x3] %vm1828, %v586
    %s3102 = scalar_lea.vmem [#allocation5], 501
    %3103 = vst.msk [vmem:[%s3102] ss:$2 sm:$0x3] %vm1828, %v588
    %s3104 = scalar_lea.vmem [#allocation5], 505
    %3105 = vst.msk [vmem:[%s3104] ss:$2 sm:$0x3] %vm1828, %v590
    %s3106 = scalar_lea.vmem [#allocation5], 509
    %3107 = vst.msk [vmem:[%s3106] ss:$2 sm:$0x3] %vm1828, %v592
    %s3108 = scalar_lea.vmem [#allocation5], 513
    %3109 = vst.msk [vmem:[%s3108] ss:$2 sm:$0x3] %vm1828, %v593
    %s3110 = scalar_lea.vmem [#allocation5], 517
    %3111 = vst.msk [vmem:[%s3110] ss:$2 sm:$0x3] %vm1828, %v595
    %s3112 = scalar_lea.vmem [#allocation5], 521
    %3113 = vst.msk [vmem:[%s3112] ss:$2 sm:$0x3] %vm1828, %v597
    %s3114 = scalar_lea.vmem [#allocation5], 525
    %3115 = vst.msk [vmem:[%s3114] ss:$2 sm:$0x3] %vm1828, %v599
    %s3116 = scalar_lea.vmem [#allocation5], 529
    %3117 = vst.msk [vmem:[%s3116] ss:$2 sm:$0x3] %vm1828, %v601
    %s3118 = scalar_lea.vmem [#allocation5], 533
    %3119 = vst.msk [vmem:[%s3118] ss:$2 sm:$0x3] %vm1828, %v603
    %s3120 = scalar_lea.vmem [#allocation5], 537
    %3121 = vst.msk [vmem:[%s3120] ss:$2 sm:$0x3] %vm1828, %v605
    %s3122 = scalar_lea.vmem [#allocation5], 541
    %3123 = vst.msk [vmem:[%s3122] ss:$2 sm:$0x3] %vm1828, %v607
    %s3124 = scalar_lea.vmem [#allocation5], 545
    %3125 = vst.msk [vmem:[%s3124] ss:$2 sm:$0x3] %vm1828, %v608
    %s3126 = scalar_lea.vmem [#allocation5], 549
    %3127 = vst.msk [vmem:[%s3126] ss:$2 sm:$0x3] %vm1828, %v610
    %s3128 = scalar_lea.vmem [#allocation5], 553
    %3129 = vst.msk [vmem:[%s3128] ss:$2 sm:$0x3] %vm1828, %v612
    %s3130 = scalar_lea.vmem [#allocation5], 557
    %3131 = vst.msk [vmem:[%s3130] ss:$2 sm:$0x3] %vm1828, %v614
    %s3132 = scalar_lea.vmem [#allocation5], 561
    %3133 = vst.msk [vmem:[%s3132] ss:$2 sm:$0x3] %vm1828, %v616
    %s3134 = scalar_lea.vmem [#allocation5], 565
    %3135 = vst.msk [vmem:[%s3134] ss:$2 sm:$0x3] %vm1828, %v618
    %s3136 = scalar_lea.vmem [#allocation5], 569
    %3137 = vst.msk [vmem:[%s3136] ss:$2 sm:$0x3] %vm1828, %v620
    %s3138 = scalar_lea.vmem [#allocation5], 573
    %3139 = vst.msk [vmem:[%s3138] ss:$2 sm:$0x3] %vm1828, %v622
    %s3140 = scalar_lea.vmem [#allocation5], 577
    %3141 = vst.msk [vmem:[%s3140] ss:$2 sm:$0x3] %vm1828, %v623
    %s3142 = scalar_lea.vmem [#allocation5], 581
    %3143 = vst.msk [vmem:[%s3142] ss:$2 sm:$0x3] %vm1828, %v625
    %s3144 = scalar_lea.vmem [#allocation5], 585
    %3145 = vst.msk [vmem:[%s3144] ss:$2 sm:$0x3] %vm1828, %v627
    %s3146 = scalar_lea.vmem [#allocation5], 589
    %3147 = vst.msk [vmem:[%s3146] ss:$2 sm:$0x3] %vm1828, %v629
    %s3148 = scalar_lea.vmem [#allocation5], 593
    %3149 = vst.msk [vmem:[%s3148] ss:$2 sm:$0x3] %vm1828, %v631
    %s3150 = scalar_lea.vmem [#allocation5], 597
    %3151 = vst.msk [vmem:[%s3150] ss:$2 sm:$0x3] %vm1828, %v633
    %s3152 = scalar_lea.vmem [#allocation5], 601
    %3153 = vst.msk [vmem:[%s3152] ss:$2 sm:$0x3] %vm1828, %v635
    %s3154 = scalar_lea.vmem [#allocation5], 605
    %3155 = vst.msk [vmem:[%s3154] ss:$2 sm:$0x3] %vm1828, %v637
    %s3156 = scalar_lea.vmem [#allocation5], 609
    %3157 = vst.msk [vmem:[%s3156] ss:$2 sm:$0x3] %vm1828, %v638
    %s3158 = scalar_lea.vmem [#allocation5], 613
    %3159 = vst.msk [vmem:[%s3158] ss:$2 sm:$0x3] %vm1828, %v640
    %s3160 = scalar_lea.vmem [#allocation5], 617
    %3161 = vst.msk [vmem:[%s3160] ss:$2 sm:$0x3] %vm1828, %v642
    %s3162 = scalar_lea.vmem [#allocation5], 621
    %3163 = vst.msk [vmem:[%s3162] ss:$2 sm:$0x3] %vm1828, %v644
    %s3164 = scalar_lea.vmem [#allocation5], 625
    %3165 = vst.msk [vmem:[%s3164] ss:$2 sm:$0x3] %vm1828, %v646
    %s3166 = scalar_lea.vmem [#allocation5], 629
    %3167 = vst.msk [vmem:[%s3166] ss:$2 sm:$0x3] %vm1828, %v648
    %s3168 = scalar_lea.vmem [#allocation5], 633
    %3169 = vst.msk [vmem:[%s3168] ss:$2 sm:$0x3] %vm1828, %v650
    %s3170 = scalar_lea.vmem [#allocation5], 637
    %3171 = vst.msk [vmem:[%s3170] ss:$2 sm:$0x3] %vm1828, %v652
    %s3172 = scalar_lea.vmem [#allocation5], 641
    %3173 = vst.msk [vmem:[%s3172] ss:$2 sm:$0x3] %vm1828, %v653
    %s3174 = scalar_lea.vmem [#allocation5], 645
    %3175 = vst.msk [vmem:[%s3174] ss:$2 sm:$0x3] %vm1828, %v655
    %s3176 = scalar_lea.vmem [#allocation5], 649
    %3177 = vst.msk [vmem:[%s3176] ss:$2 sm:$0x3] %vm1828, %v657
    %s3178 = scalar_lea.vmem [#allocation5], 653
    %3179 = vst.msk [vmem:[%s3178] ss:$2 sm:$0x3] %vm1828, %v659
    %s3180 = scalar_lea.vmem [#allocation5], 657
    %3181 = vst.msk [vmem:[%s3180] ss:$2 sm:$0x3] %vm1828, %v661
    %s3182 = scalar_lea.vmem [#allocation5], 661
    %3183 = vst.msk [vmem:[%s3182] ss:$2 sm:$0x3] %vm1828, %v663
    %s3184 = scalar_lea.vmem [#allocation5], 665
    %3185 = vst.msk [vmem:[%s3184] ss:$2 sm:$0x3] %vm1828, %v665
    %s3186 = scalar_lea.vmem [#allocation5], 669
    %3187 = vst.msk [vmem:[%s3186] ss:$2 sm:$0x3] %vm1828, %v667
    %s3188 = scalar_lea.vmem [#allocation5], 673
    %3189 = vst.msk [vmem:[%s3188] ss:$2 sm:$0x3] %vm1828, %v668
    %s3190 = scalar_lea.vmem [#allocation5], 677
    %3191 = vst.msk [vmem:[%s3190] ss:$2 sm:$0x3] %vm1828, %v670
    %s3192 = scalar_lea.vmem [#allocation5], 681
    %3193 = vst.msk [vmem:[%s3192] ss:$2 sm:$0x3] %vm1828, %v672
    %s3194 = scalar_lea.vmem [#allocation5], 685
    %3195 = vst.msk [vmem:[%s3194] ss:$2 sm:$0x3] %vm1828, %v674
    %s3196 = scalar_lea.vmem [#allocation5], 689
    %3197 = vst.msk [vmem:[%s3196] ss:$2 sm:$0x3] %vm1828, %v676
    %s3198 = scalar_lea.vmem [#allocation5], 693
    %3199 = vst.msk [vmem:[%s3198] ss:$2 sm:$0x3] %vm1828, %v678
    %s3200 = scalar_lea.vmem [#allocation5], 697
    %3201 = vst.msk [vmem:[%s3200] ss:$2 sm:$0x3] %vm1828, %v680
    %s3202 = scalar_lea.vmem [#allocation5], 701
    %3203 = vst.msk [vmem:[%s3202] ss:$2 sm:$0x3] %vm1828, %v682
    %s3204 = scalar_lea.vmem [#allocation5], 705
    %3205 = vst.msk [vmem:[%s3204] ss:$2 sm:$0x3] %vm1828, %v683
    %s3206 = scalar_lea.vmem [#allocation5], 709
    %3207 = vst.msk [vmem:[%s3206] ss:$2 sm:$0x3] %vm1828, %v685
    %s3208 = scalar_lea.vmem [#allocation5], 713
    %3209 = vst.msk [vmem:[%s3208] ss:$2 sm:$0x3] %vm1828, %v687
    %s3210 = scalar_lea.vmem [#allocation5], 717
    %3211 = vst.msk [vmem:[%s3210] ss:$2 sm:$0x3] %vm1828, %v689
    %s3212 = scalar_lea.vmem [#allocation5], 721
    %3213 = vst.msk [vmem:[%s3212] ss:$2 sm:$0x3] %vm1828, %v691
    %s3214 = scalar_lea.vmem [#allocation5], 725
    %3215 = vst.msk [vmem:[%s3214] ss:$2 sm:$0x3] %vm1828, %v693
    %s3216 = scalar_lea.vmem [#allocation5], 729
    %3217 = vst.msk [vmem:[%s3216] ss:$2 sm:$0x3] %vm1828, %v695
    %s3218 = scalar_lea.vmem [#allocation5], 733
    %3219 = vst.msk [vmem:[%s3218] ss:$2 sm:$0x3] %vm1828, %v697
    %s3220 = scalar_lea.vmem [#allocation5], 737
    %3221 = vst.msk [vmem:[%s3220] ss:$2 sm:$0x3] %vm1828, %v698
    %s3222 = scalar_lea.vmem [#allocation5], 741
    %3223 = vst.msk [vmem:[%s3222] ss:$2 sm:$0x3] %vm1828, %v700
    %s3224 = scalar_lea.vmem [#allocation5], 745
    %3225 = vst.msk [vmem:[%s3224] ss:$2 sm:$0x3] %vm1828, %v702
    %s3226 = scalar_lea.vmem [#allocation5], 749
    %3227 = vst.msk [vmem:[%s3226] ss:$2 sm:$0x3] %vm1828, %v704
    %s3228 = scalar_lea.vmem [#allocation5], 753
    %3229 = vst.msk [vmem:[%s3228] ss:$2 sm:$0x3] %vm1828, %v706
    %s3230 = scalar_lea.vmem [#allocation5], 757
    %3231 = vst.msk [vmem:[%s3230] ss:$2 sm:$0x3] %vm1828, %v708
    %s3232 = scalar_lea.vmem [#allocation5], 761
    %3233 = vst.msk [vmem:[%s3232] ss:$2 sm:$0x3] %vm1828, %v710
    %s3234 = scalar_lea.vmem [#allocation5], 765
    %3235 = vst.msk [vmem:[%s3234] ss:$2 sm:$0x3] %vm1828, %v712
    %s3236 = scalar_lea.vmem [#allocation5], 769
    %3237 = vst.msk [vmem:[%s3236] ss:$2 sm:$0x3] %vm1828, %v713
    %s3238 = scalar_lea.vmem [#allocation5], 773
    %3239 = vst.msk [vmem:[%s3238] ss:$2 sm:$0x3] %vm1828, %v715
    %s3240 = scalar_lea.vmem [#allocation5], 777
    %3241 = vst.msk [vmem:[%s3240] ss:$2 sm:$0x3] %vm1828, %v717
    %s3242 = scalar_lea.vmem [#allocation5], 781
    %3243 = vst.msk [vmem:[%s3242] ss:$2 sm:$0x3] %vm1828, %v719
    %s3244 = scalar_lea.vmem [#allocation5], 785
    %3245 = vst.msk [vmem:[%s3244] ss:$2 sm:$0x3] %vm1828, %v721
    %s3246 = scalar_lea.vmem [#allocation5], 789
    %3247 = vst.msk [vmem:[%s3246] ss:$2 sm:$0x3] %vm1828, %v723
    %s3248 = scalar_lea.vmem [#allocation5], 793
    %3249 = vst.msk [vmem:[%s3248] ss:$2 sm:$0x3] %vm1828, %v725
    %s3250 = scalar_lea.vmem [#allocation5], 797
    %3251 = vst.msk [vmem:[%s3250] ss:$2 sm:$0x3] %vm1828, %v727
    %s3252 = scalar_lea.vmem [#allocation5], 801
    %3253 = vst.msk [vmem:[%s3252] ss:$2 sm:$0x3] %vm1828, %v728
    %s3254 = scalar_lea.vmem [#allocation5], 805
    %3255 = vst.msk [vmem:[%s3254] ss:$2 sm:$0x3] %vm1828, %v730
    %s3256 = scalar_lea.vmem [#allocation5], 809
    %3257 = vst.msk [vmem:[%s3256] ss:$2 sm:$0x3] %vm1828, %v732
    %s3258 = scalar_lea.vmem [#allocation5], 813
    %3259 = vst.msk [vmem:[%s3258] ss:$2 sm:$0x3] %vm1828, %v734
    %s3260 = scalar_lea.vmem [#allocation5], 817
    %3261 = vst.msk [vmem:[%s3260] ss:$2 sm:$0x3] %vm1828, %v736
    %s3262 = scalar_lea.vmem [#allocation5], 821
    %3263 = vst.msk [vmem:[%s3262] ss:$2 sm:$0x3] %vm1828, %v738
    %s3264 = scalar_lea.vmem [#allocation5], 825
    %3265 = vst.msk [vmem:[%s3264] ss:$2 sm:$0x3] %vm1828, %v740
    %s3266 = scalar_lea.vmem [#allocation5], 829
    %3267 = vst.msk [vmem:[%s3266] ss:$2 sm:$0x3] %vm1828, %v742
    %s3268 = scalar_lea.vmem [#allocation5], 833
    %3269 = vst.msk [vmem:[%s3268] ss:$2 sm:$0x3] %vm1828, %v743
    %s3270 = scalar_lea.vmem [#allocation5], 837
    %3271 = vst.msk [vmem:[%s3270] ss:$2 sm:$0x3] %vm1828, %v745
    %s3272 = scalar_lea.vmem [#allocation5], 841
    %3273 = vst.msk [vmem:[%s3272] ss:$2 sm:$0x3] %vm1828, %v747
    %s3274 = scalar_lea.vmem [#allocation5], 845
    %3275 = vst.msk [vmem:[%s3274] ss:$2 sm:$0x3] %vm1828, %v749
    %s3276 = scalar_lea.vmem [#allocation5], 849
    %3277 = vst.msk [vmem:[%s3276] ss:$2 sm:$0x3] %vm1828, %v751
    %s3278 = scalar_lea.vmem [#allocation5], 853
    %3279 = vst.msk [vmem:[%s3278] ss:$2 sm:$0x3] %vm1828, %v753
    %s3280 = scalar_lea.vmem [#allocation5], 857
    %3281 = vst.msk [vmem:[%s3280] ss:$2 sm:$0x3] %vm1828, %v755
    %s3282 = scalar_lea.vmem [#allocation5], 861
    %3283 = vst.msk [vmem:[%s3282] ss:$2 sm:$0x3] %vm1828, %v757
    %s3284 = scalar_lea.vmem [#allocation5], 865
    %3285 = vst.msk [vmem:[%s3284] ss:$2 sm:$0x3] %vm1828, %v758
    %s3286 = scalar_lea.vmem [#allocation5], 869
    %3287 = vst.msk [vmem:[%s3286] ss:$2 sm:$0x3] %vm1828, %v760
    %s3288 = scalar_lea.vmem [#allocation5], 873
    %3289 = vst.msk [vmem:[%s3288] ss:$2 sm:$0x3] %vm1828, %v762
    %s3290 = scalar_lea.vmem [#allocation5], 877
    %3291 = vst.msk [vmem:[%s3290] ss:$2 sm:$0x3] %vm1828, %v764
    %s3292 = scalar_lea.vmem [#allocation5], 881
    %3293 = vst.msk [vmem:[%s3292] ss:$2 sm:$0x3] %vm1828, %v766
    %s3294 = scalar_lea.vmem [#allocation5], 885
    %3295 = vst.msk [vmem:[%s3294] ss:$2 sm:$0x3] %vm1828, %v768
    %s3296 = scalar_lea.vmem [#allocation5], 889
    %3297 = vst.msk [vmem:[%s3296] ss:$2 sm:$0x3] %vm1828, %v770
    %s3298 = scalar_lea.vmem [#allocation5], 893
    %3299 = vst.msk [vmem:[%s3298] ss:$2 sm:$0x3] %vm1828, %v772
    %s3300 = scalar_lea.vmem [#allocation5], 897
    %3301 = vst.msk [vmem:[%s3300] ss:$2 sm:$0x3] %vm1828, %v773
    %s3302 = scalar_lea.vmem [#allocation5], 901
    %3303 = vst.msk [vmem:[%s3302] ss:$2 sm:$0x3] %vm1828, %v775
    %s3304 = scalar_lea.vmem [#allocation5], 905
    %3305 = vst.msk [vmem:[%s3304] ss:$2 sm:$0x3] %vm1828, %v777
    %s3306 = scalar_lea.vmem [#allocation5], 909
    %3307 = vst.msk [vmem:[%s3306] ss:$2 sm:$0x3] %vm1828, %v779
    %s3308 = scalar_lea.vmem [#allocation5], 913
    %3309 = vst.msk [vmem:[%s3308] ss:$2 sm:$0x3] %vm1828, %v781
    %s3310 = scalar_lea.vmem [#allocation5], 917
    %3311 = vst.msk [vmem:[%s3310] ss:$2 sm:$0x3] %vm1828, %v783
    %s3312 = scalar_lea.vmem [#allocation5], 921
    %3313 = vst.msk [vmem:[%s3312] ss:$2 sm:$0x3] %vm1828, %v785
    %s3314 = scalar_lea.vmem [#allocation5], 925
    %3315 = vst.msk [vmem:[%s3314] ss:$2 sm:$0x3] %vm1828, %v787
    %s3316 = scalar_lea.vmem [#allocation5], 929
    %3317 = vst.msk [vmem:[%s3316] ss:$2 sm:$0x3] %vm1828, %v788
    %s3318 = scalar_lea.vmem [#allocation5], 933
    %3319 = vst.msk [vmem:[%s3318] ss:$2 sm:$0x3] %vm1828, %v790
    %s3320 = scalar_lea.vmem [#allocation5], 937
    %3321 = vst.msk [vmem:[%s3320] ss:$2 sm:$0x3] %vm1828, %v792
    %s3322 = scalar_lea.vmem [#allocation5], 941
    %3323 = vst.msk [vmem:[%s3322] ss:$2 sm:$0x3] %vm1828, %v794
    %s3324 = scalar_lea.vmem [#allocation5], 945
    %3325 = vst.msk [vmem:[%s3324] ss:$2 sm:$0x3] %vm1828, %v796
    %s3326 = scalar_lea.vmem [#allocation5], 949
    %3327 = vst.msk [vmem:[%s3326] ss:$2 sm:$0x3] %vm1828, %v798
    %s3328 = scalar_lea.vmem [#allocation5], 953
    %3329 = vst.msk [vmem:[%s3328] ss:$2 sm:$0x3] %vm1828, %v800
    %s3330 = scalar_lea.vmem [#allocation5], 957
    %3331 = vst.msk [vmem:[%s3330] ss:$2 sm:$0x3] %vm1828, %v802
    %s3332 = scalar_lea.vmem [#allocation5], 961
    %3333 = vst.msk [vmem:[%s3332] ss:$2 sm:$0x3] %vm1828, %v803
    %s3334 = scalar_lea.vmem [#allocation5], 965
    %3335 = vst.msk [vmem:[%s3334] ss:$2 sm:$0x3] %vm1828, %v805
    %s3336 = scalar_lea.vmem [#allocation5], 969
    %3337 = vst.msk [vmem:[%s3336] ss:$2 sm:$0x3] %vm1828, %v807
    %s3338 = scalar_lea.vmem [#allocation5], 973
    %3339 = vst.msk [vmem:[%s3338] ss:$2 sm:$0x3] %vm1828, %v809
    %s3340 = scalar_lea.vmem [#allocation5], 977
    %3341 = vst.msk [vmem:[%s3340] ss:$2 sm:$0x3] %vm1828, %v811
    %s3342 = scalar_lea.vmem [#allocation5], 981
    %3343 = vst.msk [vmem:[%s3342] ss:$2 sm:$0x3] %vm1828, %v813
    %s3344 = scalar_lea.vmem [#allocation5], 985
    %3345 = vst.msk [vmem:[%s3344] ss:$2 sm:$0x3] %vm1828, %v815
    %s3346 = scalar_lea.vmem [#allocation5], 989
    %3347 = vst.msk [vmem:[%s3346] ss:$2 sm:$0x3] %vm1828, %v817
    %s3348 = scalar_lea.vmem [#allocation5], 993
    %3349 = vst.msk [vmem:[%s3348] ss:$2 sm:$0x3] %vm1828, %v818
    %s3350 = scalar_lea.vmem [#allocation5], 997
    %3351 = vst.msk [vmem:[%s3350] ss:$2 sm:$0x3] %vm1828, %v820
    %s3352 = scalar_lea.vmem [#allocation5], 1001
    %3353 = vst.msk [vmem:[%s3352] ss:$2 sm:$0x3] %vm1828, %v822
    %s3354 = scalar_lea.vmem [#allocation5], 1005
    %3355 = vst.msk [vmem:[%s3354] ss:$2 sm:$0x3] %vm1828, %v824
    %s3356 = scalar_lea.vmem [#allocation5], 1009
    %3357 = vst.msk [vmem:[%s3356] ss:$2 sm:$0x3] %vm1828, %v826
    %s3358 = scalar_lea.vmem [#allocation5], 1013
    %3359 = vst.msk [vmem:[%s3358] ss:$2 sm:$0x3] %vm1828, %v828
    %s3360 = scalar_lea.vmem [#allocation5], 1017
    %3361 = vst.msk [vmem:[%s3360] ss:$2 sm:$0x3] %vm1828, %v830
    %s3362 = scalar_lea.vmem [#allocation5], 1021
    %3363 = vst.msk [vmem:[%s3362] ss:$2 sm:$0x3] %vm1828, %v832
    %s3364 = scalar_lea.vmem [#allocation5], 1025
    %3365 = vst.msk [vmem:[%s3364] ss:$2 sm:$0x3] %vm1828, %v833
    %s3366 = scalar_lea.vmem [#allocation5], 1029
    %3367 = vst.msk [vmem:[%s3366] ss:$2 sm:$0x3] %vm1828, %v835
    %s3368 = scalar_lea.vmem [#allocation5], 1033
    %3369 = vst.msk [vmem:[%s3368] ss:$2 sm:$0x3] %vm1828, %v837
    %s3370 = scalar_lea.vmem [#allocation5], 1037
    %3371 = vst.msk [vmem:[%s3370] ss:$2 sm:$0x3] %vm1828, %v839
    %s3372 = scalar_lea.vmem [#allocation5], 1041
    %3373 = vst.msk [vmem:[%s3372] ss:$2 sm:$0x3] %vm1828, %v841
    %s3374 = scalar_lea.vmem [#allocation5], 1045
    %3375 = vst.msk [vmem:[%s3374] ss:$2 sm:$0x3] %vm1828, %v843
    %s3376 = scalar_lea.vmem [#allocation5], 1049
    %3377 = vst.msk [vmem:[%s3376] ss:$2 sm:$0x3] %vm1828, %v845
    %s3378 = scalar_lea.vmem [#allocation5], 1053
    %3379 = vst.msk [vmem:[%s3378] ss:$2 sm:$0x3] %vm1828, %v847
    %s3380 = scalar_lea.vmem [#allocation5], 1057
    %3381 = vst.msk [vmem:[%s3380] ss:$2 sm:$0x3] %vm1828, %v848
    %s3382 = scalar_lea.vmem [#allocation5], 1061
    %3383 = vst.msk [vmem:[%s3382] ss:$2 sm:$0x3] %vm1828, %v850
    %s3384 = scalar_lea.vmem [#allocation5], 1065
    %3385 = vst.msk [vmem:[%s3384] ss:$2 sm:$0x3] %vm1828, %v852
    %s3386 = scalar_lea.vmem [#allocation5], 1069
    %3387 = vst.msk [vmem:[%s3386] ss:$2 sm:$0x3] %vm1828, %v854
    %s3388 = scalar_lea.vmem [#allocation5], 1073
    %3389 = vst.msk [vmem:[%s3388] ss:$2 sm:$0x3] %vm1828, %v856
    %s3390 = scalar_lea.vmem [#allocation5], 1077
    %3391 = vst.msk [vmem:[%s3390] ss:$2 sm:$0x3] %vm1828, %v858
    %s3392 = scalar_lea.vmem [#allocation5], 1081
    %3393 = vst.msk [vmem:[%s3392] ss:$2 sm:$0x3] %vm1828, %v860
    %s3394 = scalar_lea.vmem [#allocation5], 1085
    %3395 = vst.msk [vmem:[%s3394] ss:$2 sm:$0x3] %vm1828, %v862
    %s3396 = scalar_lea.vmem [#allocation5], 1089
    %3397 = vst.msk [vmem:[%s3396] ss:$2 sm:$0x3] %vm1828, %v863
    %s3398 = scalar_lea.vmem [#allocation5], 1093
    %3399 = vst.msk [vmem:[%s3398] ss:$2 sm:$0x3] %vm1828, %v865
    %s3400 = scalar_lea.vmem [#allocation5], 1097
    %3401 = vst.msk [vmem:[%s3400] ss:$2 sm:$0x3] %vm1828, %v867
    %s3402 = scalar_lea.vmem [#allocation5], 1101
    %3403 = vst.msk [vmem:[%s3402] ss:$2 sm:$0x3] %vm1828, %v869
    %s3404 = scalar_lea.vmem [#allocation5], 1105
    %3405 = vst.msk [vmem:[%s3404] ss:$2 sm:$0x3] %vm1828, %v871
    %s3406 = scalar_lea.vmem [#allocation5], 1109
    %3407 = vst.msk [vmem:[%s3406] ss:$2 sm:$0x3] %vm1828, %v873
    %s3408 = scalar_lea.vmem [#allocation5], 1113
    %3409 = vst.msk [vmem:[%s3408] ss:$2 sm:$0x3] %vm1828, %v875
    %s3410 = scalar_lea.vmem [#allocation5], 1117
    %3411 = vst.msk [vmem:[%s3410] ss:$2 sm:$0x3] %vm1828, %v877
    %s3412 = scalar_lea.vmem [#allocation5], 1121
    %3413 = vst.msk [vmem:[%s3412] ss:$2 sm:$0x3] %vm1828, %v878
    %s3414 = scalar_lea.vmem [#allocation5], 1125
    %3415 = vst.msk [vmem:[%s3414] ss:$2 sm:$0x3] %vm1828, %v880
    %s3416 = scalar_lea.vmem [#allocation5], 1129
    %3417 = vst.msk [vmem:[%s3416] ss:$2 sm:$0x3] %vm1828, %v882
    %s3418 = scalar_lea.vmem [#allocation5], 1133
    %3419 = vst.msk [vmem:[%s3418] ss:$2 sm:$0x3] %vm1828, %v884
    %s3420 = scalar_lea.vmem [#allocation5], 1137
    %3421 = vst.msk [vmem:[%s3420] ss:$2 sm:$0x3] %vm1828, %v886
    %s3422 = scalar_lea.vmem [#allocation5], 1141
    %3423 = vst.msk [vmem:[%s3422] ss:$2 sm:$0x3] %vm1828, %v888
    %s3424 = scalar_lea.vmem [#allocation5], 1145
    %3425 = vst.msk [vmem:[%s3424] ss:$2 sm:$0x3] %vm1828, %v890
    %s3426 = scalar_lea.vmem [#allocation5], 1149
    %3427 = vst.msk [vmem:[%s3426] ss:$2 sm:$0x3] %vm1828, %v892
    %s3428 = scalar_lea.vmem [#allocation5], 1153
    %3429 = vst.msk [vmem:[%s3428] ss:$2 sm:$0x3] %vm1828, %v893
    %s3430 = scalar_lea.vmem [#allocation5], 1157
    %3431 = vst.msk [vmem:[%s3430] ss:$2 sm:$0x3] %vm1828, %v895
    %s3432 = scalar_lea.vmem [#allocation5], 1161
    %3433 = vst.msk [vmem:[%s3432] ss:$2 sm:$0x3] %vm1828, %v897
    %s3434 = scalar_lea.vmem [#allocation5], 1165
    %3435 = vst.msk [vmem:[%s3434] ss:$2 sm:$0x3] %vm1828, %v899
    %s3436 = scalar_lea.vmem [#allocation5], 1169
    %3437 = vst.msk [vmem:[%s3436] ss:$2 sm:$0x3] %vm1828, %v901
    %s3438 = scalar_lea.vmem [#allocation5], 1173
    %3439 = vst.msk [vmem:[%s3438] ss:$2 sm:$0x3] %vm1828, %v903
    %s3440 = scalar_lea.vmem [#allocation5], 1177
    %3441 = vst.msk [vmem:[%s3440] ss:$2 sm:$0x3] %vm1828, %v905
    %s3442 = scalar_lea.vmem [#allocation5], 1181
    %3443 = vst.msk [vmem:[%s3442] ss:$2 sm:$0x3] %vm1828, %v907
    %s3444 = scalar_lea.vmem [#allocation5], 1185
    %3445 = vst.msk [vmem:[%s3444] ss:$2 sm:$0x3] %vm1828, %v908
    %s3446 = scalar_lea.vmem [#allocation5], 1189
    %3447 = vst.msk [vmem:[%s3446] ss:$2 sm:$0x3] %vm1828, %v910
    %s3448 = scalar_lea.vmem [#allocation5], 1193
    %3449 = vst.msk [vmem:[%s3448] ss:$2 sm:$0x3] %vm1828, %v912
    %s3450 = scalar_lea.vmem [#allocation5], 1197
    %3451 = vst.msk [vmem:[%s3450] ss:$2 sm:$0x3] %vm1828, %v914
    %s3452 = scalar_lea.vmem [#allocation5], 1201
    %3453 = vst.msk [vmem:[%s3452] ss:$2 sm:$0x3] %vm1828, %v916
    %s3454 = scalar_lea.vmem [#allocation5], 1205
    %3455 = vst.msk [vmem:[%s3454] ss:$2 sm:$0x3] %vm1828, %v918
    %s3456 = scalar_lea.vmem [#allocation5], 1209
    %3457 = vst.msk [vmem:[%s3456] ss:$2 sm:$0x3] %vm1828, %v920
    %s3458 = scalar_lea.vmem [#allocation5], 1213
    %3459 = vst.msk [vmem:[%s3458] ss:$2 sm:$0x3] %vm1828, %v922
    %s3460 = scalar_lea.vmem [#allocation5], 1217
    %3461 = vst.msk [vmem:[%s3460] ss:$2 sm:$0x3] %vm1828, %v923
    %s3462 = scalar_lea.vmem [#allocation5], 1221
    %3463 = vst.msk [vmem:[%s3462] ss:$2 sm:$0x3] %vm1828, %v925
    %s3464 = scalar_lea.vmem [#allocation5], 1225
    %3465 = vst.msk [vmem:[%s3464] ss:$2 sm:$0x3] %vm1828, %v927
    %s3466 = scalar_lea.vmem [#allocation5], 1229
    %3467 = vst.msk [vmem:[%s3466] ss:$2 sm:$0x3] %vm1828, %v929
    %s3468 = scalar_lea.vmem [#allocation5], 1233
    %3469 = vst.msk [vmem:[%s3468] ss:$2 sm:$0x3] %vm1828, %v931
    %s3470 = scalar_lea.vmem [#allocation5], 1237
    %3471 = vst.msk [vmem:[%s3470] ss:$2 sm:$0x3] %vm1828, %v933
    %s3472 = scalar_lea.vmem [#allocation5], 1241
    %3473 = vst.msk [vmem:[%s3472] ss:$2 sm:$0x3] %vm1828, %v935
    %s3474 = scalar_lea.vmem [#allocation5], 1245
    %3475 = vst.msk [vmem:[%s3474] ss:$2 sm:$0x3] %vm1828, %v937
    %s3476 = scalar_lea.vmem [#allocation5], 1249
    %3477 = vst.msk [vmem:[%s3476] ss:$2 sm:$0x3] %vm1828, %v938
    %s3478 = scalar_lea.vmem [#allocation5], 1253
    %3479 = vst.msk [vmem:[%s3478] ss:$2 sm:$0x3] %vm1828, %v940
    %s3480 = scalar_lea.vmem [#allocation5], 1257
    %3481 = vst.msk [vmem:[%s3480] ss:$2 sm:$0x3] %vm1828, %v942
    %s3482 = scalar_lea.vmem [#allocation5], 1261
    %3483 = vst.msk [vmem:[%s3482] ss:$2 sm:$0x3] %vm1828, %v944
    %s3484 = scalar_lea.vmem [#allocation5], 1265
    %3485 = vst.msk [vmem:[%s3484] ss:$2 sm:$0x3] %vm1828, %v946
    %s3486 = scalar_lea.vmem [#allocation5], 1269
    %3487 = vst.msk [vmem:[%s3486] ss:$2 sm:$0x3] %vm1828, %v948
    %s3488 = scalar_lea.vmem [#allocation5], 1273
    %3489 = vst.msk [vmem:[%s3488] ss:$2 sm:$0x3] %vm1828, %v950
    %s3490 = scalar_lea.vmem [#allocation5], 1277
    %3491 = vst.msk [vmem:[%s3490] ss:$2 sm:$0x3] %vm1828, %v952
    %s3492 = scalar_lea.vmem [#allocation5], 1281
    %3493 = vst.msk [vmem:[%s3492] ss:$2 sm:$0x3] %vm1828, %v953
    %s3494 = scalar_lea.vmem [#allocation5], 1285
    %3495 = vst.msk [vmem:[%s3494] ss:$2 sm:$0x3] %vm1828, %v955
    %s3496 = scalar_lea.vmem [#allocation5], 1289
    %3497 = vst.msk [vmem:[%s3496] ss:$2 sm:$0x3] %vm1828, %v957
    %s3498 = scalar_lea.vmem [#allocation5], 1293
    %3499 = vst.msk [vmem:[%s3498] ss:$2 sm:$0x3] %vm1828, %v959
    %s3500 = scalar_lea.vmem [#allocation5], 1297
    %3501 = vst.msk [vmem:[%s3500] ss:$2 sm:$0x3] %vm1828, %v961
    %s3502 = scalar_lea.vmem [#allocation5], 1301
    %3503 = vst.msk [vmem:[%s3502] ss:$2 sm:$0x3] %vm1828, %v963
    %s3504 = scalar_lea.vmem [#allocation5], 1305
    %3505 = vst.msk [vmem:[%s3504] ss:$2 sm:$0x3] %vm1828, %v965
    %s3506 = scalar_lea.vmem [#allocation5], 1309
    %3507 = vst.msk [vmem:[%s3506] ss:$2 sm:$0x3] %vm1828, %v967
    %s3508 = scalar_lea.vmem [#allocation5], 1313
    %3509 = vst.msk [vmem:[%s3508] ss:$2 sm:$0x3] %vm1828, %v968
    %s3510 = scalar_lea.vmem [#allocation5], 1317
    %3511 = vst.msk [vmem:[%s3510] ss:$2 sm:$0x3] %vm1828, %v970
    %s3512 = scalar_lea.vmem [#allocation5], 1321
    %3513 = vst.msk [vmem:[%s3512] ss:$2 sm:$0x3] %vm1828, %v972
    %s3514 = scalar_lea.vmem [#allocation5], 1325
    %3515 = vst.msk [vmem:[%s3514] ss:$2 sm:$0x3] %vm1828, %v974
    %s3516 = scalar_lea.vmem [#allocation5], 1329
    %3517 = vst.msk [vmem:[%s3516] ss:$2 sm:$0x3] %vm1828, %v976
    %s3518 = scalar_lea.vmem [#allocation5], 1333
    %3519 = vst.msk [vmem:[%s3518] ss:$2 sm:$0x3] %vm1828, %v978
    %s3520 = scalar_lea.vmem [#allocation5], 1337
    %3521 = vst.msk [vmem:[%s3520] ss:$2 sm:$0x3] %vm1828, %v980
    %s3522 = scalar_lea.vmem [#allocation5], 1341
    %3523 = vst.msk [vmem:[%s3522] ss:$2 sm:$0x3] %vm1828, %v982
    %s3524 = scalar_lea.vmem [#allocation5], 1345
    %3525 = vst.msk [vmem:[%s3524] ss:$2 sm:$0x3] %vm1828, %v983
    %s3526 = scalar_lea.vmem [#allocation5], 1349
    %3527 = vst.msk [vmem:[%s3526] ss:$2 sm:$0x3] %vm1828, %v985
    %s3528 = scalar_lea.vmem [#allocation5], 1353
    %3529 = vst.msk [vmem:[%s3528] ss:$2 sm:$0x3] %vm1828, %v987
    %s3530 = scalar_lea.vmem [#allocation5], 1357
    %3531 = vst.msk [vmem:[%s3530] ss:$2 sm:$0x3] %vm1828, %v989
    %s3532 = scalar_lea.vmem [#allocation5], 1361
    %3533 = vst.msk [vmem:[%s3532] ss:$2 sm:$0x3] %vm1828, %v991
    %s3534 = scalar_lea.vmem [#allocation5], 1365
    %3535 = vst.msk [vmem:[%s3534] ss:$2 sm:$0x3] %vm1828, %v993
    %s3536 = scalar_lea.vmem [#allocation5], 1369
    %3537 = vst.msk [vmem:[%s3536] ss:$2 sm:$0x3] %vm1828, %v995
    %s3538 = scalar_lea.vmem [#allocation5], 1373
    %3539 = vst.msk [vmem:[%s3538] ss:$2 sm:$0x3] %vm1828, %v997
    %s3540 = scalar_lea.vmem [#allocation5], 1377
    %3541 = vst.msk [vmem:[%s3540] ss:$2 sm:$0x3] %vm1828, %v998
    %s3542 = scalar_lea.vmem [#allocation5], 1381
    %3543 = vst.msk [vmem:[%s3542] ss:$2 sm:$0x3] %vm1828, %v1000
    %s3544 = scalar_lea.vmem [#allocation5], 1385
    %3545 = vst.msk [vmem:[%s3544] ss:$2 sm:$0x3] %vm1828, %v1002
    %s3546 = scalar_lea.vmem [#allocation5], 1389
    %3547 = vst.msk [vmem:[%s3546] ss:$2 sm:$0x3] %vm1828, %v1004
    %s3548 = scalar_lea.vmem [#allocation5], 1393
    %3549 = vst.msk [vmem:[%s3548] ss:$2 sm:$0x3] %vm1828, %v1006
    %s3550 = scalar_lea.vmem [#allocation5], 1397
    %3551 = vst.msk [vmem:[%s3550] ss:$2 sm:$0x3] %vm1828, %v1008
    %s3552 = scalar_lea.vmem [#allocation5], 1401
    %3553 = vst.msk [vmem:[%s3552] ss:$2 sm:$0x3] %vm1828, %v1010
    %s3554 = scalar_lea.vmem [#allocation5], 1405
    %3555 = vst.msk [vmem:[%s3554] ss:$2 sm:$0x3] %vm1828, %v1012
    %s3556 = scalar_lea.vmem [#allocation5], 1409
    %3557 = vst.msk [vmem:[%s3556] ss:$2 sm:$0x3] %vm1828, %v1013
    %s3558 = scalar_lea.vmem [#allocation5], 1413
    %3559 = vst.msk [vmem:[%s3558] ss:$2 sm:$0x3] %vm1828, %v1015
    %s3560 = scalar_lea.vmem [#allocation5], 1417
    %3561 = vst.msk [vmem:[%s3560] ss:$2 sm:$0x3] %vm1828, %v1017
    %s3562 = scalar_lea.vmem [#allocation5], 1421
    %3563 = vst.msk [vmem:[%s3562] ss:$2 sm:$0x3] %vm1828, %v1019
    %s3564 = scalar_lea.vmem [#allocation5], 1425
    %3565 = vst.msk [vmem:[%s3564] ss:$2 sm:$0x3] %vm1828, %v1021
    %s3566 = scalar_lea.vmem [#allocation5], 1429
    %3567 = vst.msk [vmem:[%s3566] ss:$2 sm:$0x3] %vm1828, %v1023
    %s3568 = scalar_lea.vmem [#allocation5], 1433
    %3569 = vst.msk [vmem:[%s3568] ss:$2 sm:$0x3] %vm1828, %v1025
    %s3570 = scalar_lea.vmem [#allocation5], 1437
    %3571 = vst.msk [vmem:[%s3570] ss:$2 sm:$0x3] %vm1828, %v1027
    %s3572 = scalar_lea.vmem [#allocation5], 1441
    %3573 = vst.msk [vmem:[%s3572] ss:$2 sm:$0x3] %vm1828, %v1028
    %s3574 = scalar_lea.vmem [#allocation5], 1445
    %3575 = vst.msk [vmem:[%s3574] ss:$2 sm:$0x3] %vm1828, %v1030
    %s3576 = scalar_lea.vmem [#allocation5], 1449
    %3577 = vst.msk [vmem:[%s3576] ss:$2 sm:$0x3] %vm1828, %v1032
    %s3578 = scalar_lea.vmem [#allocation5], 1453
    %3579 = vst.msk [vmem:[%s3578] ss:$2 sm:$0x3] %vm1828, %v1034
    %s3580 = scalar_lea.vmem [#allocation5], 1457
    %3581 = vst.msk [vmem:[%s3580] ss:$2 sm:$0x3] %vm1828, %v1036
    %s3582 = scalar_lea.vmem [#allocation5], 1461
    %3583 = vst.msk [vmem:[%s3582] ss:$2 sm:$0x3] %vm1828, %v1038
    %s3584 = scalar_lea.vmem [#allocation5], 1465
    %3585 = vst.msk [vmem:[%s3584] ss:$2 sm:$0x3] %vm1828, %v1040
    %s3586 = scalar_lea.vmem [#allocation5], 1469
    %3587 = vst.msk [vmem:[%s3586] ss:$2 sm:$0x3] %vm1828, %v1042
    %s3588 = scalar_lea.vmem [#allocation5], 1473
    %3589 = vst.msk [vmem:[%s3588] ss:$2 sm:$0x3] %vm1828, %v1043
    %s3590 = scalar_lea.vmem [#allocation5], 1477
    %3591 = vst.msk [vmem:[%s3590] ss:$2 sm:$0x3] %vm1828, %v1045
    %s3592 = scalar_lea.vmem [#allocation5], 1481
    %3593 = vst.msk [vmem:[%s3592] ss:$2 sm:$0x3] %vm1828, %v1047
    %s3594 = scalar_lea.vmem [#allocation5], 1485
    %3595 = vst.msk [vmem:[%s3594] ss:$2 sm:$0x3] %vm1828, %v1049
    %s3596 = scalar_lea.vmem [#allocation5], 1489
    %3597 = vst.msk [vmem:[%s3596] ss:$2 sm:$0x3] %vm1828, %v1051
    %s3598 = scalar_lea.vmem [#allocation5], 1493
    %3599 = vst.msk [vmem:[%s3598] ss:$2 sm:$0x3] %vm1828, %v1053
    %s3600 = scalar_lea.vmem [#allocation5], 1497
    %3601 = vst.msk [vmem:[%s3600] ss:$2 sm:$0x3] %vm1828, %v1055
    %s3602 = scalar_lea.vmem [#allocation5], 1501
    %3603 = vst.msk [vmem:[%s3602] ss:$2 sm:$0x3] %vm1828, %v1057
    %s3604 = scalar_lea.vmem [#allocation5], 1505
    %3605 = vst.msk [vmem:[%s3604] ss:$2 sm:$0x3] %vm1828, %v1058
    %s3606 = scalar_lea.vmem [#allocation5], 1509
    %3607 = vst.msk [vmem:[%s3606] ss:$2 sm:$0x3] %vm1828, %v1060
    %s3608 = scalar_lea.vmem [#allocation5], 1513
    %3609 = vst.msk [vmem:[%s3608] ss:$2 sm:$0x3] %vm1828, %v1062
    %s3610 = scalar_lea.vmem [#allocation5], 1517
    %3611 = vst.msk [vmem:[%s3610] ss:$2 sm:$0x3] %vm1828, %v1064
    %s3612 = scalar_lea.vmem [#allocation5], 1521
    %3613 = vst.msk [vmem:[%s3612] ss:$2 sm:$0x3] %vm1828, %v1066
    %s3614 = scalar_lea.vmem [#allocation5], 1525
    %3615 = vst.msk [vmem:[%s3614] ss:$2 sm:$0x3] %vm1828, %v1068
    %s3616 = scalar_lea.vmem [#allocation5], 1529
    %3617 = vst.msk [vmem:[%s3616] ss:$2 sm:$0x3] %vm1828, %v1070
    %s3618 = scalar_lea.vmem [#allocation5], 1533
    %3619 = vst.msk [vmem:[%s3618] ss:$2 sm:$0x3] %vm1828, %v1072
    %s3620 = scalar_lea.vmem [#allocation5], 1537
    %3621 = vst.msk [vmem:[%s3620] ss:$2 sm:$0x3] %vm1828, %v1073
    %s3622 = scalar_lea.vmem [#allocation5], 1541
    %3623 = vst.msk [vmem:[%s3622] ss:$2 sm:$0x3] %vm1828, %v1075
    %s3624 = scalar_lea.vmem [#allocation5], 1545
    %3625 = vst.msk [vmem:[%s3624] ss:$2 sm:$0x3] %vm1828, %v1077
    %s3626 = scalar_lea.vmem [#allocation5], 1549
    %3627 = vst.msk [vmem:[%s3626] ss:$2 sm:$0x3] %vm1828, %v1079
    %s3628 = scalar_lea.vmem [#allocation5], 1553
    %3629 = vst.msk [vmem:[%s3628] ss:$2 sm:$0x3] %vm1828, %v1081
    %s3630 = scalar_lea.vmem [#allocation5], 1557
    %3631 = vst.msk [vmem:[%s3630] ss:$2 sm:$0x3] %vm1828, %v1083
    %s3632 = scalar_lea.vmem [#allocation5], 1561
    %3633 = vst.msk [vmem:[%s3632] ss:$2 sm:$0x3] %vm1828, %v1085
    %s3634 = scalar_lea.vmem [#allocation5], 1565
    %3635 = vst.msk [vmem:[%s3634] ss:$2 sm:$0x3] %vm1828, %v1087
    %s3636 = scalar_lea.vmem [#allocation5], 1569
    %3637 = vst.msk [vmem:[%s3636] ss:$2 sm:$0x3] %vm1828, %v1088
    %s3638 = scalar_lea.vmem [#allocation5], 1573
    %3639 = vst.msk [vmem:[%s3638] ss:$2 sm:$0x3] %vm1828, %v1090
    %s3640 = scalar_lea.vmem [#allocation5], 1577
    %3641 = vst.msk [vmem:[%s3640] ss:$2 sm:$0x3] %vm1828, %v1092
    %s3642 = scalar_lea.vmem [#allocation5], 1581
    %3643 = vst.msk [vmem:[%s3642] ss:$2 sm:$0x3] %vm1828, %v1094
    %s3644 = scalar_lea.vmem [#allocation5], 1585
    %3645 = vst.msk [vmem:[%s3644] ss:$2 sm:$0x3] %vm1828, %v1096
    %s3646 = scalar_lea.vmem [#allocation5], 1589
    %3647 = vst.msk [vmem:[%s3646] ss:$2 sm:$0x3] %vm1828, %v1098
    %s3648 = scalar_lea.vmem [#allocation5], 1593
    %3649 = vst.msk [vmem:[%s3648] ss:$2 sm:$0x3] %vm1828, %v1100
    %s3650 = scalar_lea.vmem [#allocation5], 1597
    %3651 = vst.msk [vmem:[%s3650] ss:$2 sm:$0x3] %vm1828, %v1102
    %s3652 = scalar_lea.vmem [#allocation5], 1601
    %3653 = vst.msk [vmem:[%s3652] ss:$2 sm:$0x3] %vm1828, %v1103
    %s3654 = scalar_lea.vmem [#allocation5], 1605
    %3655 = vst.msk [vmem:[%s3654] ss:$2 sm:$0x3] %vm1828, %v1105
    %s3656 = scalar_lea.vmem [#allocation5], 1609
    %3657 = vst.msk [vmem:[%s3656] ss:$2 sm:$0x3] %vm1828, %v1107
    %s3658 = scalar_lea.vmem [#allocation5], 1613
    %3659 = vst.msk [vmem:[%s3658] ss:$2 sm:$0x3] %vm1828, %v1109
    %s3660 = scalar_lea.vmem [#allocation5], 1617
    %3661 = vst.msk [vmem:[%s3660] ss:$2 sm:$0x3] %vm1828, %v1111
    %s3662 = scalar_lea.vmem [#allocation5], 1621
    %3663 = vst.msk [vmem:[%s3662] ss:$2 sm:$0x3] %vm1828, %v1113
    %s3664 = scalar_lea.vmem [#allocation5], 1625
    %3665 = vst.msk [vmem:[%s3664] ss:$2 sm:$0x3] %vm1828, %v1115
    %s3666 = scalar_lea.vmem [#allocation5], 1629
    %3667 = vst.msk [vmem:[%s3666] ss:$2 sm:$0x3] %vm1828, %v1117
    %s3668 = scalar_lea.vmem [#allocation5], 1633
    %3669 = vst.msk [vmem:[%s3668] ss:$2 sm:$0x3] %vm1828, %v1118
    %s3670 = scalar_lea.vmem [#allocation5], 1637
    %3671 = vst.msk [vmem:[%s3670] ss:$2 sm:$0x3] %vm1828, %v1120
    %s3672 = scalar_lea.vmem [#allocation5], 1641
    %3673 = vst.msk [vmem:[%s3672] ss:$2 sm:$0x3] %vm1828, %v1122
    %s3674 = scalar_lea.vmem [#allocation5], 1645
    %3675 = vst.msk [vmem:[%s3674] ss:$2 sm:$0x3] %vm1828, %v1124
    %s3676 = scalar_lea.vmem [#allocation5], 1649
    %3677 = vst.msk [vmem:[%s3676] ss:$2 sm:$0x3] %vm1828, %v1126
    %s3678 = scalar_lea.vmem [#allocation5], 1653
    %3679 = vst.msk [vmem:[%s3678] ss:$2 sm:$0x3] %vm1828, %v1128
    %s3680 = scalar_lea.vmem [#allocation5], 1657
    %3681 = vst.msk [vmem:[%s3680] ss:$2 sm:$0x3] %vm1828, %v1130
    %s3682 = scalar_lea.vmem [#allocation5], 1661
    %3683 = vst.msk [vmem:[%s3682] ss:$2 sm:$0x3] %vm1828, %v1132
    %s3684 = scalar_lea.vmem [#allocation5], 1665
    %3685 = vst.msk [vmem:[%s3684] ss:$2 sm:$0x3] %vm1828, %v1133
    %s3686 = scalar_lea.vmem [#allocation5], 1669
    %3687 = vst.msk [vmem:[%s3686] ss:$2 sm:$0x3] %vm1828, %v1135
    %s3688 = scalar_lea.vmem [#allocation5], 1673
    %3689 = vst.msk [vmem:[%s3688] ss:$2 sm:$0x3] %vm1828, %v1137
    %s3690 = scalar_lea.vmem [#allocation5], 1677
    %3691 = vst.msk [vmem:[%s3690] ss:$2 sm:$0x3] %vm1828, %v1139
    %s3692 = scalar_lea.vmem [#allocation5], 1681
    %3693 = vst.msk [vmem:[%s3692] ss:$2 sm:$0x3] %vm1828, %v1141
    %s3694 = scalar_lea.vmem [#allocation5], 1685
    %3695 = vst.msk [vmem:[%s3694] ss:$2 sm:$0x3] %vm1828, %v1143
    %s3696 = scalar_lea.vmem [#allocation5], 1689
    %3697 = vst.msk [vmem:[%s3696] ss:$2 sm:$0x3] %vm1828, %v1145
    %s3698 = scalar_lea.vmem [#allocation5], 1693
    %3699 = vst.msk [vmem:[%s3698] ss:$2 sm:$0x3] %vm1828, %v1147
    %s3700 = scalar_lea.vmem [#allocation5], 1697
    %3701 = vst.msk [vmem:[%s3700] ss:$2 sm:$0x3] %vm1828, %v1148
    %s3702 = scalar_lea.vmem [#allocation5], 1701
    %3703 = vst.msk [vmem:[%s3702] ss:$2 sm:$0x3] %vm1828, %v1150
    %s3704 = scalar_lea.vmem [#allocation5], 1705
    %3705 = vst.msk [vmem:[%s3704] ss:$2 sm:$0x3] %vm1828, %v1152
    %s3706 = scalar_lea.vmem [#allocation5], 1709
    %3707 = vst.msk [vmem:[%s3706] ss:$2 sm:$0x3] %vm1828, %v1154
    %s3708 = scalar_lea.vmem [#allocation5], 1713
    %3709 = vst.msk [vmem:[%s3708] ss:$2 sm:$0x3] %vm1828, %v1156
    %s3710 = scalar_lea.vmem [#allocation5], 1717
    %3711 = vst.msk [vmem:[%s3710] ss:$2 sm:$0x3] %vm1828, %v1158
    %s3712 = scalar_lea.vmem [#allocation5], 1721
    %3713 = vst.msk [vmem:[%s3712] ss:$2 sm:$0x3] %vm1828, %v1160
    %s3714 = scalar_lea.vmem [#allocation5], 1725
    %3715 = vst.msk [vmem:[%s3714] ss:$2 sm:$0x3] %vm1828, %v1162
    %s3716 = scalar_lea.vmem [#allocation5], 1729
    %3717 = vst.msk [vmem:[%s3716] ss:$2 sm:$0x3] %vm1828, %v1163
    %s3718 = scalar_lea.vmem [#allocation5], 1733
    %3719 = vst.msk [vmem:[%s3718] ss:$2 sm:$0x3] %vm1828, %v1165
    %s3720 = scalar_lea.vmem [#allocation5], 1737
    %3721 = vst.msk [vmem:[%s3720] ss:$2 sm:$0x3] %vm1828, %v1167
    %s3722 = scalar_lea.vmem [#allocation5], 1741
    %3723 = vst.msk [vmem:[%s3722] ss:$2 sm:$0x3] %vm1828, %v1169
    %s3724 = scalar_lea.vmem [#allocation5], 1745
    %3725 = vst.msk [vmem:[%s3724] ss:$2 sm:$0x3] %vm1828, %v1171
    %s3726 = scalar_lea.vmem [#allocation5], 1749
    %3727 = vst.msk [vmem:[%s3726] ss:$2 sm:$0x3] %vm1828, %v1173
    %s3728 = scalar_lea.vmem [#allocation5], 1753
    %3729 = vst.msk [vmem:[%s3728] ss:$2 sm:$0x3] %vm1828, %v1175
    %s3730 = scalar_lea.vmem [#allocation5], 1757
    %3731 = vst.msk [vmem:[%s3730] ss:$2 sm:$0x3] %vm1828, %v1177
    %s3732 = scalar_lea.vmem [#allocation5], 1761
    %3733 = vst.msk [vmem:[%s3732] ss:$2 sm:$0x3] %vm1828, %v1178
    %s3734 = scalar_lea.vmem [#allocation5], 1765
    %3735 = vst.msk [vmem:[%s3734] ss:$2 sm:$0x3] %vm1828, %v1180
    %s3736 = scalar_lea.vmem [#allocation5], 1769
    %3737 = vst.msk [vmem:[%s3736] ss:$2 sm:$0x3] %vm1828, %v1182
    %s3738 = scalar_lea.vmem [#allocation5], 1773
    %3739 = vst.msk [vmem:[%s3738] ss:$2 sm:$0x3] %vm1828, %v1184
    %s3740 = scalar_lea.vmem [#allocation5], 1777
    %3741 = vst.msk [vmem:[%s3740] ss:$2 sm:$0x3] %vm1828, %v1186
    %s3742 = scalar_lea.vmem [#allocation5], 1781
    %3743 = vst.msk [vmem:[%s3742] ss:$2 sm:$0x3] %vm1828, %v1188
    %s3744 = scalar_lea.vmem [#allocation5], 1785
    %3745 = vst.msk [vmem:[%s3744] ss:$2 sm:$0x3] %vm1828, %v1190
    %s3746 = scalar_lea.vmem [#allocation5], 1789
    %3747 = vst.msk [vmem:[%s3746] ss:$2 sm:$0x3] %vm1828, %v1192
    %s3748 = scalar_lea.vmem [#allocation5], 1793
    %3749 = vst.msk [vmem:[%s3748] ss:$2 sm:$0x3] %vm1828, %v1193
    %s3750 = scalar_lea.vmem [#allocation5], 1797
    %3751 = vst.msk [vmem:[%s3750] ss:$2 sm:$0x3] %vm1828, %v1195
    %s3752 = scalar_lea.vmem [#allocation5], 1801
    %3753 = vst.msk [vmem:[%s3752] ss:$2 sm:$0x3] %vm1828, %v1197
    %s3754 = scalar_lea.vmem [#allocation5], 1805
    %3755 = vst.msk [vmem:[%s3754] ss:$2 sm:$0x3] %vm1828, %v1199
    %s3756 = scalar_lea.vmem [#allocation5], 1809
    %3757 = vst.msk [vmem:[%s3756] ss:$2 sm:$0x3] %vm1828, %v1201
    %s3758 = scalar_lea.vmem [#allocation5], 1813
    %3759 = vst.msk [vmem:[%s3758] ss:$2 sm:$0x3] %vm1828, %v1203
    %s3760 = scalar_lea.vmem [#allocation5], 1817
    %3761 = vst.msk [vmem:[%s3760] ss:$2 sm:$0x3] %vm1828, %v1205
    %s3762 = scalar_lea.vmem [#allocation5], 1821
    %3763 = vst.msk [vmem:[%s3762] ss:$2 sm:$0x3] %vm1828, %v1207
    %s3764 = scalar_lea.vmem [#allocation5], 1825
    %3765 = vst.msk [vmem:[%s3764] ss:$2 sm:$0x3] %vm1828, %v1208
    %s3766 = scalar_lea.vmem [#allocation5], 1829
    %3767 = vst.msk [vmem:[%s3766] ss:$2 sm:$0x3] %vm1828, %v1210
    %s3768 = scalar_lea.vmem [#allocation5], 1833
    %3769 = vst.msk [vmem:[%s3768] ss:$2 sm:$0x3] %vm1828, %v1212
    %s3770 = scalar_lea.vmem [#allocation5], 1837
    %3771 = vst.msk [vmem:[%s3770] ss:$2 sm:$0x3] %vm1828, %v1214
    %s3772 = scalar_lea.vmem [#allocation5], 1841
    %3773 = vst.msk [vmem:[%s3772] ss:$2 sm:$0x3] %vm1828, %v1216
    %s3774 = scalar_lea.vmem [#allocation5], 1845
    %3775 = vst.msk [vmem:[%s3774] ss:$2 sm:$0x3] %vm1828, %v1218
    %s3776 = scalar_lea.vmem [#allocation5], 1849
    %3777 = vst.msk [vmem:[%s3776] ss:$2 sm:$0x3] %vm1828, %v1220
    %s3778 = scalar_lea.vmem [#allocation5], 1853
    %3779 = vst.msk [vmem:[%s3778] ss:$2 sm:$0x3] %vm1828, %v1222
    %s3780 = scalar_lea.vmem [#allocation5], 1857
    %3781 = vst.msk [vmem:[%s3780] ss:$2 sm:$0x3] %vm1828, %v1223
    %s3782 = scalar_lea.vmem [#allocation5], 1861
    %3783 = vst.msk [vmem:[%s3782] ss:$2 sm:$0x3] %vm1828, %v1225
    %s3784 = scalar_lea.vmem [#allocation5], 1865
    %3785 = vst.msk [vmem:[%s3784] ss:$2 sm:$0x3] %vm1828, %v1227
    %s3786 = scalar_lea.vmem [#allocation5], 1869
    %3787 = vst.msk [vmem:[%s3786] ss:$2 sm:$0x3] %vm1828, %v1229
    %s3788 = scalar_lea.vmem [#allocation5], 1873
    %3789 = vst.msk [vmem:[%s3788] ss:$2 sm:$0x3] %vm1828, %v1231
    %s3790 = scalar_lea.vmem [#allocation5], 1877
    %3791 = vst.msk [vmem:[%s3790] ss:$2 sm:$0x3] %vm1828, %v1233
    %s3792 = scalar_lea.vmem [#allocation5], 1881
    %3793 = vst.msk [vmem:[%s3792] ss:$2 sm:$0x3] %vm1828, %v1235
    %s3794 = scalar_lea.vmem [#allocation5], 1885
    %3795 = vst.msk [vmem:[%s3794] ss:$2 sm:$0x3] %vm1828, %v1237
    %s3796 = scalar_lea.vmem [#allocation5], 1889
    %3797 = vst.msk [vmem:[%s3796] ss:$2 sm:$0x3] %vm1828, %v1238
    %s3798 = scalar_lea.vmem [#allocation5], 1893
    %3799 = vst.msk [vmem:[%s3798] ss:$2 sm:$0x3] %vm1828, %v1240
    %s3800 = scalar_lea.vmem [#allocation5], 1897
    %3801 = vst.msk [vmem:[%s3800] ss:$2 sm:$0x3] %vm1828, %v1242
    %s3802 = scalar_lea.vmem [#allocation5], 1901
    %3803 = vst.msk [vmem:[%s3802] ss:$2 sm:$0x3] %vm1828, %v1244
    %s3804 = scalar_lea.vmem [#allocation5], 1905
    %3805 = vst.msk [vmem:[%s3804] ss:$2 sm:$0x3] %vm1828, %v1246
    %s3806 = scalar_lea.vmem [#allocation5], 1909
    %3807 = vst.msk [vmem:[%s3806] ss:$2 sm:$0x3] %vm1828, %v1248
    %s3808 = scalar_lea.vmem [#allocation5], 1913
    %3809 = vst.msk [vmem:[%s3808] ss:$2 sm:$0x3] %vm1828, %v1250
    %s3810 = scalar_lea.vmem [#allocation5], 1917
    %3811 = vst.msk [vmem:[%s3810] ss:$2 sm:$0x3] %vm1828, %v1252
    %s3812 = scalar_lea.vmem [#allocation5], 1921
    %3813 = vst.msk [vmem:[%s3812] ss:$2 sm:$0x3] %vm1828, %v1253
    %s3814 = scalar_lea.vmem [#allocation5], 1925
    %3815 = vst.msk [vmem:[%s3814] ss:$2 sm:$0x3] %vm1828, %v1255
    %s3816 = scalar_lea.vmem [#allocation5], 1929
    %3817 = vst.msk [vmem:[%s3816] ss:$2 sm:$0x3] %vm1828, %v1257
    %s3818 = scalar_lea.vmem [#allocation5], 1933
    %3819 = vst.msk [vmem:[%s3818] ss:$2 sm:$0x3] %vm1828, %v1259
    %s3820 = scalar_lea.vmem [#allocation5], 1937
    %3821 = vst.msk [vmem:[%s3820] ss:$2 sm:$0x3] %vm1828, %v1261
    %s3822 = scalar_lea.vmem [#allocation5], 1941
    %3823 = vst.msk [vmem:[%s3822] ss:$2 sm:$0x3] %vm1828, %v1263
    %s3824 = scalar_lea.vmem [#allocation5], 1945
    %3825 = vst.msk [vmem:[%s3824] ss:$2 sm:$0x3] %vm1828, %v1265
    %s3826 = scalar_lea.vmem [#allocation5], 1949
    %3827 = vst.msk [vmem:[%s3826] ss:$2 sm:$0x3] %vm1828, %v1267
    %s3828 = scalar_lea.vmem [#allocation5], 1953
    %3829 = vst.msk [vmem:[%s3828] ss:$2 sm:$0x3] %vm1828, %v1268
    %s3830 = scalar_lea.vmem [#allocation5], 1957
    %3831 = vst.msk [vmem:[%s3830] ss:$2 sm:$0x3] %vm1828, %v1270
    %s3832 = scalar_lea.vmem [#allocation5], 1961
    %3833 = vst.msk [vmem:[%s3832] ss:$2 sm:$0x3] %vm1828, %v1272
    %s3834 = scalar_lea.vmem [#allocation5], 1965
    %3835 = vst.msk [vmem:[%s3834] ss:$2 sm:$0x3] %vm1828, %v1274
    %s3836 = scalar_lea.vmem [#allocation5], 1969
    %3837 = vst.msk [vmem:[%s3836] ss:$2 sm:$0x3] %vm1828, %v1276
    %s3838 = scalar_lea.vmem [#allocation5], 1973
    %3839 = vst.msk [vmem:[%s3838] ss:$2 sm:$0x3] %vm1828, %v1278
    %s3840 = scalar_lea.vmem [#allocation5], 1977
    %3841 = vst.msk [vmem:[%s3840] ss:$2 sm:$0x3] %vm1828, %v1280
    %s3842 = scalar_lea.vmem [#allocation5], 1981
    %3843 = vst.msk [vmem:[%s3842] ss:$2 sm:$0x3] %vm1828, %v1282
    %s3844 = scalar_lea.vmem [#allocation5], 1985
    %3845 = vst.msk [vmem:[%s3844] ss:$2 sm:$0x3] %vm1828, %v1283
    %s3846 = scalar_lea.vmem [#allocation5], 1989
    %3847 = vst.msk [vmem:[%s3846] ss:$2 sm:$0x3] %vm1828, %v1285
    %s3848 = scalar_lea.vmem [#allocation5], 1993
    %3849 = vst.msk [vmem:[%s3848] ss:$2 sm:$0x3] %vm1828, %v1287
    %s3850 = scalar_lea.vmem [#allocation5], 1997
    %3851 = vst.msk [vmem:[%s3850] ss:$2 sm:$0x3] %vm1828, %v1289
    %s3852 = scalar_lea.vmem [#allocation5], 2001
    %3853 = vst.msk [vmem:[%s3852] ss:$2 sm:$0x3] %vm1828, %v1291
    %s3854 = scalar_lea.vmem [#allocation5], 2005
    %3855 = vst.msk [vmem:[%s3854] ss:$2 sm:$0x3] %vm1828, %v1293
    %s3856 = scalar_lea.vmem [#allocation5], 2009
    %3857 = vst.msk [vmem:[%s3856] ss:$2 sm:$0x3] %vm1828, %v1295
    %s3858 = scalar_lea.vmem [#allocation5], 2013
    %3859 = vst.msk [vmem:[%s3858] ss:$2 sm:$0x3] %vm1828, %v1297
    %s3860 = scalar_lea.vmem [#allocation5], 2017
    %3861 = vst.msk [vmem:[%s3860] ss:$2 sm:$0x3] %vm1828, %v1298
    %s3862 = scalar_lea.vmem [#allocation5], 2021
    %3863 = vst.msk [vmem:[%s3862] ss:$2 sm:$0x3] %vm1828, %v1300
    %s3864 = scalar_lea.vmem [#allocation5], 2025
    %3865 = vst.msk [vmem:[%s3864] ss:$2 sm:$0x3] %vm1828, %v1302
    %s3866 = scalar_lea.vmem [#allocation5], 2029
    %3867 = vst.msk [vmem:[%s3866] ss:$2 sm:$0x3] %vm1828, %v1304
    %s3868 = scalar_lea.vmem [#allocation5], 2033
    %3869 = vst.msk [vmem:[%s3868] ss:$2 sm:$0x3] %vm1828, %v1306
    %s3870 = scalar_lea.vmem [#allocation5], 2037
    %3871 = vst.msk [vmem:[%s3870] ss:$2 sm:$0x3] %vm1828, %v1308
    %s3872 = scalar_lea.vmem [#allocation5], 2041
    %3873 = vst.msk [vmem:[%s3872] ss:$2 sm:$0x3] %vm1828, %v1310
    %s3874 = scalar_lea.vmem [#allocation5], 2045
    %3875 = vst.msk [vmem:[%s3874] ss:$2 sm:$0x3] %vm1828, %v1312
    // Predicated region
    $region10: #{tpu_custom_call.1} parent=1 // pred_check
      _
    $region11: #{tpu_custom_call.1} parent=1 // pred_check_branch
      %3877 = sbr.rel (0) target = $region13
    $region12: #{tpu_custom_call.1} parent=1 // pred_region
      %3879 = vsyncadd [#allocation4], 0
      %s3880 = sshll.u32 [#allocation5], 4
      %s3881 = int_to_ptr.vmem [resolvable:$true] %s3880
      %s3882 = sshll.u32 %s1, 4
      %s3883 = int_to_ptr.hbm [resolvable:$true] %s3882
      %3888 = dma.vmem_to_hbm [thread:$0]  %s3881, 32768, %s3883, [#allocation4], 64, 64, 4
    $region13: #{tpu_custom_call.1} parent=1 // pred_fallthru
      _
    // Predicated region
    $region14: #{tpu_custom_call.1} parent=1 // pred_check
      _
    $region15: #{tpu_custom_call.1} parent=1 // pred_check_branch
      %3890 = sbr.rel (0) target = $region17
    $region16: #{tpu_custom_call.1} parent=1 // pred_region
      %3892 = dma.done [#allocation4], 32768
    $region17: #{tpu_custom_call.1} parent=1 // pred_fallthru
      _
    %3893 = vsyncpa [#allocation3], 1
    %3894 = vsyncpa [#allocation4], 1

</llo_original>
